<compile_context>
chip_gen: v7x
topology: tpu7x:2x2x1
jax: 0.10.0
libtpu: 0.0.40
codegen_flags: <defaults>
</compile_context>

<pallas_src>
import functools

import jax
import jax.numpy as jnp
from jax.experimental import pallas as pl
from jax.experimental.pallas import tpu as pltpu


def _round_up(x, m):
    return (x + m - 1) // m * m


def decoder_kernel(z_ref, w1_ref, b1_ref, w2_ref, b2_ref, p_ref):
    # fc1 + tanh (bf16 MXU matmul, f32 accumulation; activations kept in f32)
    z = z_ref[...].astype(jnp.bfloat16)
    h = jnp.dot(z, w1_ref[...], preferred_element_type=jnp.float32)
    h = jnp.tanh(h + b1_ref[...])                       # (1, Hp) bias broadcast, single add
    # fc2 + sigmoid
    y = jnp.dot(h.astype(jnp.bfloat16), w2_ref[...],
                preferred_element_type=jnp.float32)
    y = y + b2_ref[...]
    # sigmoid(y) = 1 / (1 + exp(-y)); divide goes to the (otherwise idle) EUP slot.
    p_ref[...] = pl.reciprocal(1.0 + jnp.exp(-y), approx=True)


@functools.partial(jax.jit, static_argnames=("tb",))
def decoder_forward(z, w1, b1, w2, b2, *, tb=128):
    B, latent = z.shape
    hidden = w1.shape[1]
    data_dim = w2.shape[1]

    # Lane-dense padded sizes (multiples of 128) and batch tiling.
    hp = _round_up(hidden, 128)        # 500 -> 512
    dp = _round_up(data_dim, 128)      # 784 -> 896
    tb = min(tb, _round_up(B, 8))
    bp = _round_up(B, tb)

    # Zero-pad weights/biases once (outside the kernel); weights in bf16.
    w1p = jnp.zeros((latent, hp), jnp.bfloat16).at[:, :hidden].set(
        w1.astype(jnp.bfloat16))
    b1p = jnp.zeros((1, hp), jnp.float32).at[:, :hidden].set(b1)
    w2p = jnp.zeros((hp, dp), jnp.bfloat16).at[:hidden, :data_dim].set(
        w2.astype(jnp.bfloat16))
    b2p = jnp.zeros((1, dp), jnp.float32).at[:, :data_dim].set(b2)
    zp = jnp.zeros((bp, latent), jnp.float32).at[:B, :].set(z)

    out = pl.pallas_call(
        decoder_kernel,
        out_shape=jax.ShapeDtypeStruct((bp, dp), jnp.float32),
        grid=(bp // tb,),
        in_specs=[
            pl.BlockSpec((tb, latent), lambda i: (i, 0)),   # z tile streams
            pl.BlockSpec((latent, hp), lambda i: (0, 0)),   # W1 resident
            pl.BlockSpec((1, hp), lambda i: (0, 0)),        # b1 resident
            pl.BlockSpec((hp, dp), lambda i: (0, 0)),       # W2 resident
            pl.BlockSpec((1, dp), lambda i: (0, 0)),        # b2 resident
        ],
        out_specs=pl.BlockSpec((tb, dp), lambda i: (i, 0)),
        compiler_params=pltpu.CompilerParams(
            dimension_semantics=("parallel",)),
    )(zp, w1p, b1p, w2p, b2p)

    # Slice padded lanes / padded batch rows away.
    return out[:B, :data_dim]


def init_params(key, latent_dim, hidden, data_dim):
    # Deterministic init mimicking nn.Linear's U(-1/sqrt(fan_in), 1/sqrt(fan_in)),
    # already transposed to (in, out) layout.
    k1, k2, k3, k4 = jax.random.split(key, 4)
    s1 = 1.0 / jnp.sqrt(latent_dim)
    s2 = 1.0 / jnp.sqrt(hidden)
    w1 = jax.random.uniform(k1, (latent_dim, hidden), jnp.float32, -s1, s1)
    b1 = jax.random.uniform(k2, (1, hidden), jnp.float32, -s1, s1)
    w2 = jax.random.uniform(k3, (hidden, data_dim), jnp.float32, -s2, s2)
    b2 = jax.random.uniform(k4, (1, data_dim), jnp.float32, -s2, s2)
    return w1, b1, w2, b2


if __name__ == "__main__":
    latent_dim = 32      # latent_dimension
    hidden = 500         # fixed by the module (fc1 out = 500)
    data_dim = 784       # data_dimension (e.g. 28*28 MNIST)
    batch = 256          # tiled into 128-row blocks; weights stay VMEM-resident

    key = jax.random.PRNGKey(0)
    kz, kp = jax.random.split(key)
    z = jax.random.normal(kz, (batch, latent_dim), jnp.float32)
    w1, b1, w2, b2 = init_params(kp, latent_dim, hidden, data_dim)

    p = decoder_forward(z, w1, b1, w2, b2)
    p = jax.block_until_ready(p)

    # Reference check against plain f32 JAX (same semantics as the PyTorch forward).
    # Tolerance loosened because the kernel uses bf16 weights/activations on the MXU.
    ref = jax.nn.sigmoid(jnp.tanh(z @ w1 + b1) @ w2 + b2)
    assert p.shape == (batch, data_dim)
    assert jnp.allclose(p, ref, atol=3e-2, rtol=3e-2), float(jnp.max(jnp.abs(p - ref)))

    print("KERNEL_OK")
</pallas_src>

<mosaic_0001>
module attributes {stable_mosaic.version = 11 : i64} {
  func.func @decoder_kernel(%arg0: i32, %arg1: memref<128x32xf32, #tpu.memory_space<vmem>>, %arg2: memref<32x512xbf16, #tpu.memory_space<vmem>>, %arg3: memref<1x512xf32, #tpu.memory_space<vmem>>, %arg4: memref<512x896xbf16, #tpu.memory_space<vmem>>, %arg5: memref<1x896xf32, #tpu.memory_space<vmem>>, %arg6: memref<128x896xf32, #tpu.memory_space<vmem>>) attributes {dimension_semantics = [#tpu.dimension_semantics<parallel>], iteration_bounds = array<i64: 2>, scalar_prefetch = 0 : i64, scratch_operands = 0 : i64, tpu.core_type = #tpu.core_type<tc>, window_params = [{transform_indices = @transform_0, window_bounds = array<i64: 128, 32>}, {pipeline_mode = #tpu.pipeline_mode<synchronous>, transform_indices = @transform_1, window_bounds = array<i64: 32, 512>}, {pipeline_mode = #tpu.pipeline_mode<synchronous>, transform_indices = @transform_2, window_bounds = array<i64: 1, 512>}, {pipeline_mode = #tpu.pipeline_mode<synchronous>, transform_indices = @transform_3, window_bounds = array<i64: 512, 896>}, {pipeline_mode = #tpu.pipeline_mode<synchronous>, transform_indices = @transform_4, window_bounds = array<i64: 1, 896>}, {transform_indices = @transform_5, window_bounds = array<i64: 128, 896>}]} {
    %c0 = arith.constant 0 : index
    %c0_0 = arith.constant 0 : index
    %0 = vector.load %arg1[%c0, %c0_0] : memref<128x32xf32, #tpu.memory_space<vmem>>, vector<128x32xf32>
    %1 = arith.truncf %0 : vector<128x32xf32> to vector<128x32xbf16>
    %c0_1 = arith.constant 0 : index
    %c0_2 = arith.constant 0 : index
    %2 = vector.load %arg2[%c0_1, %c0_2] : memref<32x512xbf16, #tpu.memory_space<vmem>>, vector<32x512xbf16>
    %cst = arith.constant dense<0.000000e+00> : vector<128x512xf32>
    %3 = tpu.matmul %1, %2, %cst {dimension_numbers = #tpu.dot_dimension_numbers<[1], [0], [0], [1], [0, 0, 1, 1], [], []>} : vector<128x32xbf16>, vector<32x512xbf16>, vector<128x512xf32> -> vector<128x512xf32>
    %c0_3 = arith.constant 0 : index
    %c0_4 = arith.constant 0 : index
    %4 = vector.load %arg3[%c0_3, %c0_4] : memref<1x512xf32, #tpu.memory_space<vmem>>, vector<1x512xf32>
    %5 = vector.broadcast %4 : vector<1x512xf32> to vector<128x512xf32>
    %6 = arith.addf %3, %5 : vector<128x512xf32>
    %7 = math.tanh %6 : vector<128x512xf32>
    %8 = arith.truncf %7 : vector<128x512xf32> to vector<128x512xbf16>
    %c0_5 = arith.constant 0 : index
    %c0_6 = arith.constant 0 : index
    %9 = vector.load %arg4[%c0_5, %c0_6] : memref<512x896xbf16, #tpu.memory_space<vmem>>, vector<512x896xbf16>
    %cst_7 = arith.constant dense<0.000000e+00> : vector<128x896xf32>
    %10 = tpu.matmul %8, %9, %cst_7 {dimension_numbers = #tpu.dot_dimension_numbers<[1], [0], [0], [1], [0, 0, 1, 1], [], []>} : vector<128x512xbf16>, vector<512x896xbf16>, vector<128x896xf32> -> vector<128x896xf32>
    %c0_8 = arith.constant 0 : index
    %c0_9 = arith.constant 0 : index
    %11 = vector.load %arg5[%c0_8, %c0_9] : memref<1x896xf32, #tpu.memory_space<vmem>>, vector<1x896xf32>
    %12 = vector.broadcast %11 : vector<1x896xf32> to vector<128x896xf32>
    %13 = arith.addf %10, %12 : vector<128x896xf32>
    %cst_10 = arith.constant 0.000000e+00 : f32
    %14 = vector.broadcast %cst_10 : f32 to vector<128x896xf32>
    %15 = arith.subf %14, %13 : vector<128x896xf32>
    %16 = math.exp %15 : vector<128x896xf32>
    %cst_11 = arith.constant 1.000000e+00 : f32
    %17 = vector.broadcast %cst_11 : f32 to vector<128x896xf32>
    %18 = arith.addf %17, %16 : vector<128x896xf32>
    %19 = tpu.reciprocal %18 {approx = true} : vector<128x896xf32> -> vector<128x896xf32>
    %c0_12 = arith.constant 0 : index
    %c0_13 = arith.constant 0 : index
    %20 = vector.load %arg6[%c0_12, %c0_13] : memref<128x896xf32, #tpu.memory_space<vmem>>, vector<128x896xf32>
    tpu.vector_store %arg6[%c0_12, %c0_13], %19 {strides = array<i32>} : memref<128x896xf32, #tpu.memory_space<vmem>>, vector<128x896xf32>,
    return
  }
  func.func @transform_0(%arg0: i32) -> (i32, i32) {
    %c0_i32 = arith.constant 0 : i32
    %c0_i32_0 = arith.constant 0 : i32
    return %arg0, %c0_i32 : i32, i32
  }
  func.func @transform_1(%arg0: i32) -> (i32, i32) {
    %c0_i32 = arith.constant 0 : i32
    %c0_i32_0 = arith.constant 0 : i32
    %c0_i32_1 = arith.constant 0 : i32
    return %c0_i32, %c0_i32_0 : i32, i32
  }
  func.func @transform_2(%arg0: i32) -> (i32, i32) {
    %c0_i32 = arith.constant 0 : i32
    %c0_i32_0 = arith.constant 0 : i32
    %c0_i32_1 = arith.constant 0 : i32
    return %c0_i32, %c0_i32_0 : i32, i32
  }
  func.func @transform_3(%arg0: i32) -> (i32, i32) {
    %c0_i32 = arith.constant 0 : i32
    %c0_i32_0 = arith.constant 0 : i32
    %c0_i32_1 = arith.constant 0 : i32
    return %c0_i32, %c0_i32_0 : i32, i32
  }
  func.func @transform_4(%arg0: i32) -> (i32, i32) {
    %c0_i32 = arith.constant 0 : i32
    %c0_i32_0 = arith.constant 0 : i32
    %c0_i32_1 = arith.constant 0 : i32
    return %c0_i32, %c0_i32_0 : i32, i32
  }
  func.func @transform_5(%arg0: i32) -> (i32, i32) {
    %c0_i32 = arith.constant 0 : i32
    %c0_i32_0 = arith.constant 0 : i32
    return %arg0, %c0_i32 : i32, i32
  }
}

</mosaic_0001>

<llo_original>
// kernel: decoder_forward.1
$region0: #{decoder_forward.1}
  #allocation0 [shape = 'u32[]', space=smem, size = 0x4, offset = 0x4, fixed_abs, tag = 'smem constant byte address 0x4 - core index']
  #allocation1 [shape = 'u32[144,128]{1,0:T(1,128)}', space=vmem, size = 0x12000, scoped, tag = 'internal scratch']
  %s0 = inlined_call_operand.vmem [shape: f32[256,32], index: 0, kind: input, shape index: {}]
  %s1 = inlined_call_operand.vmem [shape: bf16[32,512], index: 1, kind: input, shape index: {}]
  %s2 = inlined_call_operand.vmem [shape: f32[1,512], index: 2, kind: input, shape index: {}]
  %s3 = inlined_call_operand.vmem [shape: bf16[512,896], index: 3, kind: input, shape index: {}]
  %s4 = inlined_call_operand.vmem [shape: f32[1,896], index: 4, kind: input, shape index: {}]
  %s5 = inlined_call_operand.vmem [shape: f32[256,896], index: 5, kind: output, shape index: {}]
  %s6 = sld [smem:[#allocation0]]
  $region53: #{decoder_forward.1} parent=0
    _
  %s8 = ssub.s32 1, %s6
  %s9 = scalar_select 0, %s8, %s6
  loop: start=0, step=1, limit=4
  $region2: #{decoder_forward.1} parent=0 // loop_pre_header
    _
  $region3: #{decoder_forward.1} parent=0 // loop_header
    %s11 = sphi 0, %s15
    %p12 = scmp.ge.s32.totalorder %s11, 4
    %s21 = sphi 0, %s23
    %s24 = sphi 0, %s21
    %s25 = sphi 0, %s24
    %s41 = sphi 0, %s25
    %s45 = sphi 0, %s45
    %s47 = sphi 0, %s45
    %s48 = sphi 0, %s47
    %s62 = sphi 0, %s48
    %s66 = sphi 0, %s66
    %s68 = sphi 0, %s66
    %s69 = sphi 0, %s68
    %s83 = sphi 0, %s69
    %s87 = sphi 0, %s87
    %s89 = sphi 0, %s87
    %s90 = sphi 0, %s89
    %s104 = sphi 0, %s90
    %s108 = sphi 0, %s108
    %s110 = sphi 0, %s108
    %s111 = sphi 0, %s110
    %s125 = sphi 0, %s111
    %s131 = sphi 0, %s133
    %s134 = sphi 0, %s131
    %s135 = sphi 0, %s134
    %s151 = sphi 0, %s135
  $region4: #{decoder_forward.1} parent=0 // loop_header_branch
    %14 = sbr.rel (%p12) target = $region8
  $region5: #{decoder_forward.1} parent=0 // loop_body
    %s16 = ssub.s32 %s11, 1
    %s17 = ssub.s32 %s11, 2
    %s18 = sadd.s32 %s11, 1
    %s19 = ssub.s32 %s11, %s18
    %p20 = scmp.eq.s32.totalorder %s19, 0
    %s22 = sadd.s32 %s21, 1
    %s23 = scalar_select %p20, %s21, %s22
    %p26 = pneg %p20
    %p27 = scmp.eq.s32.totalorder %s11, 1
    %p28 = por %p26, %p27
    %p29 = scmp.ne.s32.totalorder %s21, %s24
    %p30 = scmp.eq.s32.totalorder %s11, 0
    %p31 = por %p29, %p30
    %p32 = scmp.ne.s32.totalorder %s21, %s24
    %p33 = scmp.eq.s32.totalorder %s16, 1
    %p34 = por %p32, %p33
    %p35 = scmp.ne.s32.totalorder %s24, %s25
    %p36 = scmp.eq.s32.totalorder %s16, 0
    %p37 = por %p35, %p36
    %p38 = scmp.ne.s32.totalorder %s24, %s25
    %p39 = scmp.eq.s32.totalorder %s17, 1
    %p40 = por %p38, %p39
    %p42 = scmp.ne.s32.totalorder %s25, %s41
    %p43 = scmp.eq.s32.totalorder %s17, 0
    %p44 = por %p42, %p43
    %s46 = sadd.s32 %s45, 1
    %p49 = scmp.eq.s32.totalorder %s11, 1
    %p50 = scmp.ne.s32.totalorder %s45, %s47
    %p51 = scmp.eq.s32.totalorder %s11, 0
    %p52 = por %p50, %p51
    %p53 = scmp.ne.s32.totalorder %s45, %s47
    %p54 = scmp.eq.s32.totalorder %s16, 1
    %p55 = por %p53, %p54
    %p56 = scmp.ne.s32.totalorder %s47, %s48
    %p57 = scmp.eq.s32.totalorder %s16, 0
    %p58 = por %p56, %p57
    %p59 = scmp.ne.s32.totalorder %s47, %s48
    %p60 = scmp.eq.s32.totalorder %s17, 1
    %p61 = por %p59, %p60
    %p63 = scmp.ne.s32.totalorder %s48, %s62
    %p64 = scmp.eq.s32.totalorder %s17, 0
    %p65 = por %p63, %p64
    %s67 = sadd.s32 %s66, 1
    %p70 = scmp.eq.s32.totalorder %s11, 1
    %p71 = scmp.ne.s32.totalorder %s66, %s68
    %p72 = scmp.eq.s32.totalorder %s11, 0
    %p73 = por %p71, %p72
    %p74 = scmp.ne.s32.totalorder %s66, %s68
    %p75 = scmp.eq.s32.totalorder %s16, 1
    %p76 = por %p74, %p75
    %p77 = scmp.ne.s32.totalorder %s68, %s69
    %p78 = scmp.eq.s32.totalorder %s16, 0
    %p79 = por %p77, %p78
    %p80 = scmp.ne.s32.totalorder %s68, %s69
    %p81 = scmp.eq.s32.totalorder %s17, 1
    %p82 = por %p80, %p81
    %p84 = scmp.ne.s32.totalorder %s69, %s83
    %p85 = scmp.eq.s32.totalorder %s17, 0
    %p86 = por %p84, %p85
    %s88 = sadd.s32 %s87, 1
    %p91 = scmp.eq.s32.totalorder %s11, 1
    %p92 = scmp.ne.s32.totalorder %s87, %s89
    %p93 = scmp.eq.s32.totalorder %s11, 0
    %p94 = por %p92, %p93
    %p95 = scmp.ne.s32.totalorder %s87, %s89
    %p96 = scmp.eq.s32.totalorder %s16, 1
    %p97 = por %p95, %p96
    %p98 = scmp.ne.s32.totalorder %s89, %s90
    %p99 = scmp.eq.s32.totalorder %s16, 0
    %p100 = por %p98, %p99
    %p101 = scmp.ne.s32.totalorder %s89, %s90
    %p102 = scmp.eq.s32.totalorder %s17, 1
    %p103 = por %p101, %p102
    %p105 = scmp.ne.s32.totalorder %s90, %s104
    %p106 = scmp.eq.s32.totalorder %s17, 0
    %p107 = por %p105, %p106
    %s109 = sadd.s32 %s108, 1
    %p112 = scmp.eq.s32.totalorder %s11, 1
    %p113 = scmp.ne.s32.totalorder %s108, %s110
    %p114 = scmp.eq.s32.totalorder %s11, 0
    %p115 = por %p113, %p114
    %p116 = scmp.ne.s32.totalorder %s108, %s110
    %p117 = scmp.eq.s32.totalorder %s16, 1
    %p118 = por %p116, %p117
    %p119 = scmp.ne.s32.totalorder %s110, %s111
    %p120 = scmp.eq.s32.totalorder %s16, 0
    %p121 = por %p119, %p120
    %p122 = scmp.ne.s32.totalorder %s110, %s111
    %p123 = scmp.eq.s32.totalorder %s17, 1
    %p124 = por %p122, %p123
    %p126 = scmp.ne.s32.totalorder %s111, %s125
    %p127 = scmp.eq.s32.totalorder %s17, 0
    %p128 = por %p126, %p127
    %s129 = ssub.s32 %s11, %s18
    %p130 = scmp.eq.s32.totalorder %s129, 0
    %s132 = sadd.s32 %s131, 1
    %s133 = scalar_select %p130, %s131, %s132
    %p136 = pneg %p130
    %p137 = scmp.eq.s32.totalorder %s11, 1
    %p138 = por %p136, %p137
    %p139 = scmp.ne.s32.totalorder %s131, %s134
    %p140 = scmp.eq.s32.totalorder %s11, 0
    %p141 = por %p139, %p140
    %p142 = scmp.ne.s32.totalorder %s131, %s134
    %p143 = scmp.eq.s32.totalorder %s16, 1
    %p144 = por %p142, %p143
    %p145 = scmp.ne.s32.totalorder %s134, %s135
    %p146 = scmp.eq.s32.totalorder %s16, 0
    %p147 = por %p145, %p146
    %p148 = scmp.ne.s32.totalorder %s134, %s135
    %p149 = scmp.eq.s32.totalorder %s17, 1
    %p150 = por %p148, %p149
    %p152 = scmp.ne.s32.totalorder %s135, %s151
    %p153 = scmp.eq.s32.totalorder %s17, 0
    %p154 = por %p152, %p153
    %p155 = scmp.le.s32.totalorder 1, %s11
    %p156 = scmp.lt.s32.totalorder %s11, 3
    %p157 = pnand %p155, %p156
    %p158 = pneg %p157
    // Predicated region
    $region9: #{decoder_forward.1} parent=5 // pred_check
      _
    $region10: #{decoder_forward.1} parent=5 // pred_check_branch
      %160 = sbr.rel (%p157) target = $region12
    $region11: #{decoder_forward.1} parent=5 // pred_region
      %s161 = ssub.s32 %s11, 1
      // Predicated region
      $region13: #{decoder_forward.1} parent=11 // pred_check
        %p162 = pneg %p58
      $region14: #{decoder_forward.1} parent=11 // pred_check_branch
        %164 = sbr.rel (%p162) target = $region16
      $region15: #{decoder_forward.1} parent=11 // pred_region
        _
      $region16: #{decoder_forward.1} parent=11 // pred_fallthru
        _
      // Predicated region
      $region17: #{decoder_forward.1} parent=11 // pred_check
        %p165 = pneg %p79
      $region18: #{decoder_forward.1} parent=11 // pred_check_branch
        %167 = sbr.rel (%p165) target = $region20
      $region19: #{decoder_forward.1} parent=11 // pred_region
        _
      $region20: #{decoder_forward.1} parent=11 // pred_fallthru
        _
      // Predicated region
      $region21: #{decoder_forward.1} parent=11 // pred_check
        %p168 = pneg %p100
      $region22: #{decoder_forward.1} parent=11 // pred_check_branch
        %170 = sbr.rel (%p168) target = $region24
      $region23: #{decoder_forward.1} parent=11 // pred_region
        _
      $region24: #{decoder_forward.1} parent=11 // pred_fallthru
        _
      // Predicated region
      $region25: #{decoder_forward.1} parent=11 // pred_check
        %p171 = pneg %p121
      $region26: #{decoder_forward.1} parent=11 // pred_check_branch
        %173 = sbr.rel (%p171) target = $region28
      $region27: #{decoder_forward.1} parent=11 // pred_region
        _
      $region28: #{decoder_forward.1} parent=11 // pred_fallthru
        _
    $region12: #{decoder_forward.1} parent=5 // pred_fallthru
      _
    %p174 = scmp.lt.s32.totalorder %s11, 2
    // Predicated region
    $region29: #{decoder_forward.1} parent=5 // pred_check
      %p175 = pneg %p174
    $region30: #{decoder_forward.1} parent=5 // pred_check_branch
      %177 = sbr.rel (%p175) target = $region32
    $region31: #{decoder_forward.1} parent=5 // pred_region
      // Predicated region
      $region33: #{decoder_forward.1} parent=31 // pred_check
        %p178 = pneg %p31
      $region34: #{decoder_forward.1} parent=31 // pred_check_branch
        %180 = sbr.rel (%p178) target = $region36
      $region35: #{decoder_forward.1} parent=31 // pred_region
        %s181 = smul.u32 16, %s11
        %p182 = scmp.lt.s32.totalorder %s181, 31
        %s183 = scalar_select %p182, %s181, 31
        %s184 = smul.addr %s183, 8
        %s185 = scalar_lea.vmem %s0, %s184
        %s186 = smul.u32 16, %s11
      $region36: #{decoder_forward.1} parent=31 // pred_fallthru
        _
    $region32: #{decoder_forward.1} parent=5 // pred_fallthru
      _
    %p187 = scmp.le.s32.totalorder 1, %s11
    %p188 = scmp.lt.s32.totalorder %s11, 3
    %p189 = pnand %p187, %p188
    %p190 = pneg %p189
    // Predicated region
    $region37: #{decoder_forward.1} parent=5 // pred_check
      _
    $region38: #{decoder_forward.1} parent=5 // pred_check_branch
      %192 = sbr.rel (%p189) target = $region40
    $region39: #{decoder_forward.1} parent=5 // pred_region
      %s193 = ssub.s32 %s11, 1
      %s194 = smul.u32 16, %s16
      %p195 = scmp.lt.s32.totalorder %s194, 31
      %s196 = scalar_select %p195, %s194, 31
      %s197 = smul.addr %s196, 8
      %s198 = scalar_lea.vmem %s0, %s197
      %p199 = pneg %p37
      %p200 = pneg %p34
      %p201 = pneg %p58
      %p202 = pneg %p55
      %p203 = pneg %p79
      %p204 = pneg %p76
      %p205 = pneg %p100
      %p206 = pneg %p97
      %p207 = pneg %p121
      %p208 = pneg %p118
      %p209 = pneg %p147
      %p210 = pneg %p144
      %s211 = smul.u32 16, %s16
      %p212 = scmp.lt.s32.totalorder %s211, 31
      %s213 = scalar_select %p212, %s211, 31
      %s214 = smul.addr %s213, 7
      %s215 = smul.addr %s214, 8
      %s216 = scalar_lea.vmem %s5, %s215
      %s217 = smul.u32 16, %s16
      %p218 = scmp.lt.s32.totalorder %s217, 31
      %s219 = scalar_select %p218, %s217, 31
      %s220 = smul.addr %s219, 8
      %s221 = scalar_lea.vmem %s0, %s220
      %s222 = smul.u32 16, %s16
      %s223 = smul.u32 16, %s16
      %p224 = scmp.lt.s32.totalorder %s223, 31
      %s225 = scalar_select %p224, %s223, 31
      %s226 = smul.addr %s225, 7
      %s227 = smul.addr %s226, 8
      %s228 = scalar_lea.vmem %s5, %s227
      %s229 = smul.u32 16, %s16
      %v231 = vld [vmem:[%s221] sm:$0xff]
      %v232 = vld [vmem:[%s221 + $0x8] sm:$0xff]
      %v233 = vld [vmem:[%s221 + $0x10] sm:$0xff]
      %v234 = vld [vmem:[%s221 + $0x18] sm:$0xff]
      %v235 = vld [vmem:[%s221 + $0x20] sm:$0xff]
      %v236 = vld [vmem:[%s221 + $0x28] sm:$0xff]
      %v237 = vld [vmem:[%s221 + $0x30] sm:$0xff]
      %v238 = vld [vmem:[%s221 + $0x38] sm:$0xff]
      %v239 = vld [vmem:[%s221 + $0x40] sm:$0xff]
      %v240 = vld [vmem:[%s221 + $0x48] sm:$0xff]
      %v241 = vld [vmem:[%s221 + $0x50] sm:$0xff]
      %v242 = vld [vmem:[%s221 + $0x58] sm:$0xff]
      %v243 = vld [vmem:[%s221 + $0x60] sm:$0xff]
      %v244 = vld [vmem:[%s221 + $0x68] sm:$0xff]
      %v245 = vld [vmem:[%s221 + $0x70] sm:$0xff]
      %v246 = vld [vmem:[%s221 + $0x78] sm:$0xff]
      %v247 = vpack.c.bf16 %v232, %v231
      %v248 = vpack.c.bf16 %v234, %v233
      %v249 = vpack.c.bf16 %v236, %v235
      %v250 = vpack.c.bf16 %v238, %v237
      %v251 = vpack.c.bf16 %v240, %v239
      %v252 = vpack.c.bf16 %v242, %v241
      %v253 = vpack.c.bf16 %v244, %v243
      %v254 = vpack.c.bf16 %v246, %v245
      %v255 = vld [vmem:[%s1] sm:$0xff]
      %v256 = vld [vmem:[%s1 + $0x8] sm:$0xff]
      %v257 = vld [vmem:[%s1 + $0x10] sm:$0xff]
      %v258 = vld [vmem:[%s1 + $0x18] sm:$0xff]
      %v259 = vld [vmem:[%s1 + $0x20] sm:$0xff]
      %v260 = vld [vmem:[%s1 + $0x28] sm:$0xff]
      %v261 = vld [vmem:[%s1 + $0x30] sm:$0xff]
      %v262 = vld [vmem:[%s1 + $0x38] sm:$0xff]
      %v263 = vld [vmem:[%s2] sm:$0xf]
      %v265 = vlaneseq
      %v266 = vshrl.u32 %v265, 7
      %v267 = vsub.s32 0, %v266
      %v268 = vrot.slane %v263, %v267
      %v269 = vlaneseq
      %v270 = vshrl.u32 %v269, 7
      %v271 = vsub.s32 1, %v270
      %v272 = vrot.slane %v263, %v271
      %v273 = vlaneseq
      %v274 = vshrl.u32 %v273, 7
      %v275 = vsub.s32 2, %v274
      %v276 = vrot.slane %v263, %v275
      %v277 = vlaneseq
      %v278 = vshrl.u32 %v277, 7
      %v279 = vsub.s32 3, %v278
      %v280 = vrot.slane %v263, %v279
      %v293 = vunpack.c.l.b16 %v255
      %v294 = vunpack.c.h.b16 %v255
      %v295 = vunpack.c.l.b16 %v256
      %v296 = vunpack.c.h.b16 %v256
      %v297 = vunpack.c.l.b16 %v257
      %v298 = vunpack.c.h.b16 %v257
      %v299 = vunpack.c.l.b16 %v258
      %v300 = vunpack.c.h.b16 %v258
      %v301 = vunpack.c.l.b16 %v259
      %v302 = vunpack.c.h.b16 %v259
      %v303 = vunpack.c.l.b16 %v260
      %v304 = vunpack.c.h.b16 %v260
      %v305 = vunpack.c.l.b16 %v261
      %v306 = vunpack.c.h.b16 %v261
      %v307 = vunpack.c.l.b16 %v262
      %v308 = vunpack.c.h.b16 %v262
      %v309 = vpack.c.b16 %v297, %v293
      %v310 = vpack.c.b16 %v298, %v294
      %v311 = vpack.c.b16 %v299, %v295
      %v312 = vpack.c.b16 %v300, %v296
      %v313 = vpack.c.b16 %v305, %v301
      %v314 = vpack.c.b16 %v306, %v302
      %v315 = vpack.c.b16 %v307, %v303
      %v316 = vpack.c.b16 %v308, %v304
      %vm325 = vcmask 261120
      %v327 = vsel %vm325, %v247, 0
      %v330 = vsel %vm325, %v248, 0
      %v333 = vsel %vm325, %v249, 0
      %v336 = vsel %vm325, %v250, 0
      %v339 = vsel %vm325, %v251, 0
      %v342 = vsel %vm325, %v252, 0
      %v345 = vsel %vm325, %v253, 0
      %v348 = vsel %vm325, %v254, 0
      %350 = vmatprep.subr.bf16.mxu0 %v310
      %351 = vmatpush1.bf16.msra.mxu0 %v309
      %352 = vmatprep.subr.bf16.mxu0 %v314
      %353 = vmatpush1.bf16.msra.mxu0 %v313
      %354 = vmatprep.subr.bf16.mxu0 0
      %355 = vmatpush1.bf16.msra.mxu0 0
      %356 = vmatprep.subr.bf16.mxu0 0
      %357 = vmatpush1.bf16.msra.mxu0 0
      %358 = vmatprep.subr.bf16.mxu0 0
      %359 = vmatpush1.bf16.msra.mxu0 0
      %360 = vmatprep.subr.bf16.mxu0 0
      %361 = vmatpush1.bf16.msra.mxu0 0
      %362 = vmatprep.subr.bf16.mxu0 0
      %363 = vmatpush1.bf16.msra.mxu0 0
      %364 = vmatprep.subr.bf16.mxu0 0
      %365 = vmatpush1.bf16.msra.mxu0 0
      %366 = vmatprep.subr.bf16.mxu0 0
      %367 = vmatpush1.bf16.msra.mxu0 0
      %368 = vmatprep.subr.bf16.mxu0 0
      %369 = vmatpush1.bf16.msra.mxu0 0
      %370 = vmatprep.subr.bf16.mxu0 0
      %371 = vmatpush1.bf16.msra.mxu0 0
      %372 = vmatprep.subr.bf16.mxu0 0
      %373 = vmatpush1.bf16.msra.mxu0 0
      %374 = vmatprep.subr.bf16.mxu0 0
      %375 = vmatpush1.bf16.msra.mxu0 0
      %376 = vmatprep.subr.bf16.mxu0 0
      %377 = vmatpush1.bf16.msra.mxu0 0
      %378 = vmatprep.subr.bf16.mxu0 0
      %379 = vmatpush1.bf16.msra.mxu0 0
      %380 = vmatprep.subr.bf16.mxu0 0
      %381 = vmatpush1.bf16.msra.mxu0 0
      %382 = vmatprep.mubr.bf16.mxu0 0
      %383 = vmatmul.mubr.bf16.gmra.mrb[0].mxu0 %v327
      %v384 = vpop.f32.mrb[0].mxu0
      %v385 = vadd.f32 %v268, %v384
      %v386 = vpop.f32.mrb[0].mxu0
      %v387 = vadd.f32 %v272, %v386
      %v388 = vpop.f32.mrb[0].mxu0
      %v389 = vadd.f32 %v268, %v388
      %v390 = vpop.f32.mrb[0].mxu0
      %v391 = vadd.f32 %v272, %v390
      %392 = vmatprep.mubr.bf16.mxu0 0
      %393 = vmatmul.mubr.bf16.gmra.mrb[0].mxu0 %v330
      %v394 = vpop.f32.mrb[0].mxu0
      %v395 = vadd.f32 %v268, %v394
      %v396 = vpop.f32.mrb[0].mxu0
      %v397 = vadd.f32 %v272, %v396
      %v398 = vpop.f32.mrb[0].mxu0
      %v399 = vadd.f32 %v268, %v398
      %v400 = vpop.f32.mrb[0].mxu0
      %v401 = vadd.f32 %v272, %v400
      %402 = vmatprep.mubr.bf16.mxu0 0
      %403 = vmatmul.mubr.bf16.gmra.mrb[0].mxu0 %v333
      %v404 = vpop.f32.mrb[0].mxu0
      %v405 = vadd.f32 %v268, %v404
      %v406 = vpop.f32.mrb[0].mxu0
      %v407 = vadd.f32 %v272, %v406
      %v408 = vpop.f32.mrb[0].mxu0
      %v409 = vadd.f32 %v268, %v408
      %v410 = vpop.f32.mrb[0].mxu0
      %v411 = vadd.f32 %v272, %v410
      %412 = vmatprep.mubr.bf16.mxu0 0
      %413 = vmatmul.mubr.bf16.gmra.mrb[0].mxu0 %v336
      %v414 = vpop.f32.mrb[0].mxu0
      %v415 = vadd.f32 %v268, %v414
      %v416 = vpop.f32.mrb[0].mxu0
      %v417 = vadd.f32 %v272, %v416
      %v418 = vpop.f32.mrb[0].mxu0
      %v419 = vadd.f32 %v268, %v418
      %v420 = vpop.f32.mrb[0].mxu0
      %v421 = vadd.f32 %v272, %v420
      %422 = vmatprep.mubr.bf16.mxu0 0
      %423 = vmatmul.mubr.bf16.gmra.mrb[0].mxu0 %v339
      %v424 = vpop.f32.mrb[0].mxu0
      %v425 = vadd.f32 %v268, %v424
      %v426 = vpop.f32.mrb[0].mxu0
      %v427 = vadd.f32 %v272, %v426
      %v428 = vpop.f32.mrb[0].mxu0
      %v429 = vadd.f32 %v268, %v428
      %v430 = vpop.f32.mrb[0].mxu0
      %v431 = vadd.f32 %v272, %v430
      %432 = vmatprep.mubr.bf16.mxu0 0
      %433 = vmatmul.mubr.bf16.gmra.mrb[0].mxu0 %v342
      %v434 = vpop.f32.mrb[0].mxu0
      %v435 = vadd.f32 %v268, %v434
      %v436 = vpop.f32.mrb[0].mxu0
      %v437 = vadd.f32 %v272, %v436
      %v438 = vpop.f32.mrb[0].mxu0
      %v439 = vadd.f32 %v268, %v438
      %v440 = vpop.f32.mrb[0].mxu0
      %v441 = vadd.f32 %v272, %v440
      %442 = vmatprep.mubr.bf16.mxu0 0
      %443 = vmatmul.mubr.bf16.gmra.mrb[0].mxu0 %v345
      %v444 = vpop.f32.mrb[0].mxu0
      %v445 = vadd.f32 %v268, %v444
      %v446 = vpop.f32.mrb[0].mxu0
      %v447 = vadd.f32 %v272, %v446
      %v448 = vpop.f32.mrb[0].mxu0
      %v449 = vadd.f32 %v268, %v448
      %v450 = vpop.f32.mrb[0].mxu0
      %v451 = vadd.f32 %v272, %v450
      %452 = vmatprep.mubr.bf16.mxu0 0
      %453 = vmatmul.mubr.bf16.gmra.mrb[0].mxu0 %v348
      %v454 = vpop.f32.mrb[0].mxu0
      %v455 = vadd.f32 %v268, %v454
      %v456 = vpop.f32.mrb[0].mxu0
      %v457 = vadd.f32 %v272, %v456
      %v458 = vpop.f32.mrb[0].mxu0
      %v459 = vadd.f32 %v268, %v458
      %v460 = vpop.f32.mrb[0].mxu0
      %v461 = vadd.f32 %v272, %v460
      %462 = vdwg.mxu0
      %463 = vmatprep.subr.bf16.mxu0 %v312
      %464 = vmatpush1.bf16.msra.mxu0 %v311
      %465 = vmatprep.subr.bf16.mxu0 %v316
      %466 = vmatpush1.bf16.msra.mxu0 %v315
      %467 = vmatprep.subr.bf16.mxu0 0
      %468 = vmatpush1.bf16.msra.mxu0 0
      %469 = vmatprep.subr.bf16.mxu0 0
      %470 = vmatpush1.bf16.msra.mxu0 0
      %471 = vmatprep.subr.bf16.mxu0 0
      %472 = vmatpush1.bf16.msra.mxu0 0
      %473 = vmatprep.subr.bf16.mxu0 0
      %474 = vmatpush1.bf16.msra.mxu0 0
      %475 = vmatprep.subr.bf16.mxu0 0
      %476 = vmatpush1.bf16.msra.mxu0 0
      %477 = vmatprep.subr.bf16.mxu0 0
      %478 = vmatpush1.bf16.msra.mxu0 0
      %479 = vmatprep.subr.bf16.mxu0 0
      %480 = vmatpush1.bf16.msra.mxu0 0
      %481 = vmatprep.subr.bf16.mxu0 0
      %482 = vmatpush1.bf16.msra.mxu0 0
      %483 = vmatprep.subr.bf16.mxu0 0
      %484 = vmatpush1.bf16.msra.mxu0 0
      %485 = vmatprep.subr.bf16.mxu0 0
      %486 = vmatpush1.bf16.msra.mxu0 0
      %487 = vmatprep.subr.bf16.mxu0 0
      %488 = vmatpush1.bf16.msra.mxu0 0
      %489 = vmatprep.subr.bf16.mxu0 0
      %490 = vmatpush1.bf16.msra.mxu0 0
      %491 = vmatprep.subr.bf16.mxu0 0
      %492 = vmatpush1.bf16.msra.mxu0 0
      %493 = vmatprep.subr.bf16.mxu0 0
      %494 = vmatpush1.bf16.msra.mxu0 0
      %495 = vmatprep.mubr.bf16.mxu0 0
      %496 = vmatmul.mubr.bf16.gmra.mrb[0].mxu0 %v327
      %v497 = vpop.f32.mrb[0].mxu0
      %v498 = vadd.f32 %v276, %v497
      %v499 = vpop.f32.mrb[0].mxu0
      %v500 = vadd.f32 %v280, %v499
      %v501 = vpop.f32.mrb[0].mxu0
      %v502 = vadd.f32 %v276, %v501
      %v503 = vpop.f32.mrb[0].mxu0
      %v504 = vadd.f32 %v280, %v503
      %505 = vmatprep.mubr.bf16.mxu0 0
      %506 = vmatmul.mubr.bf16.gmra.mrb[0].mxu0 %v330
      %v507 = vpop.f32.mrb[0].mxu0
      %v508 = vadd.f32 %v276, %v507
      %v509 = vpop.f32.mrb[0].mxu0
      %v510 = vadd.f32 %v280, %v509
      %v511 = vpop.f32.mrb[0].mxu0
      %v512 = vadd.f32 %v276, %v511
      %v513 = vpop.f32.mrb[0].mxu0
      %v514 = vadd.f32 %v280, %v513
      %515 = vmatprep.mubr.bf16.mxu0 0
      %516 = vmatmul.mubr.bf16.gmra.mrb[0].mxu0 %v333
      %v517 = vpop.f32.mrb[0].mxu0
      %v518 = vadd.f32 %v276, %v517
      %v519 = vpop.f32.mrb[0].mxu0
      %v520 = vadd.f32 %v280, %v519
      %v521 = vpop.f32.mrb[0].mxu0
      %v522 = vadd.f32 %v276, %v521
      %v523 = vpop.f32.mrb[0].mxu0
      %v524 = vadd.f32 %v280, %v523
      %525 = vmatprep.mubr.bf16.mxu0 0
      %526 = vmatmul.mubr.bf16.gmra.mrb[0].mxu0 %v336
      %v527 = vpop.f32.mrb[0].mxu0
      %v528 = vadd.f32 %v276, %v527
      %v529 = vpop.f32.mrb[0].mxu0
      %v530 = vadd.f32 %v280, %v529
      %v531 = vpop.f32.mrb[0].mxu0
      %v532 = vadd.f32 %v276, %v531
      %v533 = vpop.f32.mrb[0].mxu0
      %v534 = vadd.f32 %v280, %v533
      %535 = vmatprep.mubr.bf16.mxu0 0
      %536 = vmatmul.mubr.bf16.gmra.mrb[0].mxu0 %v339
      %v537 = vpop.f32.mrb[0].mxu0
      %v538 = vadd.f32 %v276, %v537
      %v539 = vpop.f32.mrb[0].mxu0
      %v540 = vadd.f32 %v280, %v539
      %v541 = vpop.f32.mrb[0].mxu0
      %v542 = vadd.f32 %v276, %v541
      %v543 = vpop.f32.mrb[0].mxu0
      %v544 = vadd.f32 %v280, %v543
      %545 = vmatprep.mubr.bf16.mxu0 0
      %546 = vmatmul.mubr.bf16.gmra.mrb[0].mxu0 %v342
      %v547 = vpop.f32.mrb[0].mxu0
      %v548 = vadd.f32 %v276, %v547
      %v549 = vpop.f32.mrb[0].mxu0
      %v550 = vadd.f32 %v280, %v549
      %v551 = vpop.f32.mrb[0].mxu0
      %v552 = vadd.f32 %v276, %v551
      %v553 = vpop.f32.mrb[0].mxu0
      %v554 = vadd.f32 %v280, %v553
      %555 = vmatprep.mubr.bf16.mxu0 0
      %556 = vmatmul.mubr.bf16.gmra.mrb[0].mxu0 %v345
      %v557 = vpop.f32.mrb[0].mxu0
      %v558 = vadd.f32 %v276, %v557
      %v559 = vpop.f32.mrb[0].mxu0
      %v560 = vadd.f32 %v280, %v559
      %v561 = vpop.f32.mrb[0].mxu0
      %v562 = vadd.f32 %v276, %v561
      %v563 = vpop.f32.mrb[0].mxu0
      %v564 = vadd.f32 %v280, %v563
      %565 = vmatprep.mubr.bf16.mxu0 0
      %566 = vmatmul.mubr.bf16.gmra.mrb[0].mxu0 %v348
      %v567 = vpop.f32.mrb[0].mxu0
      %v568 = vadd.f32 %v276, %v567
      %v569 = vpop.f32.mrb[0].mxu0
      %v570 = vadd.f32 %v280, %v569
      %v571 = vpop.f32.mrb[0].mxu0
      %v572 = vadd.f32 %v276, %v571
      %v573 = vpop.f32.mrb[0].mxu0
      %v574 = vadd.f32 %v280, %v573
      %575 = vdwg.mxu0
      %v576 = vtanh.pop %v385
      %v577 = vtanh.pop %v387
      %v578 = vtanh.pop %v498
      %v579 = vtanh.pop %v500
      %v580 = vtanh.pop %v389
      %v581 = vtanh.pop %v391
      %v582 = vtanh.pop %v502
      %v583 = vtanh.pop %v504
      %v584 = vtanh.pop %v395
      %v585 = vtanh.pop %v397
      %v586 = vtanh.pop %v508
      %v587 = vtanh.pop %v510
      %v588 = vtanh.pop %v399
      %v589 = vtanh.pop %v401
      %v590 = vtanh.pop %v512
      %v591 = vtanh.pop %v514
      %v592 = vtanh.pop %v405
      %v593 = vtanh.pop %v407
      %v594 = vtanh.pop %v518
      %v595 = vtanh.pop %v520
      %v596 = vtanh.pop %v409
      %v597 = vtanh.pop %v411
      %v598 = vtanh.pop %v522
      %v599 = vtanh.pop %v524
      %v600 = vtanh.pop %v415
      %v601 = vtanh.pop %v417
      %v602 = vtanh.pop %v528
      %v603 = vtanh.pop %v530
      %v604 = vtanh.pop %v419
      %v605 = vtanh.pop %v421
      %v606 = vtanh.pop %v532
      %v607 = vtanh.pop %v534
      %v608 = vtanh.pop %v425
      %v609 = vtanh.pop %v427
      %v610 = vtanh.pop %v538
      %v611 = vtanh.pop %v540
      %v612 = vtanh.pop %v429
      %v613 = vtanh.pop %v431
      %v614 = vtanh.pop %v542
      %v615 = vtanh.pop %v544
      %v616 = vtanh.pop %v435
      %v617 = vtanh.pop %v437
      %v618 = vtanh.pop %v548
      %v619 = vtanh.pop %v550
      %v620 = vtanh.pop %v439
      %v621 = vtanh.pop %v441
      %v622 = vtanh.pop %v552
      %v623 = vtanh.pop %v554
      %v624 = vtanh.pop %v445
      %v625 = vtanh.pop %v447
      %v626 = vtanh.pop %v558
      %v627 = vtanh.pop %v560
      %v628 = vtanh.pop %v449
      %v629 = vtanh.pop %v451
      %v630 = vtanh.pop %v562
      %v631 = vtanh.pop %v564
      %v632 = vtanh.pop %v455
      %v633 = vtanh.pop %v457
      %v634 = vtanh.pop %v568
      %v635 = vtanh.pop %v570
      %v636 = vtanh.pop %v459
      %v637 = vtanh.pop %v461
      %v638 = vtanh.pop %v572
      %v639 = vtanh.pop %v574
      %v640 = vpack.c.bf16 %v580, %v576
      %v641 = vpack.c.bf16 %v581, %v577
      %v642 = vpack.c.bf16 %v582, %v578
      %v643 = vpack.c.bf16 %v583, %v579
      %v644 = vpack.c.bf16 %v588, %v584
      %v645 = vpack.c.bf16 %v589, %v585
      %v646 = vpack.c.bf16 %v590, %v586
      %v647 = vpack.c.bf16 %v591, %v587
      %v648 = vpack.c.bf16 %v596, %v592
      %v649 = vpack.c.bf16 %v597, %v593
      %v650 = vpack.c.bf16 %v598, %v594
      %v651 = vpack.c.bf16 %v599, %v595
      %v652 = vpack.c.bf16 %v604, %v600
      %v653 = vpack.c.bf16 %v605, %v601
      %v654 = vpack.c.bf16 %v606, %v602
      %v655 = vpack.c.bf16 %v607, %v603
      %v656 = vpack.c.bf16 %v612, %v608
      %v657 = vpack.c.bf16 %v613, %v609
      %v658 = vpack.c.bf16 %v614, %v610
      %v659 = vpack.c.bf16 %v615, %v611
      %v660 = vpack.c.bf16 %v620, %v616
      %v661 = vpack.c.bf16 %v621, %v617
      %v662 = vpack.c.bf16 %v622, %v618
      %v663 = vpack.c.bf16 %v623, %v619
      %v664 = vpack.c.bf16 %v628, %v624
      %v665 = vpack.c.bf16 %v629, %v625
      %v666 = vpack.c.bf16 %v630, %v626
      %v667 = vpack.c.bf16 %v631, %v627
      %v668 = vpack.c.bf16 %v636, %v632
      %v669 = vpack.c.bf16 %v637, %v633
      %v670 = vpack.c.bf16 %v638, %v634
      %v671 = vpack.c.bf16 %v639, %v635
      %v672 = vld [vmem:[%s3] sm:$0xff]
      %v673 = vld [vmem:[%s3 + $0x8] sm:$0xff]
      %v674 = vld [vmem:[%s3 + $0x10] sm:$0xff]
      %v675 = vld [vmem:[%s3 + $0x18] sm:$0xf]
      %v676 = vld [vmem:[%s3 + $0x1c] sm:$0xff]
      %v677 = vld [vmem:[%s3 + $0x24] sm:$0xff]
      %v678 = vld [vmem:[%s3 + $0x2c] sm:$0xff]
      %v679 = vld [vmem:[%s3 + $0x34] sm:$0xf]
      %v680 = vld [vmem:[%s3 + $0x38] sm:$0xff]
      %v681 = vld [vmem:[%s3 + $0x40] sm:$0xff]
      %v682 = vld [vmem:[%s3 + $0x48] sm:$0xff]
      %v683 = vld [vmem:[%s3 + $0x50] sm:$0xf]
      %v684 = vld [vmem:[%s3 + $0x54] sm:$0xff]
      %v685 = vld [vmem:[%s3 + $0x5c] sm:$0xff]
      %v686 = vld [vmem:[%s3 + $0x64] sm:$0xff]
      %v687 = vld [vmem:[%s3 + $0x6c] sm:$0xf]
      %v688 = vld [vmem:[%s3 + $0x70] sm:$0xff]
      %v689 = vld [vmem:[%s3 + $0x78] sm:$0xff]
      %v690 = vld [vmem:[%s3 + $0x80] sm:$0xff]
      %v691 = vld [vmem:[%s3 + $0x88] sm:$0xf]
      %v692 = vld [vmem:[%s3 + $0x8c] sm:$0xff]
      %v693 = vld [vmem:[%s3 + $0x94] sm:$0xff]
      %v694 = vld [vmem:[%s3 + $0x9c] sm:$0xff]
      %v695 = vld [vmem:[%s3 + $0xa4] sm:$0xf]
      %v696 = vld [vmem:[%s3 + $0xa8] sm:$0xff]
      %v697 = vld [vmem:[%s3 + $0xb0] sm:$0xff]
      %v698 = vld [vmem:[%s3 + $0xb8] sm:$0xff]
      %v699 = vld [vmem:[%s3 + $0xc0] sm:$0xf]
      %v700 = vld [vmem:[%s3 + $0xc4] sm:$0xff]
      %v701 = vld [vmem:[%s3 + $0xcc] sm:$0xff]
      %v702 = vld [vmem:[%s3 + $0xd4] sm:$0xff]
      %v703 = vld [vmem:[%s3 + $0xdc] sm:$0xf]
      %v704 = vld [vmem:[%s3 + $0xe0] sm:$0xff]
      %v705 = vld [vmem:[%s3 + $0xe8] sm:$0xff]
      %v706 = vld [vmem:[%s3 + $0xf0] sm:$0xff]
      %v707 = vld [vmem:[%s3 + $0xf8] sm:$0xf]
      %v708 = vld [vmem:[%s3 + $0xfc] sm:$0xff]
      %v709 = vld [vmem:[%s3 + $0x104] sm:$0xff]
      %v710 = vld [vmem:[%s3 + $0x10c] sm:$0xff]
      %v711 = vld [vmem:[%s3 + $0x114] sm:$0xf]
      %v712 = vld [vmem:[%s3 + $0x118] sm:$0xff]
      %v713 = vld [vmem:[%s3 + $0x120] sm:$0xff]
      %v714 = vld [vmem:[%s3 + $0x128] sm:$0xff]
      %v715 = vld [vmem:[%s3 + $0x130] sm:$0xf]
      %v716 = vld [vmem:[%s3 + $0x134] sm:$0xff]
      %v717 = vld [vmem:[%s3 + $0x13c] sm:$0xff]
      %v718 = vld [vmem:[%s3 + $0x144] sm:$0xff]
      %v719 = vld [vmem:[%s3 + $0x14c] sm:$0xf]
      %v720 = vld [vmem:[%s3 + $0x150] sm:$0xff]
      %v721 = vld [vmem:[%s3 + $0x158] sm:$0xff]
      %v722 = vld [vmem:[%s3 + $0x160] sm:$0xff]
      %v723 = vld [vmem:[%s3 + $0x168] sm:$0xf]
      %v724 = vld [vmem:[%s3 + $0x16c] sm:$0xff]
      %v725 = vld [vmem:[%s3 + $0x174] sm:$0xff]
      %v726 = vld [vmem:[%s3 + $0x17c] sm:$0xff]
      %v727 = vld [vmem:[%s3 + $0x184] sm:$0xf]
      %v728 = vld [vmem:[%s3 + $0x188] sm:$0xff]
      %v729 = vld [vmem:[%s3 + $0x190] sm:$0xff]
      %v730 = vld [vmem:[%s3 + $0x198] sm:$0xff]
      %v731 = vld [vmem:[%s3 + $0x1a0] sm:$0xf]
      %v732 = vld [vmem:[%s3 + $0x1a4] sm:$0xff]
      %v733 = vld [vmem:[%s3 + $0x1ac] sm:$0xff]
      %v734 = vld [vmem:[%s3 + $0x1b4] sm:$0xff]
      %v735 = vld [vmem:[%s3 + $0x1bc] sm:$0xf]
      %v736 = vld [vmem:[%s3 + $0x1c0] sm:$0xff]
      %v737 = vld [vmem:[%s3 + $0x1c8] sm:$0xff]
      %v738 = vld [vmem:[%s3 + $0x1d0] sm:$0xff]
      %v739 = vld [vmem:[%s3 + $0x1d8] sm:$0xf]
      %v740 = vld [vmem:[%s3 + $0x1dc] sm:$0xff]
      %v741 = vld [vmem:[%s3 + $0x1e4] sm:$0xff]
      %v742 = vld [vmem:[%s3 + $0x1ec] sm:$0xff]
      %v743 = vld [vmem:[%s3 + $0x1f4] sm:$0xf]
      %v744 = vld [vmem:[%s3 + $0x1f8] sm:$0xff]
      %v745 = vld [vmem:[%s3 + $0x200] sm:$0xff]
      %v746 = vld [vmem:[%s3 + $0x208] sm:$0xff]
      %v747 = vld [vmem:[%s3 + $0x210] sm:$0xf]
      %v748 = vld [vmem:[%s3 + $0x214] sm:$0xff]
      %v749 = vld [vmem:[%s3 + $0x21c] sm:$0xff]
      %v750 = vld [vmem:[%s3 + $0x224] sm:$0xff]
      %v751 = vld [vmem:[%s3 + $0x22c] sm:$0xf]
      %v752 = vld [vmem:[%s3 + $0x230] sm:$0xff]
      %v753 = vld [vmem:[%s3 + $0x238] sm:$0xff]
      %v754 = vld [vmem:[%s3 + $0x240] sm:$0xff]
      %v755 = vld [vmem:[%s3 + $0x248] sm:$0xf]
      %v756 = vld [vmem:[%s3 + $0x24c] sm:$0xff]
      %v757 = vld [vmem:[%s3 + $0x254] sm:$0xff]
      %v758 = vld [vmem:[%s3 + $0x25c] sm:$0xff]
      %v759 = vld [vmem:[%s3 + $0x264] sm:$0xf]
      %v760 = vld [vmem:[%s3 + $0x268] sm:$0xff]
      %v761 = vld [vmem:[%s3 + $0x270] sm:$0xff]
      %v762 = vld [vmem:[%s3 + $0x278] sm:$0xff]
      %v763 = vld [vmem:[%s3 + $0x280] sm:$0xf]
      %v764 = vld [vmem:[%s3 + $0x284] sm:$0xff]
      %v765 = vld [vmem:[%s3 + $0x28c] sm:$0xff]
      %v766 = vld [vmem:[%s3 + $0x294] sm:$0xff]
      %v767 = vld [vmem:[%s3 + $0x29c] sm:$0xf]
      %v768 = vld [vmem:[%s3 + $0x2a0] sm:$0xff]
      %v769 = vld [vmem:[%s3 + $0x2a8] sm:$0xff]
      %v770 = vld [vmem:[%s3 + $0x2b0] sm:$0xff]
      %v771 = vld [vmem:[%s3 + $0x2b8] sm:$0xf]
      %v772 = vld [vmem:[%s3 + $0x2bc] sm:$0xff]
      %v773 = vld [vmem:[%s3 + $0x2c4] sm:$0xff]
      %v774 = vld [vmem:[%s3 + $0x2cc] sm:$0xff]
      %v775 = vld [vmem:[%s3 + $0x2d4] sm:$0xf]
      %v776 = vld [vmem:[%s3 + $0x2d8] sm:$0xff]
      %v777 = vld [vmem:[%s3 + $0x2e0] sm:$0xff]
      %v778 = vld [vmem:[%s3 + $0x2e8] sm:$0xff]
      %v779 = vld [vmem:[%s3 + $0x2f0] sm:$0xf]
      %v780 = vld [vmem:[%s3 + $0x2f4] sm:$0xff]
      %v781 = vld [vmem:[%s3 + $0x2fc] sm:$0xff]
      %v782 = vld [vmem:[%s3 + $0x304] sm:$0xff]
      %v783 = vld [vmem:[%s3 + $0x30c] sm:$0xf]
      %v784 = vld [vmem:[%s3 + $0x310] sm:$0xff]
      %v785 = vld [vmem:[%s3 + $0x318] sm:$0xff]
      %v786 = vld [vmem:[%s3 + $0x320] sm:$0xff]
      %v787 = vld [vmem:[%s3 + $0x328] sm:$0xf]
      %v788 = vld [vmem:[%s3 + $0x32c] sm:$0xff]
      %v789 = vld [vmem:[%s3 + $0x334] sm:$0xff]
      %v790 = vld [vmem:[%s3 + $0x33c] sm:$0xff]
      %v791 = vld [vmem:[%s3 + $0x344] sm:$0xf]
      %v792 = vld [vmem:[%s3 + $0x348] sm:$0xff]
      %v793 = vld [vmem:[%s3 + $0x350] sm:$0xff]
      %v794 = vld [vmem:[%s3 + $0x358] sm:$0xff]
      %v795 = vld [vmem:[%s3 + $0x360] sm:$0xf]
      %v796 = vld [vmem:[%s3 + $0x364] sm:$0xff]
      %v797 = vld [vmem:[%s3 + $0x36c] sm:$0xff]
      %v798 = vld [vmem:[%s3 + $0x374] sm:$0xff]
      %v799 = vld [vmem:[%s3 + $0x37c] sm:$0xf]
      %v800 = vld [vmem:[%s3 + $0x380] sm:$0xff]
      %v801 = vld [vmem:[%s3 + $0x388] sm:$0xff]
      %v802 = vld [vmem:[%s3 + $0x390] sm:$0xff]
      %v803 = vld [vmem:[%s3 + $0x398] sm:$0xf]
      %v804 = vld [vmem:[%s3 + $0x39c] sm:$0xff]
      %v805 = vld [vmem:[%s3 + $0x3a4] sm:$0xff]
      %v806 = vld [vmem:[%s3 + $0x3ac] sm:$0xff]
      %v807 = vld [vmem:[%s3 + $0x3b4] sm:$0xf]
      %v808 = vld [vmem:[%s3 + $0x3b8] sm:$0xff]
      %v809 = vld [vmem:[%s3 + $0x3c0] sm:$0xff]
      %v810 = vld [vmem:[%s3 + $0x3c8] sm:$0xff]
      %v811 = vld [vmem:[%s3 + $0x3d0] sm:$0xf]
      %v812 = vld [vmem:[%s3 + $0x3d4] sm:$0xff]
      %v813 = vld [vmem:[%s3 + $0x3dc] sm:$0xff]
      %v814 = vld [vmem:[%s3 + $0x3e4] sm:$0xff]
      %v815 = vld [vmem:[%s3 + $0x3ec] sm:$0xf]
      %v816 = vld [vmem:[%s3 + $0x3f0] sm:$0xff]
      %v817 = vld [vmem:[%s3 + $0x3f8] sm:$0xff]
      %v818 = vld [vmem:[%s3 + $0x400] sm:$0xff]
      %v819 = vld [vmem:[%s3 + $0x408] sm:$0xf]
      %v820 = vld [vmem:[%s3 + $0x40c] sm:$0xff]
      %v821 = vld [vmem:[%s3 + $0x414] sm:$0xff]
      %v822 = vld [vmem:[%s3 + $0x41c] sm:$0xff]
      %v823 = vld [vmem:[%s3 + $0x424] sm:$0xf]
      %v824 = vld [vmem:[%s3 + $0x428] sm:$0xff]
      %v825 = vld [vmem:[%s3 + $0x430] sm:$0xff]
      %v826 = vld [vmem:[%s3 + $0x438] sm:$0xff]
      %v827 = vld [vmem:[%s3 + $0x440] sm:$0xf]
      %v828 = vld [vmem:[%s3 + $0x444] sm:$0xff]
      %v829 = vld [vmem:[%s3 + $0x44c] sm:$0xff]
      %v830 = vld [vmem:[%s3 + $0x454] sm:$0xff]
      %v831 = vld [vmem:[%s3 + $0x45c] sm:$0xf]
      %v832 = vld [vmem:[%s3 + $0x460] sm:$0xff]
      %v833 = vld [vmem:[%s3 + $0x468] sm:$0xff]
      %v834 = vld [vmem:[%s3 + $0x470] sm:$0xff]
      %v835 = vld [vmem:[%s3 + $0x478] sm:$0xf]
      %v836 = vld [vmem:[%s3 + $0x47c] sm:$0xff]
      %v837 = vld [vmem:[%s3 + $0x484] sm:$0xff]
      %v838 = vld [vmem:[%s3 + $0x48c] sm:$0xff]
      %v839 = vld [vmem:[%s3 + $0x494] sm:$0xf]
      %v840 = vld [vmem:[%s3 + $0x498] sm:$0xff]
      %v841 = vld [vmem:[%s3 + $0x4a0] sm:$0xff]
      %v842 = vld [vmem:[%s3 + $0x4a8] sm:$0xff]
      %v843 = vld [vmem:[%s3 + $0x4b0] sm:$0xf]
      %v844 = vld [vmem:[%s3 + $0x4b4] sm:$0xff]
      %v845 = vld [vmem:[%s3 + $0x4bc] sm:$0xff]
      %v846 = vld [vmem:[%s3 + $0x4c4] sm:$0xff]
      %v847 = vld [vmem:[%s3 + $0x4cc] sm:$0xf]
      %v848 = vld [vmem:[%s3 + $0x4d0] sm:$0xff]
      %v849 = vld [vmem:[%s3 + $0x4d8] sm:$0xff]
      %v850 = vld [vmem:[%s3 + $0x4e0] sm:$0xff]
      %v851 = vld [vmem:[%s3 + $0x4e8] sm:$0xf]
      %v852 = vld [vmem:[%s3 + $0x4ec] sm:$0xff]
      %v853 = vld [vmem:[%s3 + $0x4f4] sm:$0xff]
      %v854 = vld [vmem:[%s3 + $0x4fc] sm:$0xff]
      %v855 = vld [vmem:[%s3 + $0x504] sm:$0xf]
      %v856 = vld [vmem:[%s3 + $0x508] sm:$0xff]
      %v857 = vld [vmem:[%s3 + $0x510] sm:$0xff]
      %v858 = vld [vmem:[%s3 + $0x518] sm:$0xff]
      %v859 = vld [vmem:[%s3 + $0x520] sm:$0xf]
      %v860 = vld [vmem:[%s3 + $0x524] sm:$0xff]
      %v861 = vld [vmem:[%s3 + $0x52c] sm:$0xff]
      %v862 = vld [vmem:[%s3 + $0x534] sm:$0xff]
      %v863 = vld [vmem:[%s3 + $0x53c] sm:$0xf]
      %v864 = vld [vmem:[%s3 + $0x540] sm:$0xff]
      %v865 = vld [vmem:[%s3 + $0x548] sm:$0xff]
      %v866 = vld [vmem:[%s3 + $0x550] sm:$0xff]
      %v867 = vld [vmem:[%s3 + $0x558] sm:$0xf]
      %v868 = vld [vmem:[%s3 + $0x55c] sm:$0xff]
      %v869 = vld [vmem:[%s3 + $0x564] sm:$0xff]
      %v870 = vld [vmem:[%s3 + $0x56c] sm:$0xff]
      %v871 = vld [vmem:[%s3 + $0x574] sm:$0xf]
      %v872 = vld [vmem:[%s3 + $0x578] sm:$0xff]
      %v873 = vld [vmem:[%s3 + $0x580] sm:$0xff]
      %v874 = vld [vmem:[%s3 + $0x588] sm:$0xff]
      %v875 = vld [vmem:[%s3 + $0x590] sm:$0xf]
      %v876 = vld [vmem:[%s3 + $0x594] sm:$0xff]
      %v877 = vld [vmem:[%s3 + $0x59c] sm:$0xff]
      %v878 = vld [vmem:[%s3 + $0x5a4] sm:$0xff]
      %v879 = vld [vmem:[%s3 + $0x5ac] sm:$0xf]
      %v880 = vld [vmem:[%s3 + $0x5b0] sm:$0xff]
      %v881 = vld [vmem:[%s3 + $0x5b8] sm:$0xff]
      %v882 = vld [vmem:[%s3 + $0x5c0] sm:$0xff]
      %v883 = vld [vmem:[%s3 + $0x5c8] sm:$0xf]
      %v884 = vld [vmem:[%s3 + $0x5cc] sm:$0xff]
      %v885 = vld [vmem:[%s3 + $0x5d4] sm:$0xff]
      %v886 = vld [vmem:[%s3 + $0x5dc] sm:$0xff]
      %v887 = vld [vmem:[%s3 + $0x5e4] sm:$0xf]
      %v888 = vld [vmem:[%s3 + $0x5e8] sm:$0xff]
      %v889 = vld [vmem:[%s3 + $0x5f0] sm:$0xff]
      %v890 = vld [vmem:[%s3 + $0x5f8] sm:$0xff]
      %v891 = vld [vmem:[%s3 + $0x600] sm:$0xf]
      %v892 = vld [vmem:[%s3 + $0x604] sm:$0xff]
      %v893 = vld [vmem:[%s3 + $0x60c] sm:$0xff]
      %v894 = vld [vmem:[%s3 + $0x614] sm:$0xff]
      %v895 = vld [vmem:[%s3 + $0x61c] sm:$0xf]
      %v896 = vld [vmem:[%s3 + $0x620] sm:$0xff]
      %v897 = vld [vmem:[%s3 + $0x628] sm:$0xff]
      %v898 = vld [vmem:[%s3 + $0x630] sm:$0xff]
      %v899 = vld [vmem:[%s3 + $0x638] sm:$0xf]
      %v900 = vld [vmem:[%s3 + $0x63c] sm:$0xff]
      %v901 = vld [vmem:[%s3 + $0x644] sm:$0xff]
      %v902 = vld [vmem:[%s3 + $0x64c] sm:$0xff]
      %v903 = vld [vmem:[%s3 + $0x654] sm:$0xf]
      %v904 = vld [vmem:[%s3 + $0x658] sm:$0xff]
      %v905 = vld [vmem:[%s3 + $0x660] sm:$0xff]
      %v906 = vld [vmem:[%s3 + $0x668] sm:$0xff]
      %v907 = vld [vmem:[%s3 + $0x670] sm:$0xf]
      %v908 = vld [vmem:[%s3 + $0x674] sm:$0xff]
      %v909 = vld [vmem:[%s3 + $0x67c] sm:$0xff]
      %v910 = vld [vmem:[%s3 + $0x684] sm:$0xff]
      %v911 = vld [vmem:[%s3 + $0x68c] sm:$0xf]
      %v912 = vld [vmem:[%s3 + $0x690] sm:$0xff]
      %v913 = vld [vmem:[%s3 + $0x698] sm:$0xff]
      %v914 = vld [vmem:[%s3 + $0x6a0] sm:$0xff]
      %v915 = vld [vmem:[%s3 + $0x6a8] sm:$0xf]
      %v916 = vld [vmem:[%s3 + $0x6ac] sm:$0xff]
      %v917 = vld [vmem:[%s3 + $0x6b4] sm:$0xff]
      %v918 = vld [vmem:[%s3 + $0x6bc] sm:$0xff]
      %v919 = vld [vmem:[%s3 + $0x6c4] sm:$0xf]
      %v920 = vld [vmem:[%s3 + $0x6c8] sm:$0xff]
      %v921 = vld [vmem:[%s3 + $0x6d0] sm:$0xff]
      %v922 = vld [vmem:[%s3 + $0x6d8] sm:$0xff]
      %v923 = vld [vmem:[%s3 + $0x6e0] sm:$0xf]
      %v924 = vld [vmem:[%s3 + $0x6e4] sm:$0xff]
      %v925 = vld [vmem:[%s3 + $0x6ec] sm:$0xff]
      %v926 = vld [vmem:[%s3 + $0x6f4] sm:$0xff]
      %v927 = vld [vmem:[%s3 + $0x6fc] sm:$0xf]
      %v928 = vld [vmem:[%s4] sm:$0xff]
      %v930 = vlaneseq
      %v931 = vshrl.u32 %v930, 7
      %v932 = vsub.s32 0, %v931
      %v933 = vrot.slane %v928, %v932
      %v934 = vlaneseq
      %v935 = vshrl.u32 %v934, 7
      %v936 = vsub.s32 1, %v935
      %v937 = vrot.slane %v928, %v936
      %v938 = vlaneseq
      %v939 = vshrl.u32 %v938, 7
      %v940 = vsub.s32 2, %v939
      %v941 = vrot.slane %v928, %v940
      %v942 = vlaneseq
      %v943 = vshrl.u32 %v942, 7
      %v944 = vsub.s32 3, %v943
      %v945 = vrot.slane %v928, %v944
      %v946 = vlaneseq
      %v947 = vshrl.u32 %v946, 7
      %v948 = vsub.s32 4, %v947
      %v949 = vrot.slane %v928, %v948
      %v950 = vlaneseq
      %v951 = vshrl.u32 %v950, 7
      %v952 = vsub.s32 5, %v951
      %v953 = vrot.slane %v928, %v952
      %v954 = vlaneseq
      %v955 = vshrl.u32 %v954, 7
      %v956 = vsub.s32 6, %v955
      %v957 = vrot.slane %v928, %v956
      %v1221 = vunpack.c.l.b16 %v672
      %v1222 = vunpack.c.h.b16 %v672
      %v1223 = vunpack.c.l.b16 %v673
      %v1224 = vunpack.c.h.b16 %v673
      %v1225 = vunpack.c.l.b16 %v674
      %v1226 = vunpack.c.h.b16 %v674
      %v1227 = vunpack.c.l.b16 %v675
      %v1228 = vunpack.c.l.b16 %v676
      %v1229 = vunpack.c.h.b16 %v676
      %v1230 = vunpack.c.l.b16 %v677
      %v1231 = vunpack.c.h.b16 %v677
      %v1232 = vunpack.c.l.b16 %v678
      %v1233 = vunpack.c.h.b16 %v678
      %v1234 = vunpack.c.l.b16 %v679
      %v1235 = vunpack.c.l.b16 %v680
      %v1236 = vunpack.c.h.b16 %v680
      %v1237 = vunpack.c.l.b16 %v681
      %v1238 = vunpack.c.h.b16 %v681
      %v1239 = vunpack.c.l.b16 %v682
      %v1240 = vunpack.c.h.b16 %v682
      %v1241 = vunpack.c.l.b16 %v683
      %v1242 = vunpack.c.l.b16 %v684
      %v1243 = vunpack.c.h.b16 %v684
      %v1244 = vunpack.c.l.b16 %v685
      %v1245 = vunpack.c.h.b16 %v685
      %v1246 = vunpack.c.l.b16 %v686
      %v1247 = vunpack.c.h.b16 %v686
      %v1248 = vunpack.c.l.b16 %v687
      %v1249 = vunpack.c.l.b16 %v688
      %v1250 = vunpack.c.h.b16 %v688
      %v1251 = vunpack.c.l.b16 %v689
      %v1252 = vunpack.c.h.b16 %v689
      %v1253 = vunpack.c.l.b16 %v690
      %v1254 = vunpack.c.h.b16 %v690
      %v1255 = vunpack.c.l.b16 %v691
      %v1256 = vunpack.c.l.b16 %v692
      %v1257 = vunpack.c.h.b16 %v692
      %v1258 = vunpack.c.l.b16 %v693
      %v1259 = vunpack.c.h.b16 %v693
      %v1260 = vunpack.c.l.b16 %v694
      %v1261 = vunpack.c.h.b16 %v694
      %v1262 = vunpack.c.l.b16 %v695
      %v1263 = vunpack.c.l.b16 %v696
      %v1264 = vunpack.c.h.b16 %v696
      %v1265 = vunpack.c.l.b16 %v697
      %v1266 = vunpack.c.h.b16 %v697
      %v1267 = vunpack.c.l.b16 %v698
      %v1268 = vunpack.c.h.b16 %v698
      %v1269 = vunpack.c.l.b16 %v699
      %v1270 = vunpack.c.l.b16 %v700
      %v1271 = vunpack.c.h.b16 %v700
      %v1272 = vunpack.c.l.b16 %v701
      %v1273 = vunpack.c.h.b16 %v701
      %v1274 = vunpack.c.l.b16 %v702
      %v1275 = vunpack.c.h.b16 %v702
      %v1276 = vunpack.c.l.b16 %v703
      %v1277 = vunpack.c.l.b16 %v704
      %v1278 = vunpack.c.h.b16 %v704
      %v1279 = vunpack.c.l.b16 %v705
      %v1280 = vunpack.c.h.b16 %v705
      %v1281 = vunpack.c.l.b16 %v706
      %v1282 = vunpack.c.h.b16 %v706
      %v1283 = vunpack.c.l.b16 %v707
      %v1284 = vunpack.c.l.b16 %v708
      %v1285 = vunpack.c.h.b16 %v708
      %v1286 = vunpack.c.l.b16 %v709
      %v1287 = vunpack.c.h.b16 %v709
      %v1288 = vunpack.c.l.b16 %v710
      %v1289 = vunpack.c.h.b16 %v710
      %v1290 = vunpack.c.l.b16 %v711
      %v1291 = vunpack.c.l.b16 %v712
      %v1292 = vunpack.c.h.b16 %v712
      %v1293 = vunpack.c.l.b16 %v713
      %v1294 = vunpack.c.h.b16 %v713
      %v1295 = vunpack.c.l.b16 %v714
      %v1296 = vunpack.c.h.b16 %v714
      %v1297 = vunpack.c.l.b16 %v715
      %v1298 = vunpack.c.l.b16 %v716
      %v1299 = vunpack.c.h.b16 %v716
      %v1300 = vunpack.c.l.b16 %v717
      %v1301 = vunpack.c.h.b16 %v717
      %v1302 = vunpack.c.l.b16 %v718
      %v1303 = vunpack.c.h.b16 %v718
      %v1304 = vunpack.c.l.b16 %v719
      %v1305 = vunpack.c.l.b16 %v720
      %v1306 = vunpack.c.h.b16 %v720
      %v1307 = vunpack.c.l.b16 %v721
      %v1308 = vunpack.c.h.b16 %v721
      %v1309 = vunpack.c.l.b16 %v722
      %v1310 = vunpack.c.h.b16 %v722
      %v1311 = vunpack.c.l.b16 %v723
      %v1312 = vunpack.c.l.b16 %v724
      %v1313 = vunpack.c.h.b16 %v724
      %v1314 = vunpack.c.l.b16 %v725
      %v1315 = vunpack.c.h.b16 %v725
      %v1316 = vunpack.c.l.b16 %v726
      %v1317 = vunpack.c.h.b16 %v726
      %v1318 = vunpack.c.l.b16 %v727
      %v1319 = vunpack.c.l.b16 %v728
      %v1320 = vunpack.c.h.b16 %v728
      %v1321 = vunpack.c.l.b16 %v729
      %v1322 = vunpack.c.h.b16 %v729
      %v1323 = vunpack.c.l.b16 %v730
      %v1324 = vunpack.c.h.b16 %v730
      %v1325 = vunpack.c.l.b16 %v731
      %v1326 = vunpack.c.l.b16 %v732
      %v1327 = vunpack.c.h.b16 %v732
      %v1328 = vunpack.c.l.b16 %v733
      %v1329 = vunpack.c.h.b16 %v733
      %v1330 = vunpack.c.l.b16 %v734
      %v1331 = vunpack.c.h.b16 %v734
      %v1332 = vunpack.c.l.b16 %v735
      %v1333 = vunpack.c.l.b16 %v736
      %v1334 = vunpack.c.h.b16 %v736
      %v1335 = vunpack.c.l.b16 %v737
      %v1336 = vunpack.c.h.b16 %v737
      %v1337 = vunpack.c.l.b16 %v738
      %v1338 = vunpack.c.h.b16 %v738
      %v1339 = vunpack.c.l.b16 %v739
      %v1340 = vunpack.c.l.b16 %v740
      %v1341 = vunpack.c.h.b16 %v740
      %v1342 = vunpack.c.l.b16 %v741
      %v1343 = vunpack.c.h.b16 %v741
      %v1344 = vunpack.c.l.b16 %v742
      %v1345 = vunpack.c.h.b16 %v742
      %v1346 = vunpack.c.l.b16 %v743
      %v1347 = vunpack.c.l.b16 %v744
      %v1348 = vunpack.c.h.b16 %v744
      %v1349 = vunpack.c.l.b16 %v745
      %v1350 = vunpack.c.h.b16 %v745
      %v1351 = vunpack.c.l.b16 %v746
      %v1352 = vunpack.c.h.b16 %v746
      %v1353 = vunpack.c.l.b16 %v747
      %v1354 = vunpack.c.l.b16 %v748
      %v1355 = vunpack.c.h.b16 %v748
      %v1356 = vunpack.c.l.b16 %v749
      %v1357 = vunpack.c.h.b16 %v749
      %v1358 = vunpack.c.l.b16 %v750
      %v1359 = vunpack.c.h.b16 %v750
      %v1360 = vunpack.c.l.b16 %v751
      %v1361 = vunpack.c.l.b16 %v752
      %v1362 = vunpack.c.h.b16 %v752
      %v1363 = vunpack.c.l.b16 %v753
      %v1364 = vunpack.c.h.b16 %v753
      %v1365 = vunpack.c.l.b16 %v754
      %v1366 = vunpack.c.h.b16 %v754
      %v1367 = vunpack.c.l.b16 %v755
      %v1368 = vunpack.c.l.b16 %v756
      %v1369 = vunpack.c.h.b16 %v756
      %v1370 = vunpack.c.l.b16 %v757
      %v1371 = vunpack.c.h.b16 %v757
      %v1372 = vunpack.c.l.b16 %v758
      %v1373 = vunpack.c.h.b16 %v758
      %v1374 = vunpack.c.l.b16 %v759
      %v1375 = vunpack.c.l.b16 %v760
      %v1376 = vunpack.c.h.b16 %v760
      %v1377 = vunpack.c.l.b16 %v761
      %v1378 = vunpack.c.h.b16 %v761
      %v1379 = vunpack.c.l.b16 %v762
      %v1380 = vunpack.c.h.b16 %v762
      %v1381 = vunpack.c.l.b16 %v763
      %v1382 = vunpack.c.l.b16 %v764
      %v1383 = vunpack.c.h.b16 %v764
      %v1384 = vunpack.c.l.b16 %v765
      %v1385 = vunpack.c.h.b16 %v765
      %v1386 = vunpack.c.l.b16 %v766
      %v1387 = vunpack.c.h.b16 %v766
      %v1388 = vunpack.c.l.b16 %v767
      %v1389 = vunpack.c.l.b16 %v768
      %v1390 = vunpack.c.h.b16 %v768
      %v1391 = vunpack.c.l.b16 %v769
      %v1392 = vunpack.c.h.b16 %v769
      %v1393 = vunpack.c.l.b16 %v770
      %v1394 = vunpack.c.h.b16 %v770
      %v1395 = vunpack.c.l.b16 %v771
      %v1396 = vunpack.c.l.b16 %v772
      %v1397 = vunpack.c.h.b16 %v772
      %v1398 = vunpack.c.l.b16 %v773
      %v1399 = vunpack.c.h.b16 %v773
      %v1400 = vunpack.c.l.b16 %v774
      %v1401 = vunpack.c.h.b16 %v774
      %v1402 = vunpack.c.l.b16 %v775
      %v1403 = vunpack.c.l.b16 %v776
      %v1404 = vunpack.c.h.b16 %v776
      %v1405 = vunpack.c.l.b16 %v777
      %v1406 = vunpack.c.h.b16 %v777
      %v1407 = vunpack.c.l.b16 %v778
      %v1408 = vunpack.c.h.b16 %v778
      %v1409 = vunpack.c.l.b16 %v779
      %v1410 = vunpack.c.l.b16 %v780
      %v1411 = vunpack.c.h.b16 %v780
      %v1412 = vunpack.c.l.b16 %v781
      %v1413 = vunpack.c.h.b16 %v781
      %v1414 = vunpack.c.l.b16 %v782
      %v1415 = vunpack.c.h.b16 %v782
      %v1416 = vunpack.c.l.b16 %v783
      %v1417 = vunpack.c.l.b16 %v784
      %v1418 = vunpack.c.h.b16 %v784
      %v1419 = vunpack.c.l.b16 %v785
      %v1420 = vunpack.c.h.b16 %v785
      %v1421 = vunpack.c.l.b16 %v786
      %v1422 = vunpack.c.h.b16 %v786
      %v1423 = vunpack.c.l.b16 %v787
      %v1424 = vunpack.c.l.b16 %v788
      %v1425 = vunpack.c.h.b16 %v788
      %v1426 = vunpack.c.l.b16 %v789
      %v1427 = vunpack.c.h.b16 %v789
      %v1428 = vunpack.c.l.b16 %v790
      %v1429 = vunpack.c.h.b16 %v790
      %v1430 = vunpack.c.l.b16 %v791
      %v1431 = vunpack.c.l.b16 %v792
      %v1432 = vunpack.c.h.b16 %v792
      %v1433 = vunpack.c.l.b16 %v793
      %v1434 = vunpack.c.h.b16 %v793
      %v1435 = vunpack.c.l.b16 %v794
      %v1436 = vunpack.c.h.b16 %v794
      %v1437 = vunpack.c.l.b16 %v795
      %v1438 = vunpack.c.l.b16 %v796
      %v1439 = vunpack.c.h.b16 %v796
      %v1440 = vunpack.c.l.b16 %v797
      %v1441 = vunpack.c.h.b16 %v797
      %v1442 = vunpack.c.l.b16 %v798
      %v1443 = vunpack.c.h.b16 %v798
      %v1444 = vunpack.c.l.b16 %v799
      %v1445 = vunpack.c.l.b16 %v800
      %v1446 = vunpack.c.h.b16 %v800
      %v1447 = vunpack.c.l.b16 %v801
      %v1448 = vunpack.c.h.b16 %v801
      %v1449 = vunpack.c.l.b16 %v802
      %v1450 = vunpack.c.h.b16 %v802
      %v1451 = vunpack.c.l.b16 %v803
      %v1452 = vunpack.c.l.b16 %v804
      %v1453 = vunpack.c.h.b16 %v804
      %v1454 = vunpack.c.l.b16 %v805
      %v1455 = vunpack.c.h.b16 %v805
      %v1456 = vunpack.c.l.b16 %v806
      %v1457 = vunpack.c.h.b16 %v806
      %v1458 = vunpack.c.l.b16 %v807
      %v1459 = vunpack.c.l.b16 %v808
      %v1460 = vunpack.c.h.b16 %v808
      %v1461 = vunpack.c.l.b16 %v809
      %v1462 = vunpack.c.h.b16 %v809
      %v1463 = vunpack.c.l.b16 %v810
      %v1464 = vunpack.c.h.b16 %v810
      %v1465 = vunpack.c.l.b16 %v811
      %v1466 = vunpack.c.l.b16 %v812
      %v1467 = vunpack.c.h.b16 %v812
      %v1468 = vunpack.c.l.b16 %v813
      %v1469 = vunpack.c.h.b16 %v813
      %v1470 = vunpack.c.l.b16 %v814
      %v1471 = vunpack.c.h.b16 %v814
      %v1472 = vunpack.c.l.b16 %v815
      %v1473 = vunpack.c.l.b16 %v816
      %v1474 = vunpack.c.h.b16 %v816
      %v1475 = vunpack.c.l.b16 %v817
      %v1476 = vunpack.c.h.b16 %v817
      %v1477 = vunpack.c.l.b16 %v818
      %v1478 = vunpack.c.h.b16 %v818
      %v1479 = vunpack.c.l.b16 %v819
      %v1480 = vunpack.c.l.b16 %v820
      %v1481 = vunpack.c.h.b16 %v820
      %v1482 = vunpack.c.l.b16 %v821
      %v1483 = vunpack.c.h.b16 %v821
      %v1484 = vunpack.c.l.b16 %v822
      %v1485 = vunpack.c.h.b16 %v822
      %v1486 = vunpack.c.l.b16 %v823
      %v1487 = vunpack.c.l.b16 %v824
      %v1488 = vunpack.c.h.b16 %v824
      %v1489 = vunpack.c.l.b16 %v825
      %v1490 = vunpack.c.h.b16 %v825
      %v1491 = vunpack.c.l.b16 %v826
      %v1492 = vunpack.c.h.b16 %v826
      %v1493 = vunpack.c.l.b16 %v827
      %v1494 = vunpack.c.l.b16 %v828
      %v1495 = vunpack.c.h.b16 %v828
      %v1496 = vunpack.c.l.b16 %v829
      %v1497 = vunpack.c.h.b16 %v829
      %v1498 = vunpack.c.l.b16 %v830
      %v1499 = vunpack.c.h.b16 %v830
      %v1500 = vunpack.c.l.b16 %v831
      %v1501 = vunpack.c.l.b16 %v832
      %v1502 = vunpack.c.h.b16 %v832
      %v1503 = vunpack.c.l.b16 %v833
      %v1504 = vunpack.c.h.b16 %v833
      %v1505 = vunpack.c.l.b16 %v834
      %v1506 = vunpack.c.h.b16 %v834
      %v1507 = vunpack.c.l.b16 %v835
      %v1508 = vunpack.c.l.b16 %v836
      %v1509 = vunpack.c.h.b16 %v836
      %v1510 = vunpack.c.l.b16 %v837
      %v1511 = vunpack.c.h.b16 %v837
      %v1512 = vunpack.c.l.b16 %v838
      %v1513 = vunpack.c.h.b16 %v838
      %v1514 = vunpack.c.l.b16 %v839
      %v1515 = vunpack.c.l.b16 %v840
      %v1516 = vunpack.c.h.b16 %v840
      %v1517 = vunpack.c.l.b16 %v841
      %v1518 = vunpack.c.h.b16 %v841
      %v1519 = vunpack.c.l.b16 %v842
      %v1520 = vunpack.c.h.b16 %v842
      %v1521 = vunpack.c.l.b16 %v843
      %v1522 = vunpack.c.l.b16 %v844
      %v1523 = vunpack.c.h.b16 %v844
      %v1524 = vunpack.c.l.b16 %v845
      %v1525 = vunpack.c.h.b16 %v845
      %v1526 = vunpack.c.l.b16 %v846
      %v1527 = vunpack.c.h.b16 %v846
      %v1528 = vunpack.c.l.b16 %v847
      %v1529 = vunpack.c.l.b16 %v848
      %v1530 = vunpack.c.h.b16 %v848
      %v1531 = vunpack.c.l.b16 %v849
      %v1532 = vunpack.c.h.b16 %v849
      %v1533 = vunpack.c.l.b16 %v850
      %v1534 = vunpack.c.h.b16 %v850
      %v1535 = vunpack.c.l.b16 %v851
      %v1536 = vunpack.c.l.b16 %v852
      %v1537 = vunpack.c.h.b16 %v852
      %v1538 = vunpack.c.l.b16 %v853
      %v1539 = vunpack.c.h.b16 %v853
      %v1540 = vunpack.c.l.b16 %v854
      %v1541 = vunpack.c.h.b16 %v854
      %v1542 = vunpack.c.l.b16 %v855
      %v1543 = vunpack.c.l.b16 %v856
      %v1544 = vunpack.c.h.b16 %v856
      %v1545 = vunpack.c.l.b16 %v857
      %v1546 = vunpack.c.h.b16 %v857
      %v1547 = vunpack.c.l.b16 %v858
      %v1548 = vunpack.c.h.b16 %v858
      %v1549 = vunpack.c.l.b16 %v859
      %v1550 = vunpack.c.l.b16 %v860
      %v1551 = vunpack.c.h.b16 %v860
      %v1552 = vunpack.c.l.b16 %v861
      %v1553 = vunpack.c.h.b16 %v861
      %v1554 = vunpack.c.l.b16 %v862
      %v1555 = vunpack.c.h.b16 %v862
      %v1556 = vunpack.c.l.b16 %v863
      %v1557 = vunpack.c.l.b16 %v864
      %v1558 = vunpack.c.h.b16 %v864
      %v1559 = vunpack.c.l.b16 %v865
      %v1560 = vunpack.c.h.b16 %v865
      %v1561 = vunpack.c.l.b16 %v866
      %v1562 = vunpack.c.h.b16 %v866
      %v1563 = vunpack.c.l.b16 %v867
      %v1564 = vunpack.c.l.b16 %v868
      %v1565 = vunpack.c.h.b16 %v868
      %v1566 = vunpack.c.l.b16 %v869
      %v1567 = vunpack.c.h.b16 %v869
      %v1568 = vunpack.c.l.b16 %v870
      %v1569 = vunpack.c.h.b16 %v870
      %v1570 = vunpack.c.l.b16 %v871
      %v1571 = vunpack.c.l.b16 %v872
      %v1572 = vunpack.c.h.b16 %v872
      %v1573 = vunpack.c.l.b16 %v873
      %v1574 = vunpack.c.h.b16 %v873
      %v1575 = vunpack.c.l.b16 %v874
      %v1576 = vunpack.c.h.b16 %v874
      %v1577 = vunpack.c.l.b16 %v875
      %v1578 = vunpack.c.l.b16 %v876
      %v1579 = vunpack.c.h.b16 %v876
      %v1580 = vunpack.c.l.b16 %v877
      %v1581 = vunpack.c.h.b16 %v877
      %v1582 = vunpack.c.l.b16 %v878
      %v1583 = vunpack.c.h.b16 %v878
      %v1584 = vunpack.c.l.b16 %v879
      %v1585 = vunpack.c.l.b16 %v880
      %v1586 = vunpack.c.h.b16 %v880
      %v1587 = vunpack.c.l.b16 %v881
      %v1588 = vunpack.c.h.b16 %v881
      %v1589 = vunpack.c.l.b16 %v882
      %v1590 = vunpack.c.h.b16 %v882
      %v1591 = vunpack.c.l.b16 %v883
      %v1592 = vunpack.c.l.b16 %v884
      %v1593 = vunpack.c.h.b16 %v884
      %v1594 = vunpack.c.l.b16 %v885
      %v1595 = vunpack.c.h.b16 %v885
      %v1596 = vunpack.c.l.b16 %v886
      %v1597 = vunpack.c.h.b16 %v886
      %v1598 = vunpack.c.l.b16 %v887
      %v1599 = vunpack.c.l.b16 %v888
      %v1600 = vunpack.c.h.b16 %v888
      %v1601 = vunpack.c.l.b16 %v889
      %v1602 = vunpack.c.h.b16 %v889
      %v1603 = vunpack.c.l.b16 %v890
      %v1604 = vunpack.c.h.b16 %v890
      %v1605 = vunpack.c.l.b16 %v891
      %v1606 = vunpack.c.l.b16 %v892
      %v1607 = vunpack.c.h.b16 %v892
      %v1608 = vunpack.c.l.b16 %v893
      %v1609 = vunpack.c.h.b16 %v893
      %v1610 = vunpack.c.l.b16 %v894
      %v1611 = vunpack.c.h.b16 %v894
      %v1612 = vunpack.c.l.b16 %v895
      %v1613 = vunpack.c.l.b16 %v896
      %v1614 = vunpack.c.h.b16 %v896
      %v1615 = vunpack.c.l.b16 %v897
      %v1616 = vunpack.c.h.b16 %v897
      %v1617 = vunpack.c.l.b16 %v898
      %v1618 = vunpack.c.h.b16 %v898
      %v1619 = vunpack.c.l.b16 %v899
      %v1620 = vunpack.c.l.b16 %v900
      %v1621 = vunpack.c.h.b16 %v900
      %v1622 = vunpack.c.l.b16 %v901
      %v1623 = vunpack.c.h.b16 %v901
      %v1624 = vunpack.c.l.b16 %v902
      %v1625 = vunpack.c.h.b16 %v902
      %v1626 = vunpack.c.l.b16 %v903
      %v1627 = vunpack.c.l.b16 %v904
      %v1628 = vunpack.c.h.b16 %v904
      %v1629 = vunpack.c.l.b16 %v905
      %v1630 = vunpack.c.h.b16 %v905
      %v1631 = vunpack.c.l.b16 %v906
      %v1632 = vunpack.c.h.b16 %v906
      %v1633 = vunpack.c.l.b16 %v907
      %v1634 = vunpack.c.l.b16 %v908
      %v1635 = vunpack.c.h.b16 %v908
      %v1636 = vunpack.c.l.b16 %v909
      %v1637 = vunpack.c.h.b16 %v909
      %v1638 = vunpack.c.l.b16 %v910
      %v1639 = vunpack.c.h.b16 %v910
      %v1640 = vunpack.c.l.b16 %v911
      %v1641 = vunpack.c.l.b16 %v912
      %v1642 = vunpack.c.h.b16 %v912
      %v1643 = vunpack.c.l.b16 %v913
      %v1644 = vunpack.c.h.b16 %v913
      %v1645 = vunpack.c.l.b16 %v914
      %v1646 = vunpack.c.h.b16 %v914
      %v1647 = vunpack.c.l.b16 %v915
      %v1648 = vunpack.c.l.b16 %v916
      %v1649 = vunpack.c.h.b16 %v916
      %v1650 = vunpack.c.l.b16 %v917
      %v1651 = vunpack.c.h.b16 %v917
      %v1652 = vunpack.c.l.b16 %v918
      %v1653 = vunpack.c.h.b16 %v918
      %v1654 = vunpack.c.l.b16 %v919
      %v1655 = vunpack.c.l.b16 %v920
      %v1656 = vunpack.c.h.b16 %v920
      %v1657 = vunpack.c.l.b16 %v921
      %v1658 = vunpack.c.h.b16 %v921
      %v1659 = vunpack.c.l.b16 %v922
      %v1660 = vunpack.c.h.b16 %v922
      %v1661 = vunpack.c.l.b16 %v923
      %v1662 = vunpack.c.l.b16 %v924
      %v1663 = vunpack.c.h.b16 %v924
      %v1664 = vunpack.c.l.b16 %v925
      %v1665 = vunpack.c.h.b16 %v925
      %v1666 = vunpack.c.l.b16 %v926
      %v1667 = vunpack.c.h.b16 %v926
      %v1668 = vunpack.c.l.b16 %v927
      %v1669 = vpack.c.b16 %v1228, %v1221
      %v1670 = vpack.c.b16 %v1229, %v1222
      %v1671 = vpack.c.b16 %v1230, %v1223
      %v1672 = vpack.c.b16 %v1231, %v1224
      %v1673 = vpack.c.b16 %v1232, %v1225
      %v1674 = vpack.c.b16 %v1233, %v1226
      %v1675 = vpack.c.b16 %v1234, %v1227
      %v1676 = vpack.c.b16 %v1242, %v1235
      %v1677 = vpack.c.b16 %v1243, %v1236
      %v1678 = vpack.c.b16 %v1244, %v1237
      %v1679 = vpack.c.b16 %v1245, %v1238
      %v1680 = vpack.c.b16 %v1246, %v1239
      %v1681 = vpack.c.b16 %v1247, %v1240
      %v1682 = vpack.c.b16 %v1248, %v1241
      %v1683 = vpack.c.b16 %v1256, %v1249
      %v1684 = vpack.c.b16 %v1257, %v1250
      %v1685 = vpack.c.b16 %v1258, %v1251
      %v1686 = vpack.c.b16 %v1259, %v1252
      %v1687 = vpack.c.b16 %v1260, %v1253
      %v1688 = vpack.c.b16 %v1261, %v1254
      %v1689 = vpack.c.b16 %v1262, %v1255
      %v1690 = vpack.c.b16 %v1270, %v1263
      %v1691 = vpack.c.b16 %v1271, %v1264
      %v1692 = vpack.c.b16 %v1272, %v1265
      %v1693 = vpack.c.b16 %v1273, %v1266
      %v1694 = vpack.c.b16 %v1274, %v1267
      %v1695 = vpack.c.b16 %v1275, %v1268
      %v1696 = vpack.c.b16 %v1276, %v1269
      %v1697 = vpack.c.b16 %v1284, %v1277
      %v1698 = vpack.c.b16 %v1285, %v1278
      %v1699 = vpack.c.b16 %v1286, %v1279
      %v1700 = vpack.c.b16 %v1287, %v1280
      %v1701 = vpack.c.b16 %v1288, %v1281
      %v1702 = vpack.c.b16 %v1289, %v1282
      %v1703 = vpack.c.b16 %v1290, %v1283
      %v1704 = vpack.c.b16 %v1298, %v1291
      %v1705 = vpack.c.b16 %v1299, %v1292
      %v1706 = vpack.c.b16 %v1300, %v1293
      %v1707 = vpack.c.b16 %v1301, %v1294
      %v1708 = vpack.c.b16 %v1302, %v1295
      %v1709 = vpack.c.b16 %v1303, %v1296
      %v1710 = vpack.c.b16 %v1304, %v1297
      %v1711 = vpack.c.b16 %v1312, %v1305
      %v1712 = vpack.c.b16 %v1313, %v1306
      %v1713 = vpack.c.b16 %v1314, %v1307
      %v1714 = vpack.c.b16 %v1315, %v1308
      %v1715 = vpack.c.b16 %v1316, %v1309
      %v1716 = vpack.c.b16 %v1317, %v1310
      %v1717 = vpack.c.b16 %v1318, %v1311
      %v1718 = vpack.c.b16 %v1326, %v1319
      %v1719 = vpack.c.b16 %v1327, %v1320
      %v1720 = vpack.c.b16 %v1328, %v1321
      %v1721 = vpack.c.b16 %v1329, %v1322
      %v1722 = vpack.c.b16 %v1330, %v1323
      %v1723 = vpack.c.b16 %v1331, %v1324
      %v1724 = vpack.c.b16 %v1332, %v1325
      %v1725 = vpack.c.b16 %v1340, %v1333
      %v1726 = vpack.c.b16 %v1341, %v1334
      %v1727 = vpack.c.b16 %v1342, %v1335
      %v1728 = vpack.c.b16 %v1343, %v1336
      %v1729 = vpack.c.b16 %v1344, %v1337
      %v1730 = vpack.c.b16 %v1345, %v1338
      %v1731 = vpack.c.b16 %v1346, %v1339
      %v1732 = vpack.c.b16 %v1354, %v1347
      %v1733 = vpack.c.b16 %v1355, %v1348
      %v1734 = vpack.c.b16 %v1356, %v1349
      %v1735 = vpack.c.b16 %v1357, %v1350
      %v1736 = vpack.c.b16 %v1358, %v1351
      %v1737 = vpack.c.b16 %v1359, %v1352
      %v1738 = vpack.c.b16 %v1360, %v1353
      %v1739 = vpack.c.b16 %v1368, %v1361
      %v1740 = vpack.c.b16 %v1369, %v1362
      %v1741 = vpack.c.b16 %v1370, %v1363
      %v1742 = vpack.c.b16 %v1371, %v1364
      %v1743 = vpack.c.b16 %v1372, %v1365
      %v1744 = vpack.c.b16 %v1373, %v1366
      %v1745 = vpack.c.b16 %v1374, %v1367
      %v1746 = vpack.c.b16 %v1382, %v1375
      %v1747 = vpack.c.b16 %v1383, %v1376
      %v1748 = vpack.c.b16 %v1384, %v1377
      %v1749 = vpack.c.b16 %v1385, %v1378
      %v1750 = vpack.c.b16 %v1386, %v1379
      %v1751 = vpack.c.b16 %v1387, %v1380
      %v1752 = vpack.c.b16 %v1388, %v1381
      %v1753 = vpack.c.b16 %v1396, %v1389
      %v1754 = vpack.c.b16 %v1397, %v1390
      %v1755 = vpack.c.b16 %v1398, %v1391
      %v1756 = vpack.c.b16 %v1399, %v1392
      %v1757 = vpack.c.b16 %v1400, %v1393
      %v1758 = vpack.c.b16 %v1401, %v1394
      %v1759 = vpack.c.b16 %v1402, %v1395
      %v1760 = vpack.c.b16 %v1410, %v1403
      %v1761 = vpack.c.b16 %v1411, %v1404
      %v1762 = vpack.c.b16 %v1412, %v1405
      %v1763 = vpack.c.b16 %v1413, %v1406
      %v1764 = vpack.c.b16 %v1414, %v1407
      %v1765 = vpack.c.b16 %v1415, %v1408
      %v1766 = vpack.c.b16 %v1416, %v1409
      %v1767 = vpack.c.b16 %v1424, %v1417
      %v1768 = vpack.c.b16 %v1425, %v1418
      %v1769 = vpack.c.b16 %v1426, %v1419
      %v1770 = vpack.c.b16 %v1427, %v1420
      %v1771 = vpack.c.b16 %v1428, %v1421
      %v1772 = vpack.c.b16 %v1429, %v1422
      %v1773 = vpack.c.b16 %v1430, %v1423
      %v1774 = vpack.c.b16 %v1438, %v1431
      %v1775 = vpack.c.b16 %v1439, %v1432
      %v1776 = vpack.c.b16 %v1440, %v1433
      %v1777 = vpack.c.b16 %v1441, %v1434
      %v1778 = vpack.c.b16 %v1442, %v1435
      %v1779 = vpack.c.b16 %v1443, %v1436
      %v1780 = vpack.c.b16 %v1444, %v1437
      %v1781 = vpack.c.b16 %v1452, %v1445
      %v1782 = vpack.c.b16 %v1453, %v1446
      %v1783 = vpack.c.b16 %v1454, %v1447
      %v1784 = vpack.c.b16 %v1455, %v1448
      %v1785 = vpack.c.b16 %v1456, %v1449
      %v1786 = vpack.c.b16 %v1457, %v1450
      %v1787 = vpack.c.b16 %v1458, %v1451
      %v1788 = vpack.c.b16 %v1466, %v1459
      %v1789 = vpack.c.b16 %v1467, %v1460
      %v1790 = vpack.c.b16 %v1468, %v1461
      %v1791 = vpack.c.b16 %v1469, %v1462
      %v1792 = vpack.c.b16 %v1470, %v1463
      %v1793 = vpack.c.b16 %v1471, %v1464
      %v1794 = vpack.c.b16 %v1472, %v1465
      %v1795 = vpack.c.b16 %v1480, %v1473
      %v1796 = vpack.c.b16 %v1481, %v1474
      %v1797 = vpack.c.b16 %v1482, %v1475
      %v1798 = vpack.c.b16 %v1483, %v1476
      %v1799 = vpack.c.b16 %v1484, %v1477
      %v1800 = vpack.c.b16 %v1485, %v1478
      %v1801 = vpack.c.b16 %v1486, %v1479
      %v1802 = vpack.c.b16 %v1494, %v1487
      %v1803 = vpack.c.b16 %v1495, %v1488
      %v1804 = vpack.c.b16 %v1496, %v1489
      %v1805 = vpack.c.b16 %v1497, %v1490
      %v1806 = vpack.c.b16 %v1498, %v1491
      %v1807 = vpack.c.b16 %v1499, %v1492
      %v1808 = vpack.c.b16 %v1500, %v1493
      %v1809 = vpack.c.b16 %v1508, %v1501
      %v1810 = vpack.c.b16 %v1509, %v1502
      %v1811 = vpack.c.b16 %v1510, %v1503
      %v1812 = vpack.c.b16 %v1511, %v1504
      %v1813 = vpack.c.b16 %v1512, %v1505
      %v1814 = vpack.c.b16 %v1513, %v1506
      %v1815 = vpack.c.b16 %v1514, %v1507
      %v1816 = vpack.c.b16 %v1522, %v1515
      %v1817 = vpack.c.b16 %v1523, %v1516
      %v1818 = vpack.c.b16 %v1524, %v1517
      %v1819 = vpack.c.b16 %v1525, %v1518
      %v1820 = vpack.c.b16 %v1526, %v1519
      %v1821 = vpack.c.b16 %v1527, %v1520
      %v1822 = vpack.c.b16 %v1528, %v1521
      %v1823 = vpack.c.b16 %v1536, %v1529
      %v1824 = vpack.c.b16 %v1537, %v1530
      %v1825 = vpack.c.b16 %v1538, %v1531
      %v1826 = vpack.c.b16 %v1539, %v1532
      %v1827 = vpack.c.b16 %v1540, %v1533
      %v1828 = vpack.c.b16 %v1541, %v1534
      %v1829 = vpack.c.b16 %v1542, %v1535
      %v1830 = vpack.c.b16 %v1550, %v1543
      %v1831 = vpack.c.b16 %v1551, %v1544
      %v1832 = vpack.c.b16 %v1552, %v1545
      %v1833 = vpack.c.b16 %v1553, %v1546
      %v1834 = vpack.c.b16 %v1554, %v1547
      %v1835 = vpack.c.b16 %v1555, %v1548
      %v1836 = vpack.c.b16 %v1556, %v1549
      %v1837 = vpack.c.b16 %v1564, %v1557
      %v1838 = vpack.c.b16 %v1565, %v1558
      %v1839 = vpack.c.b16 %v1566, %v1559
      %v1840 = vpack.c.b16 %v1567, %v1560
      %v1841 = vpack.c.b16 %v1568, %v1561
      %v1842 = vpack.c.b16 %v1569, %v1562
      %v1843 = vpack.c.b16 %v1570, %v1563
      %v1844 = vpack.c.b16 %v1578, %v1571
      %v1845 = vpack.c.b16 %v1579, %v1572
      %v1846 = vpack.c.b16 %v1580, %v1573
      %v1847 = vpack.c.b16 %v1581, %v1574
      %v1848 = vpack.c.b16 %v1582, %v1575
      %v1849 = vpack.c.b16 %v1583, %v1576
      %v1850 = vpack.c.b16 %v1584, %v1577
      %v1851 = vpack.c.b16 %v1592, %v1585
      %v1852 = vpack.c.b16 %v1593, %v1586
      %v1853 = vpack.c.b16 %v1594, %v1587
      %v1854 = vpack.c.b16 %v1595, %v1588
      %v1855 = vpack.c.b16 %v1596, %v1589
      %v1856 = vpack.c.b16 %v1597, %v1590
      %v1857 = vpack.c.b16 %v1598, %v1591
      %v1858 = vpack.c.b16 %v1606, %v1599
      %v1859 = vpack.c.b16 %v1607, %v1600
      %v1860 = vpack.c.b16 %v1608, %v1601
      %v1861 = vpack.c.b16 %v1609, %v1602
      %v1862 = vpack.c.b16 %v1610, %v1603
      %v1863 = vpack.c.b16 %v1611, %v1604
      %v1864 = vpack.c.b16 %v1612, %v1605
      %v1865 = vpack.c.b16 %v1620, %v1613
      %v1866 = vpack.c.b16 %v1621, %v1614
      %v1867 = vpack.c.b16 %v1622, %v1615
      %v1868 = vpack.c.b16 %v1623, %v1616
      %v1869 = vpack.c.b16 %v1624, %v1617
      %v1870 = vpack.c.b16 %v1625, %v1618
      %v1871 = vpack.c.b16 %v1626, %v1619
      %v1872 = vpack.c.b16 %v1634, %v1627
      %v1873 = vpack.c.b16 %v1635, %v1628
      %v1874 = vpack.c.b16 %v1636, %v1629
      %v1875 = vpack.c.b16 %v1637, %v1630
      %v1876 = vpack.c.b16 %v1638, %v1631
      %v1877 = vpack.c.b16 %v1639, %v1632
      %v1878 = vpack.c.b16 %v1640, %v1633
      %v1879 = vpack.c.b16 %v1648, %v1641
      %v1880 = vpack.c.b16 %v1649, %v1642
      %v1881 = vpack.c.b16 %v1650, %v1643
      %v1882 = vpack.c.b16 %v1651, %v1644
      %v1883 = vpack.c.b16 %v1652, %v1645
      %v1884 = vpack.c.b16 %v1653, %v1646
      %v1885 = vpack.c.b16 %v1654, %v1647
      %v1886 = vpack.c.b16 %v1662, %v1655
      %v1887 = vpack.c.b16 %v1663, %v1656
      %v1888 = vpack.c.b16 %v1664, %v1657
      %v1889 = vpack.c.b16 %v1665, %v1658
      %v1890 = vpack.c.b16 %v1666, %v1659
      %v1891 = vpack.c.b16 %v1667, %v1660
      %v1892 = vpack.c.b16 %v1668, %v1661
      %2117 = vmatprep.subr.bf16.mxu0 %v1670
      %2118 = vmatpush1.bf16.msra.mxu0 %v1669
      %2119 = vmatprep.subr.bf16.mxu0 %v1677
      %2120 = vmatpush1.bf16.msra.mxu0 %v1676
      %2121 = vmatprep.subr.bf16.mxu0 %v1684
      %2122 = vmatpush1.bf16.msra.mxu0 %v1683
      %2123 = vmatprep.subr.bf16.mxu0 %v1691
      %2124 = vmatpush1.bf16.msra.mxu0 %v1690
      %2125 = vmatprep.subr.bf16.mxu0 %v1698
      %2126 = vmatpush1.bf16.msra.mxu0 %v1697
      %2127 = vmatprep.subr.bf16.mxu0 %v1705
      %2128 = vmatpush1.bf16.msra.mxu0 %v1704
      %2129 = vmatprep.subr.bf16.mxu0 %v1712
      %2130 = vmatpush1.bf16.msra.mxu0 %v1711
      %2131 = vmatprep.subr.bf16.mxu0 %v1719
      %2132 = vmatpush1.bf16.msra.mxu0 %v1718
      %2133 = vmatprep.subr.bf16.mxu0 %v1726
      %2134 = vmatpush1.bf16.msra.mxu0 %v1725
      %2135 = vmatprep.subr.bf16.mxu0 %v1733
      %2136 = vmatpush1.bf16.msra.mxu0 %v1732
      %2137 = vmatprep.subr.bf16.mxu0 %v1740
      %2138 = vmatpush1.bf16.msra.mxu0 %v1739
      %2139 = vmatprep.subr.bf16.mxu0 %v1747
      %2140 = vmatpush1.bf16.msra.mxu0 %v1746
      %2141 = vmatprep.subr.bf16.mxu0 %v1754
      %2142 = vmatpush1.bf16.msra.mxu0 %v1753
      %2143 = vmatprep.subr.bf16.mxu0 %v1761
      %2144 = vmatpush1.bf16.msra.mxu0 %v1760
      %2145 = vmatprep.subr.bf16.mxu0 %v1768
      %2146 = vmatpush1.bf16.msra.mxu0 %v1767
      %2147 = vmatprep.subr.bf16.mxu0 %v1775
      %2148 = vmatpush1.bf16.msra.mxu0 %v1774
      %2149 = vmatprep.mubr.bf16.mxu0 %v641
      %2150 = vmatmul.mubr.bf16.gmra.mrb[0].mxu0 %v640
      %v2151 = vpop.f32.mrb[0].mxu0
      %v2152 = vadd.f32 %v933, %v2151
      %v2153 = vpop.f32.mrb[0].mxu0
      %v2154 = vadd.f32 %v937, %v2153
      %v2155 = vpop.f32.mrb[0].mxu0
      %v2156 = vadd.f32 %v933, %v2155
      %v2157 = vpop.f32.mrb[0].mxu0
      %v2158 = vadd.f32 %v937, %v2157
      %2159 = vmatprep.mubr.bf16.mxu0 %v645
      %2160 = vmatmul.mubr.bf16.gmra.mrb[0].mxu0 %v644
      %v2161 = vpop.f32.mrb[0].mxu0
      %v2162 = vadd.f32 %v933, %v2161
      %v2163 = vpop.f32.mrb[0].mxu0
      %v2164 = vadd.f32 %v937, %v2163
      %v2165 = vpop.f32.mrb[0].mxu0
      %v2166 = vadd.f32 %v933, %v2165
      %v2167 = vpop.f32.mrb[0].mxu0
      %v2168 = vadd.f32 %v937, %v2167
      %2169 = vmatprep.mubr.bf16.mxu0 %v649
      %2170 = vmatmul.mubr.bf16.gmra.mrb[0].mxu0 %v648
      %v2171 = vpop.f32.mrb[0].mxu0
      %v2172 = vadd.f32 %v933, %v2171
      %v2173 = vpop.f32.mrb[0].mxu0
      %v2174 = vadd.f32 %v937, %v2173
      %v2175 = vpop.f32.mrb[0].mxu0
      %v2176 = vadd.f32 %v933, %v2175
      %v2177 = vpop.f32.mrb[0].mxu0
      %v2178 = vadd.f32 %v937, %v2177
      %2179 = vmatprep.mubr.bf16.mxu0 %v653
      %2180 = vmatmul.mubr.bf16.gmra.mrb[0].mxu0 %v652
      %v2181 = vpop.f32.mrb[0].mxu0
      %v2182 = vadd.f32 %v933, %v2181
      %v2183 = vpop.f32.mrb[0].mxu0
      %v2184 = vadd.f32 %v937, %v2183
      %v2185 = vpop.f32.mrb[0].mxu0
      %v2186 = vadd.f32 %v933, %v2185
      %v2187 = vpop.f32.mrb[0].mxu0
      %v2188 = vadd.f32 %v937, %v2187
      %2189 = vmatprep.mubr.bf16.mxu0 %v657
      %2190 = vmatmul.mubr.bf16.gmra.mrb[0].mxu0 %v656
      %v2191 = vpop.f32.mrb[0].mxu0
      %v2192 = vadd.f32 %v933, %v2191
      %v2193 = vpop.f32.mrb[0].mxu0
      %v2194 = vadd.f32 %v937, %v2193
      %v2195 = vpop.f32.mrb[0].mxu0
      %v2196 = vadd.f32 %v933, %v2195
      %v2197 = vpop.f32.mrb[0].mxu0
      %v2198 = vadd.f32 %v937, %v2197
      %2199 = vmatprep.mubr.bf16.mxu0 %v661
      %2200 = vmatmul.mubr.bf16.gmra.mrb[0].mxu0 %v660
      %v2201 = vpop.f32.mrb[0].mxu0
      %v2202 = vadd.f32 %v933, %v2201
      %v2203 = vpop.f32.mrb[0].mxu0
      %v2204 = vadd.f32 %v937, %v2203
      %v2205 = vpop.f32.mrb[0].mxu0
      %v2206 = vadd.f32 %v933, %v2205
      %v2207 = vpop.f32.mrb[0].mxu0
      %v2208 = vadd.f32 %v937, %v2207
      %2209 = vmatprep.mubr.bf16.mxu0 %v665
      %2210 = vmatmul.mubr.bf16.gmra.mrb[0].mxu0 %v664
      %v2211 = vpop.f32.mrb[0].mxu0
      %v2212 = vadd.f32 %v933, %v2211
      %v2213 = vpop.f32.mrb[0].mxu0
      %v2214 = vadd.f32 %v937, %v2213
      %v2215 = vpop.f32.mrb[0].mxu0
      %v2216 = vadd.f32 %v933, %v2215
      %v2217 = vpop.f32.mrb[0].mxu0
      %v2218 = vadd.f32 %v937, %v2217
      %2219 = vmatprep.mubr.bf16.mxu0 %v669
      %2220 = vmatmul.mubr.bf16.gmra.mrb[0].mxu0 %v668
      %v2221 = vpop.f32.mrb[0].mxu0
      %v2222 = vadd.f32 %v933, %v2221
      %v2223 = vpop.f32.mrb[0].mxu0
      %v2224 = vadd.f32 %v937, %v2223
      %v2225 = vpop.f32.mrb[0].mxu0
      %v2226 = vadd.f32 %v933, %v2225
      %v2227 = vpop.f32.mrb[0].mxu0
      %v2228 = vadd.f32 %v937, %v2227
      %2229 = vdwg.mxu0
      %2230 = vmatprep.subr.bf16.mxu0 %v1782
      %2231 = vmatpush1.bf16.msra.mxu0 %v1781
      %2232 = vmatprep.subr.bf16.mxu0 %v1789
      %2233 = vmatpush1.bf16.msra.mxu0 %v1788
      %2234 = vmatprep.subr.bf16.mxu0 %v1796
      %2235 = vmatpush1.bf16.msra.mxu0 %v1795
      %2236 = vmatprep.subr.bf16.mxu0 %v1803
      %2237 = vmatpush1.bf16.msra.mxu0 %v1802
      %2238 = vmatprep.subr.bf16.mxu0 %v1810
      %2239 = vmatpush1.bf16.msra.mxu0 %v1809
      %2240 = vmatprep.subr.bf16.mxu0 %v1817
      %2241 = vmatpush1.bf16.msra.mxu0 %v1816
      %2242 = vmatprep.subr.bf16.mxu0 %v1824
      %2243 = vmatpush1.bf16.msra.mxu0 %v1823
      %2244 = vmatprep.subr.bf16.mxu0 %v1831
      %2245 = vmatpush1.bf16.msra.mxu0 %v1830
      %2246 = vmatprep.subr.bf16.mxu0 %v1838
      %2247 = vmatpush1.bf16.msra.mxu0 %v1837
      %2248 = vmatprep.subr.bf16.mxu0 %v1845
      %2249 = vmatpush1.bf16.msra.mxu0 %v1844
      %2250 = vmatprep.subr.bf16.mxu0 %v1852
      %2251 = vmatpush1.bf16.msra.mxu0 %v1851
      %2252 = vmatprep.subr.bf16.mxu0 %v1859
      %2253 = vmatpush1.bf16.msra.mxu0 %v1858
      %2254 = vmatprep.subr.bf16.mxu0 %v1866
      %2255 = vmatpush1.bf16.msra.mxu0 %v1865
      %2256 = vmatprep.subr.bf16.mxu0 %v1873
      %2257 = vmatpush1.bf16.msra.mxu0 %v1872
      %2258 = vmatprep.subr.bf16.mxu0 %v1880
      %2259 = vmatpush1.bf16.msra.mxu0 %v1879
      %2260 = vmatprep.subr.bf16.mxu0 %v1887
      %2261 = vmatpush1.bf16.msra.mxu0 %v1886
      %2262 = vmatprep.mubr.bf16.mxu0 %v643
      %2263 = vmatmul.mubr.bf16.gmra.mrb[0].mxu0 %v642
      %v2264 = vpop.f32.mrb[0].mxu0
      %v2265 = vadd.f32 %v2152, %v2264
      %v2266 = vpop.f32.mrb[0].mxu0
      %v2267 = vadd.f32 %v2154, %v2266
      %v2268 = vpop.f32.mrb[0].mxu0
      %v2269 = vadd.f32 %v2156, %v2268
      %v2270 = vpop.f32.mrb[0].mxu0
      %v2271 = vadd.f32 %v2158, %v2270
      %2272 = vmatprep.mubr.bf16.mxu0 %v647
      %2273 = vmatmul.mubr.bf16.gmra.mrb[0].mxu0 %v646
      %v2274 = vpop.f32.mrb[0].mxu0
      %v2275 = vadd.f32 %v2162, %v2274
      %v2276 = vpop.f32.mrb[0].mxu0
      %v2277 = vadd.f32 %v2164, %v2276
      %v2278 = vpop.f32.mrb[0].mxu0
      %v2279 = vadd.f32 %v2166, %v2278
      %v2280 = vpop.f32.mrb[0].mxu0
      %v2281 = vadd.f32 %v2168, %v2280
      %2282 = vmatprep.mubr.bf16.mxu0 %v651
      %2283 = vmatmul.mubr.bf16.gmra.mrb[0].mxu0 %v650
      %v2284 = vpop.f32.mrb[0].mxu0
      %v2285 = vadd.f32 %v2172, %v2284
      %v2286 = vpop.f32.mrb[0].mxu0
      %v2287 = vadd.f32 %v2174, %v2286
      %v2288 = vpop.f32.mrb[0].mxu0
      %v2289 = vadd.f32 %v2176, %v2288
      %v2290 = vpop.f32.mrb[0].mxu0
      %v2291 = vadd.f32 %v2178, %v2290
      %2292 = vmatprep.mubr.bf16.mxu0 %v655
      %2293 = vmatmul.mubr.bf16.gmra.mrb[0].mxu0 %v654
      %v2294 = vpop.f32.mrb[0].mxu0
      %v2295 = vadd.f32 %v2182, %v2294
      %v2296 = vpop.f32.mrb[0].mxu0
      %v2297 = vadd.f32 %v2184, %v2296
      %v2298 = vpop.f32.mrb[0].mxu0
      %v2299 = vadd.f32 %v2186, %v2298
      %v2300 = vpop.f32.mrb[0].mxu0
      %v2301 = vadd.f32 %v2188, %v2300
      %2302 = vmatprep.mubr.bf16.mxu0 %v659
      %2303 = vmatmul.mubr.bf16.gmra.mrb[0].mxu0 %v658
      %v2304 = vpop.f32.mrb[0].mxu0
      %v2305 = vadd.f32 %v2192, %v2304
      %v2306 = vpop.f32.mrb[0].mxu0
      %v2307 = vadd.f32 %v2194, %v2306
      %v2308 = vpop.f32.mrb[0].mxu0
      %v2309 = vadd.f32 %v2196, %v2308
      %v2310 = vpop.f32.mrb[0].mxu0
      %v2311 = vadd.f32 %v2198, %v2310
      %2312 = vmatprep.mubr.bf16.mxu0 %v663
      %2313 = vmatmul.mubr.bf16.gmra.mrb[0].mxu0 %v662
      %v2314 = vpop.f32.mrb[0].mxu0
      %v2315 = vadd.f32 %v2202, %v2314
      %v2316 = vpop.f32.mrb[0].mxu0
      %v2317 = vadd.f32 %v2204, %v2316
      %v2318 = vpop.f32.mrb[0].mxu0
      %v2319 = vadd.f32 %v2206, %v2318
      %v2320 = vpop.f32.mrb[0].mxu0
      %v2321 = vadd.f32 %v2208, %v2320
      %2322 = vmatprep.mubr.bf16.mxu0 %v667
      %2323 = vmatmul.mubr.bf16.gmra.mrb[0].mxu0 %v666
      %v2324 = vpop.f32.mrb[0].mxu0
      %v2325 = vadd.f32 %v2212, %v2324
      %v2326 = vpop.f32.mrb[0].mxu0
      %v2327 = vadd.f32 %v2214, %v2326
      %v2328 = vpop.f32.mrb[0].mxu0
      %v2329 = vadd.f32 %v2216, %v2328
      %v2330 = vpop.f32.mrb[0].mxu0
      %v2331 = vadd.f32 %v2218, %v2330
      %2332 = vmatprep.mubr.bf16.mxu0 %v671
      %2333 = vmatmul.mubr.bf16.gmra.mrb[0].mxu0 %v670
      %v2334 = vpop.f32.mrb[0].mxu0
      %v2335 = vadd.f32 %v2222, %v2334
      %v2336 = vpop.f32.mrb[0].mxu0
      %v2337 = vadd.f32 %v2224, %v2336
      %v2338 = vpop.f32.mrb[0].mxu0
      %v2339 = vadd.f32 %v2226, %v2338
      %v2340 = vpop.f32.mrb[0].mxu0
      %v2341 = vadd.f32 %v2228, %v2340
      %2342 = vdwg.mxu0
      %2343 = vmatprep.subr.bf16.mxu0 %v1672
      %2344 = vmatpush1.bf16.msra.mxu0 %v1671
      %2345 = vmatprep.subr.bf16.mxu0 %v1679
      %2346 = vmatpush1.bf16.msra.mxu0 %v1678
      %2347 = vmatprep.subr.bf16.mxu0 %v1686
      %2348 = vmatpush1.bf16.msra.mxu0 %v1685
      %2349 = vmatprep.subr.bf16.mxu0 %v1693
      %2350 = vmatpush1.bf16.msra.mxu0 %v1692
      %2351 = vmatprep.subr.bf16.mxu0 %v1700
      %2352 = vmatpush1.bf16.msra.mxu0 %v1699
      %2353 = vmatprep.subr.bf16.mxu0 %v1707
      %2354 = vmatpush1.bf16.msra.mxu0 %v1706
      %2355 = vmatprep.subr.bf16.mxu0 %v1714
      %2356 = vmatpush1.bf16.msra.mxu0 %v1713
      %2357 = vmatprep.subr.bf16.mxu0 %v1721
      %2358 = vmatpush1.bf16.msra.mxu0 %v1720
      %2359 = vmatprep.subr.bf16.mxu0 %v1728
      %2360 = vmatpush1.bf16.msra.mxu0 %v1727
      %2361 = vmatprep.subr.bf16.mxu0 %v1735
      %2362 = vmatpush1.bf16.msra.mxu0 %v1734
      %2363 = vmatprep.subr.bf16.mxu0 %v1742
      %2364 = vmatpush1.bf16.msra.mxu0 %v1741
      %2365 = vmatprep.subr.bf16.mxu0 %v1749
      %2366 = vmatpush1.bf16.msra.mxu0 %v1748
      %2367 = vmatprep.subr.bf16.mxu0 %v1756
      %2368 = vmatpush1.bf16.msra.mxu0 %v1755
      %2369 = vmatprep.subr.bf16.mxu0 %v1763
      %2370 = vmatpush1.bf16.msra.mxu0 %v1762
      %2371 = vmatprep.subr.bf16.mxu0 %v1770
      %2372 = vmatpush1.bf16.msra.mxu0 %v1769
      %2373 = vmatprep.subr.bf16.mxu0 %v1777
      %2374 = vmatpush1.bf16.msra.mxu0 %v1776
      %2375 = vmatprep.mubr.bf16.mxu0 %v641
      %2376 = vmatmul.mubr.bf16.gmra.mrb[0].mxu0 %v640
      %v2377 = vpop.f32.mrb[0].mxu0
      %v2378 = vadd.f32 %v941, %v2377
      %v2379 = vpop.f32.mrb[0].mxu0
      %v2380 = vadd.f32 %v945, %v2379
      %v2381 = vpop.f32.mrb[0].mxu0
      %v2382 = vadd.f32 %v941, %v2381
      %v2383 = vpop.f32.mrb[0].mxu0
      %v2384 = vadd.f32 %v945, %v2383
      %2385 = vmatprep.mubr.bf16.mxu0 %v645
      %2386 = vmatmul.mubr.bf16.gmra.mrb[0].mxu0 %v644
      %v2387 = vpop.f32.mrb[0].mxu0
      %v2388 = vadd.f32 %v941, %v2387
      %v2389 = vpop.f32.mrb[0].mxu0
      %v2390 = vadd.f32 %v945, %v2389
      %v2391 = vpop.f32.mrb[0].mxu0
      %v2392 = vadd.f32 %v941, %v2391
      %v2393 = vpop.f32.mrb[0].mxu0
      %v2394 = vadd.f32 %v945, %v2393
      %2395 = vmatprep.mubr.bf16.mxu0 %v649
      %2396 = vmatmul.mubr.bf16.gmra.mrb[0].mxu0 %v648
      %v2397 = vpop.f32.mrb[0].mxu0
      %v2398 = vadd.f32 %v941, %v2397
      %v2399 = vpop.f32.mrb[0].mxu0
      %v2400 = vadd.f32 %v945, %v2399
      %v2401 = vpop.f32.mrb[0].mxu0
      %v2402 = vadd.f32 %v941, %v2401
      %v2403 = vpop.f32.mrb[0].mxu0
      %v2404 = vadd.f32 %v945, %v2403
      %2405 = vmatprep.mubr.bf16.mxu0 %v653
      %2406 = vmatmul.mubr.bf16.gmra.mrb[0].mxu0 %v652
      %v2407 = vpop.f32.mrb[0].mxu0
      %v2408 = vadd.f32 %v941, %v2407
      %v2409 = vpop.f32.mrb[0].mxu0
      %v2410 = vadd.f32 %v945, %v2409
      %v2411 = vpop.f32.mrb[0].mxu0
      %v2412 = vadd.f32 %v941, %v2411
      %v2413 = vpop.f32.mrb[0].mxu0
      %v2414 = vadd.f32 %v945, %v2413
      %2415 = vmatprep.mubr.bf16.mxu0 %v657
      %2416 = vmatmul.mubr.bf16.gmra.mrb[0].mxu0 %v656
      %v2417 = vpop.f32.mrb[0].mxu0
      %v2418 = vadd.f32 %v941, %v2417
      %v2419 = vpop.f32.mrb[0].mxu0
      %v2420 = vadd.f32 %v945, %v2419
      %v2421 = vpop.f32.mrb[0].mxu0
      %v2422 = vadd.f32 %v941, %v2421
      %v2423 = vpop.f32.mrb[0].mxu0
      %v2424 = vadd.f32 %v945, %v2423
      %2425 = vmatprep.mubr.bf16.mxu0 %v661
      %2426 = vmatmul.mubr.bf16.gmra.mrb[0].mxu0 %v660
      %v2427 = vpop.f32.mrb[0].mxu0
      %v2428 = vadd.f32 %v941, %v2427
      %v2429 = vpop.f32.mrb[0].mxu0
      %v2430 = vadd.f32 %v945, %v2429
      %v2431 = vpop.f32.mrb[0].mxu0
      %v2432 = vadd.f32 %v941, %v2431
      %v2433 = vpop.f32.mrb[0].mxu0
      %v2434 = vadd.f32 %v945, %v2433
      %2435 = vmatprep.mubr.bf16.mxu0 %v665
      %2436 = vmatmul.mubr.bf16.gmra.mrb[0].mxu0 %v664
      %v2437 = vpop.f32.mrb[0].mxu0
      %v2438 = vadd.f32 %v941, %v2437
      %v2439 = vpop.f32.mrb[0].mxu0
      %v2440 = vadd.f32 %v945, %v2439
      %v2441 = vpop.f32.mrb[0].mxu0
      %v2442 = vadd.f32 %v941, %v2441
      %v2443 = vpop.f32.mrb[0].mxu0
      %v2444 = vadd.f32 %v945, %v2443
      %2445 = vmatprep.mubr.bf16.mxu0 %v669
      %2446 = vmatmul.mubr.bf16.gmra.mrb[0].mxu0 %v668
      %v2447 = vpop.f32.mrb[0].mxu0
      %v2448 = vadd.f32 %v941, %v2447
      %v2449 = vpop.f32.mrb[0].mxu0
      %v2450 = vadd.f32 %v945, %v2449
      %v2451 = vpop.f32.mrb[0].mxu0
      %v2452 = vadd.f32 %v941, %v2451
      %v2453 = vpop.f32.mrb[0].mxu0
      %v2454 = vadd.f32 %v945, %v2453
      %2455 = vdwg.mxu0
      %2456 = vmatprep.subr.bf16.mxu0 %v1784
      %2457 = vmatpush1.bf16.msra.mxu0 %v1783
      %2458 = vmatprep.subr.bf16.mxu0 %v1791
      %2459 = vmatpush1.bf16.msra.mxu0 %v1790
      %2460 = vmatprep.subr.bf16.mxu0 %v1798
      %2461 = vmatpush1.bf16.msra.mxu0 %v1797
      %2462 = vmatprep.subr.bf16.mxu0 %v1805
      %2463 = vmatpush1.bf16.msra.mxu0 %v1804
      %2464 = vmatprep.subr.bf16.mxu0 %v1812
      %2465 = vmatpush1.bf16.msra.mxu0 %v1811
      %2466 = vmatprep.subr.bf16.mxu0 %v1819
      %2467 = vmatpush1.bf16.msra.mxu0 %v1818
      %2468 = vmatprep.subr.bf16.mxu0 %v1826
      %2469 = vmatpush1.bf16.msra.mxu0 %v1825
      %2470 = vmatprep.subr.bf16.mxu0 %v1833
      %2471 = vmatpush1.bf16.msra.mxu0 %v1832
      %2472 = vmatprep.subr.bf16.mxu0 %v1840
      %2473 = vmatpush1.bf16.msra.mxu0 %v1839
      %2474 = vmatprep.subr.bf16.mxu0 %v1847
      %2475 = vmatpush1.bf16.msra.mxu0 %v1846
      %2476 = vmatprep.subr.bf16.mxu0 %v1854
      %2477 = vmatpush1.bf16.msra.mxu0 %v1853
      %2478 = vmatprep.subr.bf16.mxu0 %v1861
      %2479 = vmatpush1.bf16.msra.mxu0 %v1860
      %2480 = vmatprep.subr.bf16.mxu0 %v1868
      %2481 = vmatpush1.bf16.msra.mxu0 %v1867
      %2482 = vmatprep.subr.bf16.mxu0 %v1875
      %2483 = vmatpush1.bf16.msra.mxu0 %v1874
      %2484 = vmatprep.subr.bf16.mxu0 %v1882
      %2485 = vmatpush1.bf16.msra.mxu0 %v1881
      %2486 = vmatprep.subr.bf16.mxu0 %v1889
      %2487 = vmatpush1.bf16.msra.mxu0 %v1888
      %2488 = vmatprep.mubr.bf16.mxu0 %v643
      %2489 = vmatmul.mubr.bf16.gmra.mrb[0].mxu0 %v642
      %v2490 = vpop.f32.mrb[0].mxu0
      %v2491 = vadd.f32 %v2378, %v2490
      %v2492 = vpop.f32.mrb[0].mxu0
      %v2493 = vadd.f32 %v2380, %v2492
      %v2494 = vpop.f32.mrb[0].mxu0
      %v2495 = vadd.f32 %v2382, %v2494
      %v2496 = vpop.f32.mrb[0].mxu0
      %v2497 = vadd.f32 %v2384, %v2496
      %2498 = vmatprep.mubr.bf16.mxu0 %v647
      %2499 = vmatmul.mubr.bf16.gmra.mrb[0].mxu0 %v646
      %v2500 = vpop.f32.mrb[0].mxu0
      %v2501 = vadd.f32 %v2388, %v2500
      %v2502 = vpop.f32.mrb[0].mxu0
      %v2503 = vadd.f32 %v2390, %v2502
      %v2504 = vpop.f32.mrb[0].mxu0
      %v2505 = vadd.f32 %v2392, %v2504
      %v2506 = vpop.f32.mrb[0].mxu0
      %v2507 = vadd.f32 %v2394, %v2506
      %2508 = vmatprep.mubr.bf16.mxu0 %v651
      %2509 = vmatmul.mubr.bf16.gmra.mrb[0].mxu0 %v650
      %v2510 = vpop.f32.mrb[0].mxu0
      %v2511 = vadd.f32 %v2398, %v2510
      %v2512 = vpop.f32.mrb[0].mxu0
      %v2513 = vadd.f32 %v2400, %v2512
      %v2514 = vpop.f32.mrb[0].mxu0
      %v2515 = vadd.f32 %v2402, %v2514
      %v2516 = vpop.f32.mrb[0].mxu0
      %v2517 = vadd.f32 %v2404, %v2516
      %2518 = vmatprep.mubr.bf16.mxu0 %v655
      %2519 = vmatmul.mubr.bf16.gmra.mrb[0].mxu0 %v654
      %v2520 = vpop.f32.mrb[0].mxu0
      %v2521 = vadd.f32 %v2408, %v2520
      %v2522 = vpop.f32.mrb[0].mxu0
      %v2523 = vadd.f32 %v2410, %v2522
      %v2524 = vpop.f32.mrb[0].mxu0
      %v2525 = vadd.f32 %v2412, %v2524
      %v2526 = vpop.f32.mrb[0].mxu0
      %v2527 = vadd.f32 %v2414, %v2526
      %2528 = vmatprep.mubr.bf16.mxu0 %v659
      %2529 = vmatmul.mubr.bf16.gmra.mrb[0].mxu0 %v658
      %v2530 = vpop.f32.mrb[0].mxu0
      %v2531 = vadd.f32 %v2418, %v2530
      %v2532 = vpop.f32.mrb[0].mxu0
      %v2533 = vadd.f32 %v2420, %v2532
      %v2534 = vpop.f32.mrb[0].mxu0
      %v2535 = vadd.f32 %v2422, %v2534
      %v2536 = vpop.f32.mrb[0].mxu0
      %v2537 = vadd.f32 %v2424, %v2536
      %2538 = vmatprep.mubr.bf16.mxu0 %v663
      %2539 = vmatmul.mubr.bf16.gmra.mrb[0].mxu0 %v662
      %v2540 = vpop.f32.mrb[0].mxu0
      %v2541 = vadd.f32 %v2428, %v2540
      %v2542 = vpop.f32.mrb[0].mxu0
      %v2543 = vadd.f32 %v2430, %v2542
      %v2544 = vpop.f32.mrb[0].mxu0
      %v2545 = vadd.f32 %v2432, %v2544
      %v2546 = vpop.f32.mrb[0].mxu0
      %v2547 = vadd.f32 %v2434, %v2546
      %2548 = vmatprep.mubr.bf16.mxu0 %v667
      %2549 = vmatmul.mubr.bf16.gmra.mrb[0].mxu0 %v666
      %v2550 = vpop.f32.mrb[0].mxu0
      %v2551 = vadd.f32 %v2438, %v2550
      %v2552 = vpop.f32.mrb[0].mxu0
      %v2553 = vadd.f32 %v2440, %v2552
      %v2554 = vpop.f32.mrb[0].mxu0
      %v2555 = vadd.f32 %v2442, %v2554
      %v2556 = vpop.f32.mrb[0].mxu0
      %v2557 = vadd.f32 %v2444, %v2556
      %2558 = vmatprep.mubr.bf16.mxu0 %v671
      %2559 = vmatmul.mubr.bf16.gmra.mrb[0].mxu0 %v670
      %v2560 = vpop.f32.mrb[0].mxu0
      %v2561 = vadd.f32 %v2448, %v2560
      %v2562 = vpop.f32.mrb[0].mxu0
      %v2563 = vadd.f32 %v2450, %v2562
      %v2564 = vpop.f32.mrb[0].mxu0
      %v2565 = vadd.f32 %v2452, %v2564
      %v2566 = vpop.f32.mrb[0].mxu0
      %v2567 = vadd.f32 %v2454, %v2566
      %2568 = vdwg.mxu0
      %2569 = vmatprep.subr.bf16.mxu0 %v1674
      %2570 = vmatpush1.bf16.msra.mxu0 %v1673
      %2571 = vmatprep.subr.bf16.mxu0 %v1681
      %2572 = vmatpush1.bf16.msra.mxu0 %v1680
      %2573 = vmatprep.subr.bf16.mxu0 %v1688
      %2574 = vmatpush1.bf16.msra.mxu0 %v1687
      %2575 = vmatprep.subr.bf16.mxu0 %v1695
      %2576 = vmatpush1.bf16.msra.mxu0 %v1694
      %2577 = vmatprep.subr.bf16.mxu0 %v1702
      %2578 = vmatpush1.bf16.msra.mxu0 %v1701
      %2579 = vmatprep.subr.bf16.mxu0 %v1709
      %2580 = vmatpush1.bf16.msra.mxu0 %v1708
      %2581 = vmatprep.subr.bf16.mxu0 %v1716
      %2582 = vmatpush1.bf16.msra.mxu0 %v1715
      %2583 = vmatprep.subr.bf16.mxu0 %v1723
      %2584 = vmatpush1.bf16.msra.mxu0 %v1722
      %2585 = vmatprep.subr.bf16.mxu0 %v1730
      %2586 = vmatpush1.bf16.msra.mxu0 %v1729
      %2587 = vmatprep.subr.bf16.mxu0 %v1737
      %2588 = vmatpush1.bf16.msra.mxu0 %v1736
      %2589 = vmatprep.subr.bf16.mxu0 %v1744
      %2590 = vmatpush1.bf16.msra.mxu0 %v1743
      %2591 = vmatprep.subr.bf16.mxu0 %v1751
      %2592 = vmatpush1.bf16.msra.mxu0 %v1750
      %2593 = vmatprep.subr.bf16.mxu0 %v1758
      %2594 = vmatpush1.bf16.msra.mxu0 %v1757
      %2595 = vmatprep.subr.bf16.mxu0 %v1765
      %2596 = vmatpush1.bf16.msra.mxu0 %v1764
      %2597 = vmatprep.subr.bf16.mxu0 %v1772
      %2598 = vmatpush1.bf16.msra.mxu0 %v1771
      %2599 = vmatprep.subr.bf16.mxu0 %v1779
      %2600 = vmatpush1.bf16.msra.mxu0 %v1778
      %2601 = vmatprep.mubr.bf16.mxu0 %v641
      %2602 = vmatmul.mubr.bf16.gmra.mrb[0].mxu0 %v640
      %v2603 = vpop.f32.mrb[0].mxu0
      %v2604 = vadd.f32 %v949, %v2603
      %v2605 = vpop.f32.mrb[0].mxu0
      %v2606 = vadd.f32 %v953, %v2605
      %v2607 = vpop.f32.mrb[0].mxu0
      %v2608 = vadd.f32 %v949, %v2607
      %v2609 = vpop.f32.mrb[0].mxu0
      %v2610 = vadd.f32 %v953, %v2609
      %2611 = vmatprep.mubr.bf16.mxu0 %v645
      %2612 = vmatmul.mubr.bf16.gmra.mrb[0].mxu0 %v644
      %v2613 = vpop.f32.mrb[0].mxu0
      %v2614 = vadd.f32 %v949, %v2613
      %v2615 = vpop.f32.mrb[0].mxu0
      %v2616 = vadd.f32 %v953, %v2615
      %v2617 = vpop.f32.mrb[0].mxu0
      %v2618 = vadd.f32 %v949, %v2617
      %v2619 = vpop.f32.mrb[0].mxu0
      %v2620 = vadd.f32 %v953, %v2619
      %2621 = vmatprep.mubr.bf16.mxu0 %v649
      %2622 = vmatmul.mubr.bf16.gmra.mrb[0].mxu0 %v648
      %v2623 = vpop.f32.mrb[0].mxu0
      %v2624 = vadd.f32 %v949, %v2623
      %v2625 = vpop.f32.mrb[0].mxu0
      %v2626 = vadd.f32 %v953, %v2625
      %v2627 = vpop.f32.mrb[0].mxu0
      %v2628 = vadd.f32 %v949, %v2627
      %v2629 = vpop.f32.mrb[0].mxu0
      %v2630 = vadd.f32 %v953, %v2629
      %2631 = vmatprep.mubr.bf16.mxu0 %v653
      %2632 = vmatmul.mubr.bf16.gmra.mrb[0].mxu0 %v652
      %v2633 = vpop.f32.mrb[0].mxu0
      %v2634 = vadd.f32 %v949, %v2633
      %v2635 = vpop.f32.mrb[0].mxu0
      %v2636 = vadd.f32 %v953, %v2635
      %v2637 = vpop.f32.mrb[0].mxu0
      %v2638 = vadd.f32 %v949, %v2637
      %v2639 = vpop.f32.mrb[0].mxu0
      %v2640 = vadd.f32 %v953, %v2639
      %2641 = vmatprep.mubr.bf16.mxu0 %v657
      %2642 = vmatmul.mubr.bf16.gmra.mrb[0].mxu0 %v656
      %v2643 = vpop.f32.mrb[0].mxu0
      %v2644 = vadd.f32 %v949, %v2643
      %v2645 = vpop.f32.mrb[0].mxu0
      %v2646 = vadd.f32 %v953, %v2645
      %v2647 = vpop.f32.mrb[0].mxu0
      %v2648 = vadd.f32 %v949, %v2647
      %v2649 = vpop.f32.mrb[0].mxu0
      %v2650 = vadd.f32 %v953, %v2649
      %2651 = vmatprep.mubr.bf16.mxu0 %v661
      %2652 = vmatmul.mubr.bf16.gmra.mrb[0].mxu0 %v660
      %v2653 = vpop.f32.mrb[0].mxu0
      %v2654 = vadd.f32 %v949, %v2653
      %v2655 = vpop.f32.mrb[0].mxu0
      %v2656 = vadd.f32 %v953, %v2655
      %v2657 = vpop.f32.mrb[0].mxu0
      %v2658 = vadd.f32 %v949, %v2657
      %v2659 = vpop.f32.mrb[0].mxu0
      %v2660 = vadd.f32 %v953, %v2659
      %2661 = vmatprep.mubr.bf16.mxu0 %v665
      %2662 = vmatmul.mubr.bf16.gmra.mrb[0].mxu0 %v664
      %v2663 = vpop.f32.mrb[0].mxu0
      %v2664 = vadd.f32 %v949, %v2663
      %v2665 = vpop.f32.mrb[0].mxu0
      %v2666 = vadd.f32 %v953, %v2665
      %v2667 = vpop.f32.mrb[0].mxu0
      %v2668 = vadd.f32 %v949, %v2667
      %v2669 = vpop.f32.mrb[0].mxu0
      %v2670 = vadd.f32 %v953, %v2669
      %2671 = vmatprep.mubr.bf16.mxu0 %v669
      %2672 = vmatmul.mubr.bf16.gmra.mrb[0].mxu0 %v668
      %v2673 = vpop.f32.mrb[0].mxu0
      %v2674 = vadd.f32 %v949, %v2673
      %v2675 = vpop.f32.mrb[0].mxu0
      %v2676 = vadd.f32 %v953, %v2675
      %v2677 = vpop.f32.mrb[0].mxu0
      %v2678 = vadd.f32 %v949, %v2677
      %v2679 = vpop.f32.mrb[0].mxu0
      %v2680 = vadd.f32 %v953, %v2679
      %2681 = vdwg.mxu0
      %2682 = vmatprep.subr.bf16.mxu0 %v1786
      %2683 = vmatpush1.bf16.msra.mxu0 %v1785
      %2684 = vmatprep.subr.bf16.mxu0 %v1793
      %2685 = vmatpush1.bf16.msra.mxu0 %v1792
      %2686 = vmatprep.subr.bf16.mxu0 %v1800
      %2687 = vmatpush1.bf16.msra.mxu0 %v1799
      %2688 = vmatprep.subr.bf16.mxu0 %v1807
      %2689 = vmatpush1.bf16.msra.mxu0 %v1806
      %2690 = vmatprep.subr.bf16.mxu0 %v1814
      %2691 = vmatpush1.bf16.msra.mxu0 %v1813
      %2692 = vmatprep.subr.bf16.mxu0 %v1821
      %2693 = vmatpush1.bf16.msra.mxu0 %v1820
      %2694 = vmatprep.subr.bf16.mxu0 %v1828
      %2695 = vmatpush1.bf16.msra.mxu0 %v1827
      %2696 = vmatprep.subr.bf16.mxu0 %v1835
      %2697 = vmatpush1.bf16.msra.mxu0 %v1834
      %2698 = vmatprep.subr.bf16.mxu0 %v1842
      %2699 = vmatpush1.bf16.msra.mxu0 %v1841
      %2700 = vmatprep.subr.bf16.mxu0 %v1849
      %2701 = vmatpush1.bf16.msra.mxu0 %v1848
      %2702 = vmatprep.subr.bf16.mxu0 %v1856
      %2703 = vmatpush1.bf16.msra.mxu0 %v1855
      %2704 = vmatprep.subr.bf16.mxu0 %v1863
      %2705 = vmatpush1.bf16.msra.mxu0 %v1862
      %2706 = vmatprep.subr.bf16.mxu0 %v1870
      %2707 = vmatpush1.bf16.msra.mxu0 %v1869
      %2708 = vmatprep.subr.bf16.mxu0 %v1877
      %2709 = vmatpush1.bf16.msra.mxu0 %v1876
      %2710 = vmatprep.subr.bf16.mxu0 %v1884
      %2711 = vmatpush1.bf16.msra.mxu0 %v1883
      %2712 = vmatprep.subr.bf16.mxu0 %v1891
      %2713 = vmatpush1.bf16.msra.mxu0 %v1890
      %2714 = vmatprep.mubr.bf16.mxu0 %v643
      %2715 = vmatmul.mubr.bf16.gmra.mrb[0].mxu0 %v642
      %v2716 = vpop.f32.mrb[0].mxu0
      %v2717 = vadd.f32 %v2604, %v2716
      %v2718 = vpop.f32.mrb[0].mxu0
      %v2719 = vadd.f32 %v2606, %v2718
      %v2720 = vpop.f32.mrb[0].mxu0
      %v2721 = vadd.f32 %v2608, %v2720
      %v2722 = vpop.f32.mrb[0].mxu0
      %v2723 = vadd.f32 %v2610, %v2722
      %2724 = vmatprep.mubr.bf16.mxu0 %v647
      %2725 = vmatmul.mubr.bf16.gmra.mrb[0].mxu0 %v646
      %v2726 = vpop.f32.mrb[0].mxu0
      %v2727 = vadd.f32 %v2614, %v2726
      %v2728 = vpop.f32.mrb[0].mxu0
      %v2729 = vadd.f32 %v2616, %v2728
      %v2730 = vpop.f32.mrb[0].mxu0
      %v2731 = vadd.f32 %v2618, %v2730
      %v2732 = vpop.f32.mrb[0].mxu0
      %v2733 = vadd.f32 %v2620, %v2732
      %2734 = vmatprep.mubr.bf16.mxu0 %v651
      %2735 = vmatmul.mubr.bf16.gmra.mrb[0].mxu0 %v650
      %v2736 = vpop.f32.mrb[0].mxu0
      %v2737 = vadd.f32 %v2624, %v2736
      %v2738 = vpop.f32.mrb[0].mxu0
      %v2739 = vadd.f32 %v2626, %v2738
      %v2740 = vpop.f32.mrb[0].mxu0
      %v2741 = vadd.f32 %v2628, %v2740
      %v2742 = vpop.f32.mrb[0].mxu0
      %v2743 = vadd.f32 %v2630, %v2742
      %2744 = vmatprep.mubr.bf16.mxu0 %v655
      %2745 = vmatmul.mubr.bf16.gmra.mrb[0].mxu0 %v654
      %v2746 = vpop.f32.mrb[0].mxu0
      %v2747 = vadd.f32 %v2634, %v2746
      %v2748 = vpop.f32.mrb[0].mxu0
      %v2749 = vadd.f32 %v2636, %v2748
      %v2750 = vpop.f32.mrb[0].mxu0
      %v2751 = vadd.f32 %v2638, %v2750
      %v2752 = vpop.f32.mrb[0].mxu0
      %v2753 = vadd.f32 %v2640, %v2752
      %2754 = vmatprep.mubr.bf16.mxu0 %v659
      %2755 = vmatmul.mubr.bf16.gmra.mrb[0].mxu0 %v658
      %v2756 = vpop.f32.mrb[0].mxu0
      %v2757 = vadd.f32 %v2644, %v2756
      %v2758 = vpop.f32.mrb[0].mxu0
      %v2759 = vadd.f32 %v2646, %v2758
      %v2760 = vpop.f32.mrb[0].mxu0
      %v2761 = vadd.f32 %v2648, %v2760
      %v2762 = vpop.f32.mrb[0].mxu0
      %v2763 = vadd.f32 %v2650, %v2762
      %2764 = vmatprep.mubr.bf16.mxu0 %v663
      %2765 = vmatmul.mubr.bf16.gmra.mrb[0].mxu0 %v662
      %v2766 = vpop.f32.mrb[0].mxu0
      %v2767 = vadd.f32 %v2654, %v2766
      %v2768 = vpop.f32.mrb[0].mxu0
      %v2769 = vadd.f32 %v2656, %v2768
      %v2770 = vpop.f32.mrb[0].mxu0
      %v2771 = vadd.f32 %v2658, %v2770
      %v2772 = vpop.f32.mrb[0].mxu0
      %v2773 = vadd.f32 %v2660, %v2772
      %2774 = vmatprep.mubr.bf16.mxu0 %v667
      %2775 = vmatmul.mubr.bf16.gmra.mrb[0].mxu0 %v666
      %v2776 = vpop.f32.mrb[0].mxu0
      %v2777 = vadd.f32 %v2664, %v2776
      %v2778 = vpop.f32.mrb[0].mxu0
      %v2779 = vadd.f32 %v2666, %v2778
      %v2780 = vpop.f32.mrb[0].mxu0
      %v2781 = vadd.f32 %v2668, %v2780
      %v2782 = vpop.f32.mrb[0].mxu0
      %v2783 = vadd.f32 %v2670, %v2782
      %2784 = vmatprep.mubr.bf16.mxu0 %v671
      %2785 = vmatmul.mubr.bf16.gmra.mrb[0].mxu0 %v670
      %v2786 = vpop.f32.mrb[0].mxu0
      %v2787 = vadd.f32 %v2674, %v2786
      %v2788 = vpop.f32.mrb[0].mxu0
      %v2789 = vadd.f32 %v2676, %v2788
      %v2790 = vpop.f32.mrb[0].mxu0
      %v2791 = vadd.f32 %v2678, %v2790
      %v2792 = vpop.f32.mrb[0].mxu0
      %v2793 = vadd.f32 %v2680, %v2792
      %2794 = vdwg.mxu0
      %2795 = vmatprep.subr.bf16.mxu0 0
      %2796 = vmatpush1.bf16.msra.mxu0 %v1675
      %2797 = vmatprep.subr.bf16.mxu0 0
      %2798 = vmatpush1.bf16.msra.mxu0 %v1682
      %2799 = vmatprep.subr.bf16.mxu0 0
      %2800 = vmatpush1.bf16.msra.mxu0 %v1689
      %2801 = vmatprep.subr.bf16.mxu0 0
      %2802 = vmatpush1.bf16.msra.mxu0 %v1696
      %2803 = vmatprep.subr.bf16.mxu0 0
      %2804 = vmatpush1.bf16.msra.mxu0 %v1703
      %2805 = vmatprep.subr.bf16.mxu0 0
      %2806 = vmatpush1.bf16.msra.mxu0 %v1710
      %2807 = vmatprep.subr.bf16.mxu0 0
      %2808 = vmatpush1.bf16.msra.mxu0 %v1717
      %2809 = vmatprep.subr.bf16.mxu0 0
      %2810 = vmatpush1.bf16.msra.mxu0 %v1724
      %2811 = vmatprep.subr.bf16.mxu0 0
      %2812 = vmatpush1.bf16.msra.mxu0 %v1731
      %2813 = vmatprep.subr.bf16.mxu0 0
      %2814 = vmatpush1.bf16.msra.mxu0 %v1738
      %2815 = vmatprep.subr.bf16.mxu0 0
      %2816 = vmatpush1.bf16.msra.mxu0 %v1745
      %2817 = vmatprep.subr.bf16.mxu0 0
      %2818 = vmatpush1.bf16.msra.mxu0 %v1752
      %2819 = vmatprep.subr.bf16.mxu0 0
      %2820 = vmatpush1.bf16.msra.mxu0 %v1759
      %2821 = vmatprep.subr.bf16.mxu0 0
      %2822 = vmatpush1.bf16.msra.mxu0 %v1766
      %2823 = vmatprep.subr.bf16.mxu0 0
      %2824 = vmatpush1.bf16.msra.mxu0 %v1773
      %2825 = vmatprep.subr.bf16.mxu0 0
      %2826 = vmatpush1.bf16.msra.mxu0 %v1780
      %2827 = vmatprep.mubr.bf16.mxu0 %v641
      %2828 = vmatmul.mubr.bf16.gmra.mrb[0].mxu0 %v640
      %v2829 = vpop.f32.mrb[0].mxu0
      %v2830 = vadd.f32 %v957, %v2829
      %v2831 = vpop.f32.mrb[0].mxu0
      %v2832 = vpop.f32.mrb[0].mxu0
      %v2833 = vadd.f32 %v957, %v2832
      %v2834 = vpop.f32.mrb[0].mxu0
      %2835 = vmatprep.mubr.bf16.mxu0 %v645
      %2836 = vmatmul.mubr.bf16.gmra.mrb[0].mxu0 %v644
      %v2837 = vpop.f32.mrb[0].mxu0
      %v2838 = vadd.f32 %v957, %v2837
      %v2839 = vpop.f32.mrb[0].mxu0
      %v2840 = vpop.f32.mrb[0].mxu0
      %v2841 = vadd.f32 %v957, %v2840
      %v2842 = vpop.f32.mrb[0].mxu0
      %2843 = vmatprep.mubr.bf16.mxu0 %v649
      %2844 = vmatmul.mubr.bf16.gmra.mrb[0].mxu0 %v648
      %v2845 = vpop.f32.mrb[0].mxu0
      %v2846 = vadd.f32 %v957, %v2845
      %v2847 = vpop.f32.mrb[0].mxu0
      %v2848 = vpop.f32.mrb[0].mxu0
      %v2849 = vadd.f32 %v957, %v2848
      %v2850 = vpop.f32.mrb[0].mxu0
      %2851 = vmatprep.mubr.bf16.mxu0 %v653
      %2852 = vmatmul.mubr.bf16.gmra.mrb[0].mxu0 %v652
      %v2853 = vpop.f32.mrb[0].mxu0
      %v2854 = vadd.f32 %v957, %v2853
      %v2855 = vpop.f32.mrb[0].mxu0
      %v2856 = vpop.f32.mrb[0].mxu0
      %v2857 = vadd.f32 %v957, %v2856
      %v2858 = vpop.f32.mrb[0].mxu0
      %2859 = vmatprep.mubr.bf16.mxu0 %v657
      %2860 = vmatmul.mubr.bf16.gmra.mrb[0].mxu0 %v656
      %v2861 = vpop.f32.mrb[0].mxu0
      %v2862 = vadd.f32 %v957, %v2861
      %v2863 = vpop.f32.mrb[0].mxu0
      %v2864 = vpop.f32.mrb[0].mxu0
      %v2865 = vadd.f32 %v957, %v2864
      %v2866 = vpop.f32.mrb[0].mxu0
      %2867 = vmatprep.mubr.bf16.mxu0 %v661
      %2868 = vmatmul.mubr.bf16.gmra.mrb[0].mxu0 %v660
      %v2869 = vpop.f32.mrb[0].mxu0
      %v2870 = vadd.f32 %v957, %v2869
      %v2871 = vpop.f32.mrb[0].mxu0
      %v2872 = vpop.f32.mrb[0].mxu0
      %v2873 = vadd.f32 %v957, %v2872
      %v2874 = vpop.f32.mrb[0].mxu0
      %2875 = vmatprep.mubr.bf16.mxu0 %v665
      %2876 = vmatmul.mubr.bf16.gmra.mrb[0].mxu0 %v664
      %v2877 = vpop.f32.mrb[0].mxu0
      %v2878 = vadd.f32 %v957, %v2877
      %v2879 = vpop.f32.mrb[0].mxu0
      %v2880 = vpop.f32.mrb[0].mxu0
      %v2881 = vadd.f32 %v957, %v2880
      %v2882 = vpop.f32.mrb[0].mxu0
      %2883 = vmatprep.mubr.bf16.mxu0 %v669
      %2884 = vmatmul.mubr.bf16.gmra.mrb[0].mxu0 %v668
      %v2885 = vpop.f32.mrb[0].mxu0
      %v2886 = vadd.f32 %v957, %v2885
      %v2887 = vpop.f32.mrb[0].mxu0
      %v2888 = vpop.f32.mrb[0].mxu0
      %v2889 = vadd.f32 %v957, %v2888
      %v2890 = vpop.f32.mrb[0].mxu0
      %2891 = vdwg.mxu0
      %2892 = vmatprep.subr.bf16.mxu0 0
      %2893 = vmatpush1.bf16.msra.mxu0 %v1787
      %2894 = vmatprep.subr.bf16.mxu0 0
      %2895 = vmatpush1.bf16.msra.mxu0 %v1794
      %2896 = vmatprep.subr.bf16.mxu0 0
      %2897 = vmatpush1.bf16.msra.mxu0 %v1801
      %2898 = vmatprep.subr.bf16.mxu0 0
      %2899 = vmatpush1.bf16.msra.mxu0 %v1808
      %2900 = vmatprep.subr.bf16.mxu0 0
      %2901 = vmatpush1.bf16.msra.mxu0 %v1815
      %2902 = vmatprep.subr.bf16.mxu0 0
      %2903 = vmatpush1.bf16.msra.mxu0 %v1822
      %2904 = vmatprep.subr.bf16.mxu0 0
      %2905 = vmatpush1.bf16.msra.mxu0 %v1829
      %2906 = vmatprep.subr.bf16.mxu0 0
      %2907 = vmatpush1.bf16.msra.mxu0 %v1836
      %2908 = vmatprep.subr.bf16.mxu0 0
      %2909 = vmatpush1.bf16.msra.mxu0 %v1843
      %2910 = vmatprep.subr.bf16.mxu0 0
      %2911 = vmatpush1.bf16.msra.mxu0 %v1850
      %2912 = vmatprep.subr.bf16.mxu0 0
      %2913 = vmatpush1.bf16.msra.mxu0 %v1857
      %2914 = vmatprep.subr.bf16.mxu0 0
      %2915 = vmatpush1.bf16.msra.mxu0 %v1864
      %2916 = vmatprep.subr.bf16.mxu0 0
      %2917 = vmatpush1.bf16.msra.mxu0 %v1871
      %2918 = vmatprep.subr.bf16.mxu0 0
      %2919 = vmatpush1.bf16.msra.mxu0 %v1878
      %2920 = vmatprep.subr.bf16.mxu0 0
      %2921 = vmatpush1.bf16.msra.mxu0 %v1885
      %2922 = vmatprep.subr.bf16.mxu0 0
      %2923 = vmatpush1.bf16.msra.mxu0 %v1892
      %2924 = vmatprep.mubr.bf16.mxu0 %v643
      %2925 = vmatmul.mubr.bf16.gmra.mrb[0].mxu0 %v642
      %v2926 = vpop.f32.mrb[0].mxu0
      %v2927 = vadd.f32 %v2830, %v2926
      %v2928 = vpop.f32.mrb[0].mxu0
      %v2929 = vpop.f32.mrb[0].mxu0
      %v2930 = vadd.f32 %v2833, %v2929
      %v2931 = vpop.f32.mrb[0].mxu0
      %2932 = vmatprep.mubr.bf16.mxu0 %v647
      %2933 = vmatmul.mubr.bf16.gmra.mrb[0].mxu0 %v646
      %v2934 = vpop.f32.mrb[0].mxu0
      %v2935 = vadd.f32 %v2838, %v2934
      %v2936 = vpop.f32.mrb[0].mxu0
      %v2937 = vpop.f32.mrb[0].mxu0
      %v2938 = vadd.f32 %v2841, %v2937
      %v2939 = vpop.f32.mrb[0].mxu0
      %2940 = vmatprep.mubr.bf16.mxu0 %v651
      %2941 = vmatmul.mubr.bf16.gmra.mrb[0].mxu0 %v650
      %v2942 = vpop.f32.mrb[0].mxu0
      %v2943 = vadd.f32 %v2846, %v2942
      %v2944 = vpop.f32.mrb[0].mxu0
      %v2945 = vpop.f32.mrb[0].mxu0
      %v2946 = vadd.f32 %v2849, %v2945
      %v2947 = vpop.f32.mrb[0].mxu0
      %2948 = vmatprep.mubr.bf16.mxu0 %v655
      %2949 = vmatmul.mubr.bf16.gmra.mrb[0].mxu0 %v654
      %v2950 = vpop.f32.mrb[0].mxu0
      %v2951 = vadd.f32 %v2854, %v2950
      %v2952 = vpop.f32.mrb[0].mxu0
      %v2953 = vpop.f32.mrb[0].mxu0
      %v2954 = vadd.f32 %v2857, %v2953
      %v2955 = vpop.f32.mrb[0].mxu0
      %2956 = vmatprep.mubr.bf16.mxu0 %v659
      %2957 = vmatmul.mubr.bf16.gmra.mrb[0].mxu0 %v658
      %v2958 = vpop.f32.mrb[0].mxu0
      %v2959 = vadd.f32 %v2862, %v2958
      %v2960 = vpop.f32.mrb[0].mxu0
      %v2961 = vpop.f32.mrb[0].mxu0
      %v2962 = vadd.f32 %v2865, %v2961
      %v2963 = vpop.f32.mrb[0].mxu0
      %2964 = vmatprep.mubr.bf16.mxu0 %v663
      %2965 = vmatmul.mubr.bf16.gmra.mrb[0].mxu0 %v662
      %v2966 = vpop.f32.mrb[0].mxu0
      %v2967 = vadd.f32 %v2870, %v2966
      %v2968 = vpop.f32.mrb[0].mxu0
      %v2969 = vpop.f32.mrb[0].mxu0
      %v2970 = vadd.f32 %v2873, %v2969
      %v2971 = vpop.f32.mrb[0].mxu0
      %2972 = vmatprep.mubr.bf16.mxu0 %v667
      %2973 = vmatmul.mubr.bf16.gmra.mrb[0].mxu0 %v666
      %v2974 = vpop.f32.mrb[0].mxu0
      %v2975 = vadd.f32 %v2878, %v2974
      %v2976 = vpop.f32.mrb[0].mxu0
      %v2977 = vpop.f32.mrb[0].mxu0
      %v2978 = vadd.f32 %v2881, %v2977
      %v2979 = vpop.f32.mrb[0].mxu0
      %2980 = vmatprep.mubr.bf16.mxu0 %v671
      %2981 = vmatmul.mubr.bf16.gmra.mrb[0].mxu0 %v670
      %v2982 = vpop.f32.mrb[0].mxu0
      %v2983 = vadd.f32 %v2886, %v2982
      %v2984 = vpop.f32.mrb[0].mxu0
      %v2985 = vpop.f32.mrb[0].mxu0
      %v2986 = vadd.f32 %v2889, %v2985
      %v2987 = vpop.f32.mrb[0].mxu0
      %2988 = vdwg.mxu0
      %v2989 = vsub.f32 0.0, %v2265
      %v2990 = vsub.f32 0.0, %v2267
      %v2991 = vsub.f32 0.0, %v2491
      %v2992 = vsub.f32 0.0, %v2493
      %v2993 = vsub.f32 0.0, %v2717
      %v2994 = vsub.f32 0.0, %v2719
      %v2995 = vsub.f32 0.0, %v2927
      %v2996 = vsub.f32 0.0, %v2269
      %v2997 = vsub.f32 0.0, %v2271
      %v2998 = vsub.f32 0.0, %v2495
      %v2999 = vsub.f32 0.0, %v2497
      %v3000 = vsub.f32 0.0, %v2721
      %v3001 = vsub.f32 0.0, %v2723
      %v3002 = vsub.f32 0.0, %v2930
      %v3003 = vsub.f32 0.0, %v2275
      %v3004 = vsub.f32 0.0, %v2277
      %v3005 = vsub.f32 0.0, %v2501
      %v3006 = vsub.f32 0.0, %v2503
      %v3007 = vsub.f32 0.0, %v2727
      %v3008 = vsub.f32 0.0, %v2729
      %v3009 = vsub.f32 0.0, %v2935
      %v3010 = vsub.f32 0.0, %v2279
      %v3011 = vsub.f32 0.0, %v2281
      %v3012 = vsub.f32 0.0, %v2505
      %v3013 = vsub.f32 0.0, %v2507
      %v3014 = vsub.f32 0.0, %v2731
      %v3015 = vsub.f32 0.0, %v2733
      %v3016 = vsub.f32 0.0, %v2938
      %v3017 = vsub.f32 0.0, %v2285
      %v3018 = vsub.f32 0.0, %v2287
      %v3019 = vsub.f32 0.0, %v2511
      %v3020 = vsub.f32 0.0, %v2513
      %v3021 = vsub.f32 0.0, %v2737
      %v3022 = vsub.f32 0.0, %v2739
      %v3023 = vsub.f32 0.0, %v2943
      %v3024 = vsub.f32 0.0, %v2289
      %v3025 = vsub.f32 0.0, %v2291
      %v3026 = vsub.f32 0.0, %v2515
      %v3027 = vsub.f32 0.0, %v2517
      %v3028 = vsub.f32 0.0, %v2741
      %v3029 = vsub.f32 0.0, %v2743
      %v3030 = vsub.f32 0.0, %v2946
      %v3031 = vsub.f32 0.0, %v2295
      %v3032 = vsub.f32 0.0, %v2297
      %v3033 = vsub.f32 0.0, %v2521
      %v3034 = vsub.f32 0.0, %v2523
      %v3035 = vsub.f32 0.0, %v2747
      %v3036 = vsub.f32 0.0, %v2749
      %v3037 = vsub.f32 0.0, %v2951
      %v3038 = vsub.f32 0.0, %v2299
      %v3039 = vsub.f32 0.0, %v2301
      %v3040 = vsub.f32 0.0, %v2525
      %v3041 = vsub.f32 0.0, %v2527
      %v3042 = vsub.f32 0.0, %v2751
      %v3043 = vsub.f32 0.0, %v2753
      %v3044 = vsub.f32 0.0, %v2954
      %v3045 = vsub.f32 0.0, %v2305
      %v3046 = vsub.f32 0.0, %v2307
      %v3047 = vsub.f32 0.0, %v2531
      %v3048 = vsub.f32 0.0, %v2533
      %v3049 = vsub.f32 0.0, %v2757
      %v3050 = vsub.f32 0.0, %v2759
      %v3051 = vsub.f32 0.0, %v2959
      %v3052 = vsub.f32 0.0, %v2309
      %v3053 = vsub.f32 0.0, %v2311
      %v3054 = vsub.f32 0.0, %v2535
      %v3055 = vsub.f32 0.0, %v2537
      %v3056 = vsub.f32 0.0, %v2761
      %v3057 = vsub.f32 0.0, %v2763
      %v3058 = vsub.f32 0.0, %v2962
      %v3059 = vsub.f32 0.0, %v2315
      %v3060 = vsub.f32 0.0, %v2317
      %v3061 = vsub.f32 0.0, %v2541
      %v3062 = vsub.f32 0.0, %v2543
      %v3063 = vsub.f32 0.0, %v2767
      %v3064 = vsub.f32 0.0, %v2769
      %v3065 = vsub.f32 0.0, %v2967
      %v3066 = vsub.f32 0.0, %v2319
      %v3067 = vsub.f32 0.0, %v2321
      %v3068 = vsub.f32 0.0, %v2545
      %v3069 = vsub.f32 0.0, %v2547
      %v3070 = vsub.f32 0.0, %v2771
      %v3071 = vsub.f32 0.0, %v2773
      %v3072 = vsub.f32 0.0, %v2970
      %v3073 = vsub.f32 0.0, %v2325
      %v3074 = vsub.f32 0.0, %v2327
      %v3075 = vsub.f32 0.0, %v2551
      %v3076 = vsub.f32 0.0, %v2553
      %v3077 = vsub.f32 0.0, %v2777
      %v3078 = vsub.f32 0.0, %v2779
      %v3079 = vsub.f32 0.0, %v2975
      %v3080 = vsub.f32 0.0, %v2329
      %v3081 = vsub.f32 0.0, %v2331
      %v3082 = vsub.f32 0.0, %v2555
      %v3083 = vsub.f32 0.0, %v2557
      %v3084 = vsub.f32 0.0, %v2781
      %v3085 = vsub.f32 0.0, %v2783
      %v3086 = vsub.f32 0.0, %v2978
      %v3087 = vsub.f32 0.0, %v2335
      %v3088 = vsub.f32 0.0, %v2337
      %v3089 = vsub.f32 0.0, %v2561
      %v3090 = vsub.f32 0.0, %v2563
      %v3091 = vsub.f32 0.0, %v2787
      %v3092 = vsub.f32 0.0, %v2789
      %v3093 = vsub.f32 0.0, %v2983
      %v3094 = vsub.f32 0.0, %v2339
      %v3095 = vsub.f32 0.0, %v2341
      %v3096 = vsub.f32 0.0, %v2565
      %v3097 = vsub.f32 0.0, %v2567
      %v3098 = vsub.f32 0.0, %v2791
      %v3099 = vsub.f32 0.0, %v2793
      %v3100 = vsub.f32 0.0, %v2986
      %v3101 = vmul.f32 %v2989, 1.442695
      %v3102 = vpow.pop %v3101
      %v3103 = vmul.f32 %v2990, 1.442695
      %v3104 = vpow.pop %v3103
      %v3105 = vmul.f32 %v2991, 1.442695
      %v3106 = vpow.pop %v3105
      %v3107 = vmul.f32 %v2992, 1.442695
      %v3108 = vpow.pop %v3107
      %v3109 = vmul.f32 %v2993, 1.442695
      %v3110 = vpow.pop %v3109
      %v3111 = vmul.f32 %v2994, 1.442695
      %v3112 = vpow.pop %v3111
      %v3113 = vmul.f32 %v2995, 1.442695
      %v3114 = vpow.pop %v3113
      %v3115 = vmul.f32 %v2996, 1.442695
      %v3116 = vpow.pop %v3115
      %v3117 = vmul.f32 %v2997, 1.442695
      %v3118 = vpow.pop %v3117
      %v3119 = vmul.f32 %v2998, 1.442695
      %v3120 = vpow.pop %v3119
      %v3121 = vmul.f32 %v2999, 1.442695
      %v3122 = vpow.pop %v3121
      %v3123 = vmul.f32 %v3000, 1.442695
      %v3124 = vpow.pop %v3123
      %v3125 = vmul.f32 %v3001, 1.442695
      %v3126 = vpow.pop %v3125
      %v3127 = vmul.f32 %v3002, 1.442695
      %v3128 = vpow.pop %v3127
      %v3129 = vmul.f32 %v3003, 1.442695
      %v3130 = vpow.pop %v3129
      %v3131 = vmul.f32 %v3004, 1.442695
      %v3132 = vpow.pop %v3131
      %v3133 = vmul.f32 %v3005, 1.442695
      %v3134 = vpow.pop %v3133
      %v3135 = vmul.f32 %v3006, 1.442695
      %v3136 = vpow.pop %v3135
      %v3137 = vmul.f32 %v3007, 1.442695
      %v3138 = vpow.pop %v3137
      %v3139 = vmul.f32 %v3008, 1.442695
      %v3140 = vpow.pop %v3139
      %v3141 = vmul.f32 %v3009, 1.442695
      %v3142 = vpow.pop %v3141
      %v3143 = vmul.f32 %v3010, 1.442695
      %v3144 = vpow.pop %v3143
      %v3145 = vmul.f32 %v3011, 1.442695
      %v3146 = vpow.pop %v3145
      %v3147 = vmul.f32 %v3012, 1.442695
      %v3148 = vpow.pop %v3147
      %v3149 = vmul.f32 %v3013, 1.442695
      %v3150 = vpow.pop %v3149
      %v3151 = vmul.f32 %v3014, 1.442695
      %v3152 = vpow.pop %v3151
      %v3153 = vmul.f32 %v3015, 1.442695
      %v3154 = vpow.pop %v3153
      %v3155 = vmul.f32 %v3016, 1.442695
      %v3156 = vpow.pop %v3155
      %v3157 = vmul.f32 %v3017, 1.442695
      %v3158 = vpow.pop %v3157
      %v3159 = vmul.f32 %v3018, 1.442695
      %v3160 = vpow.pop %v3159
      %v3161 = vmul.f32 %v3019, 1.442695
      %v3162 = vpow.pop %v3161
      %v3163 = vmul.f32 %v3020, 1.442695
      %v3164 = vpow.pop %v3163
      %v3165 = vmul.f32 %v3021, 1.442695
      %v3166 = vpow.pop %v3165
      %v3167 = vmul.f32 %v3022, 1.442695
      %v3168 = vpow.pop %v3167
      %v3169 = vmul.f32 %v3023, 1.442695
      %v3170 = vpow.pop %v3169
      %v3171 = vmul.f32 %v3024, 1.442695
      %v3172 = vpow.pop %v3171
      %v3173 = vmul.f32 %v3025, 1.442695
      %v3174 = vpow.pop %v3173
      %v3175 = vmul.f32 %v3026, 1.442695
      %v3176 = vpow.pop %v3175
      %v3177 = vmul.f32 %v3027, 1.442695
      %v3178 = vpow.pop %v3177
      %v3179 = vmul.f32 %v3028, 1.442695
      %v3180 = vpow.pop %v3179
      %v3181 = vmul.f32 %v3029, 1.442695
      %v3182 = vpow.pop %v3181
      %v3183 = vmul.f32 %v3030, 1.442695
      %v3184 = vpow.pop %v3183
      %v3185 = vmul.f32 %v3031, 1.442695
      %v3186 = vpow.pop %v3185
      %v3187 = vmul.f32 %v3032, 1.442695
      %v3188 = vpow.pop %v3187
      %v3189 = vmul.f32 %v3033, 1.442695
      %v3190 = vpow.pop %v3189
      %v3191 = vmul.f32 %v3034, 1.442695
      %v3192 = vpow.pop %v3191
      %v3193 = vmul.f32 %v3035, 1.442695
      %v3194 = vpow.pop %v3193
      %v3195 = vmul.f32 %v3036, 1.442695
      %v3196 = vpow.pop %v3195
      %v3197 = vmul.f32 %v3037, 1.442695
      %v3198 = vpow.pop %v3197
      %v3199 = vmul.f32 %v3038, 1.442695
      %v3200 = vpow.pop %v3199
      %v3201 = vmul.f32 %v3039, 1.442695
      %v3202 = vpow.pop %v3201
      %v3203 = vmul.f32 %v3040, 1.442695
      %v3204 = vpow.pop %v3203
      %v3205 = vmul.f32 %v3041, 1.442695
      %v3206 = vpow.pop %v3205
      %v3207 = vmul.f32 %v3042, 1.442695
      %v3208 = vpow.pop %v3207
      %v3209 = vmul.f32 %v3043, 1.442695
      %v3210 = vpow.pop %v3209
      %v3211 = vmul.f32 %v3044, 1.442695
      %v3212 = vpow.pop %v3211
      %v3213 = vmul.f32 %v3045, 1.442695
      %v3214 = vpow.pop %v3213
      %v3215 = vmul.f32 %v3046, 1.442695
      %v3216 = vpow.pop %v3215
      %v3217 = vmul.f32 %v3047, 1.442695
      %v3218 = vpow.pop %v3217
      %v3219 = vmul.f32 %v3048, 1.442695
      %v3220 = vpow.pop %v3219
      %v3221 = vmul.f32 %v3049, 1.442695
      %v3222 = vpow.pop %v3221
      %v3223 = vmul.f32 %v3050, 1.442695
      %v3224 = vpow.pop %v3223
      %v3225 = vmul.f32 %v3051, 1.442695
      %v3226 = vpow.pop %v3225
      %v3227 = vmul.f32 %v3052, 1.442695
      %v3228 = vpow.pop %v3227
      %v3229 = vmul.f32 %v3053, 1.442695
      %v3230 = vpow.pop %v3229
      %v3231 = vmul.f32 %v3054, 1.442695
      %v3232 = vpow.pop %v3231
      %v3233 = vmul.f32 %v3055, 1.442695
      %v3234 = vpow.pop %v3233
      %v3235 = vmul.f32 %v3056, 1.442695
      %v3236 = vpow.pop %v3235
      %v3237 = vmul.f32 %v3057, 1.442695
      %v3238 = vpow.pop %v3237
      %v3239 = vmul.f32 %v3058, 1.442695
      %v3240 = vpow.pop %v3239
      %v3241 = vmul.f32 %v3059, 1.442695
      %v3242 = vpow.pop %v3241
      %v3243 = vmul.f32 %v3060, 1.442695
      %v3244 = vpow.pop %v3243
      %v3245 = vmul.f32 %v3061, 1.442695
      %v3246 = vpow.pop %v3245
      %v3247 = vmul.f32 %v3062, 1.442695
      %v3248 = vpow.pop %v3247
      %v3249 = vmul.f32 %v3063, 1.442695
      %v3250 = vpow.pop %v3249
      %v3251 = vmul.f32 %v3064, 1.442695
      %v3252 = vpow.pop %v3251
      %v3253 = vmul.f32 %v3065, 1.442695
      %v3254 = vpow.pop %v3253
      %v3255 = vmul.f32 %v3066, 1.442695
      %v3256 = vpow.pop %v3255
      %v3257 = vmul.f32 %v3067, 1.442695
      %v3258 = vpow.pop %v3257
      %v3259 = vmul.f32 %v3068, 1.442695
      %v3260 = vpow.pop %v3259
      %v3261 = vmul.f32 %v3069, 1.442695
      %v3262 = vpow.pop %v3261
      %v3263 = vmul.f32 %v3070, 1.442695
      %v3264 = vpow.pop %v3263
      %v3265 = vmul.f32 %v3071, 1.442695
      %v3266 = vpow.pop %v3265
      %v3267 = vmul.f32 %v3072, 1.442695
      %v3268 = vpow.pop %v3267
      %v3269 = vmul.f32 %v3073, 1.442695
      %v3270 = vpow.pop %v3269
      %v3271 = vmul.f32 %v3074, 1.442695
      %v3272 = vpow.pop %v3271
      %v3273 = vmul.f32 %v3075, 1.442695
      %v3274 = vpow.pop %v3273
      %v3275 = vmul.f32 %v3076, 1.442695
      %v3276 = vpow.pop %v3275
      %v3277 = vmul.f32 %v3077, 1.442695
      %v3278 = vpow.pop %v3277
      %v3279 = vmul.f32 %v3078, 1.442695
      %v3280 = vpow.pop %v3279
      %v3281 = vmul.f32 %v3079, 1.442695
      %v3282 = vpow.pop %v3281
      %v3283 = vmul.f32 %v3080, 1.442695
      %v3284 = vpow.pop %v3283
      %v3285 = vmul.f32 %v3081, 1.442695
      %v3286 = vpow.pop %v3285
      %v3287 = vmul.f32 %v3082, 1.442695
      %v3288 = vpow.pop %v3287
      %v3289 = vmul.f32 %v3083, 1.442695
      %v3290 = vpow.pop %v3289
      %v3291 = vmul.f32 %v3084, 1.442695
      %v3292 = vpow.pop %v3291
      %v3293 = vmul.f32 %v3085, 1.442695
      %v3294 = vpow.pop %v3293
      %v3295 = vmul.f32 %v3086, 1.442695
      %v3296 = vpow.pop %v3295
      %v3297 = vmul.f32 %v3087, 1.442695
      %v3298 = vpow.pop %v3297
      %v3299 = vmul.f32 %v3088, 1.442695
      %v3300 = vpow.pop %v3299
      %v3301 = vmul.f32 %v3089, 1.442695
      %v3302 = vpow.pop %v3301
      %v3303 = vmul.f32 %v3090, 1.442695
      %v3304 = vpow.pop %v3303
      %v3305 = vmul.f32 %v3091, 1.442695
      %v3306 = vpow.pop %v3305
      %v3307 = vmul.f32 %v3092, 1.442695
      %v3308 = vpow.pop %v3307
      %v3309 = vmul.f32 %v3093, 1.442695
      %v3310 = vpow.pop %v3309
      %v3311 = vmul.f32 %v3094, 1.442695
      %v3312 = vpow.pop %v3311
      %v3313 = vmul.f32 %v3095, 1.442695
      %v3314 = vpow.pop %v3313
      %v3315 = vmul.f32 %v3096, 1.442695
      %v3316 = vpow.pop %v3315
      %v3317 = vmul.f32 %v3097, 1.442695
      %v3318 = vpow.pop %v3317
      %v3319 = vmul.f32 %v3098, 1.442695
      %v3320 = vpow.pop %v3319
      %v3321 = vmul.f32 %v3099, 1.442695
      %v3322 = vpow.pop %v3321
      %v3323 = vmul.f32 %v3100, 1.442695
      %v3324 = vpow.pop %v3323
      %v3325 = vadd.f32 %v3102, 1.0
      %v3326 = vadd.f32 %v3104, 1.0
      %v3327 = vadd.f32 %v3106, 1.0
      %v3328 = vadd.f32 %v3108, 1.0
      %v3329 = vadd.f32 %v3110, 1.0
      %v3330 = vadd.f32 %v3112, 1.0
      %v3331 = vadd.f32 %v3114, 1.0
      %v3332 = vadd.f32 %v3116, 1.0
      %v3333 = vadd.f32 %v3118, 1.0
      %v3334 = vadd.f32 %v3120, 1.0
      %v3335 = vadd.f32 %v3122, 1.0
      %v3336 = vadd.f32 %v3124, 1.0
      %v3337 = vadd.f32 %v3126, 1.0
      %v3338 = vadd.f32 %v3128, 1.0
      %v3339 = vadd.f32 %v3130, 1.0
      %v3340 = vadd.f32 %v3132, 1.0
      %v3341 = vadd.f32 %v3134, 1.0
      %v3342 = vadd.f32 %v3136, 1.0
      %v3343 = vadd.f32 %v3138, 1.0
      %v3344 = vadd.f32 %v3140, 1.0
      %v3345 = vadd.f32 %v3142, 1.0
      %v3346 = vadd.f32 %v3144, 1.0
      %v3347 = vadd.f32 %v3146, 1.0
      %v3348 = vadd.f32 %v3148, 1.0
      %v3349 = vadd.f32 %v3150, 1.0
      %v3350 = vadd.f32 %v3152, 1.0
      %v3351 = vadd.f32 %v3154, 1.0
      %v3352 = vadd.f32 %v3156, 1.0
      %v3353 = vadd.f32 %v3158, 1.0
      %v3354 = vadd.f32 %v3160, 1.0
      %v3355 = vadd.f32 %v3162, 1.0
      %v3356 = vadd.f32 %v3164, 1.0
      %v3357 = vadd.f32 %v3166, 1.0
      %v3358 = vadd.f32 %v3168, 1.0
      %v3359 = vadd.f32 %v3170, 1.0
      %v3360 = vadd.f32 %v3172, 1.0
      %v3361 = vadd.f32 %v3174, 1.0
      %v3362 = vadd.f32 %v3176, 1.0
      %v3363 = vadd.f32 %v3178, 1.0
      %v3364 = vadd.f32 %v3180, 1.0
      %v3365 = vadd.f32 %v3182, 1.0
      %v3366 = vadd.f32 %v3184, 1.0
      %v3367 = vadd.f32 %v3186, 1.0
      %v3368 = vadd.f32 %v3188, 1.0
      %v3369 = vadd.f32 %v3190, 1.0
      %v3370 = vadd.f32 %v3192, 1.0
      %v3371 = vadd.f32 %v3194, 1.0
      %v3372 = vadd.f32 %v3196, 1.0
      %v3373 = vadd.f32 %v3198, 1.0
      %v3374 = vadd.f32 %v3200, 1.0
      %v3375 = vadd.f32 %v3202, 1.0
      %v3376 = vadd.f32 %v3204, 1.0
      %v3377 = vadd.f32 %v3206, 1.0
      %v3378 = vadd.f32 %v3208, 1.0
      %v3379 = vadd.f32 %v3210, 1.0
      %v3380 = vadd.f32 %v3212, 1.0
      %v3381 = vadd.f32 %v3214, 1.0
      %v3382 = vadd.f32 %v3216, 1.0
      %v3383 = vadd.f32 %v3218, 1.0
      %v3384 = vadd.f32 %v3220, 1.0
      %v3385 = vadd.f32 %v3222, 1.0
      %v3386 = vadd.f32 %v3224, 1.0
      %v3387 = vadd.f32 %v3226, 1.0
      %v3388 = vadd.f32 %v3228, 1.0
      %v3389 = vadd.f32 %v3230, 1.0
      %v3390 = vadd.f32 %v3232, 1.0
      %v3391 = vadd.f32 %v3234, 1.0
      %v3392 = vadd.f32 %v3236, 1.0
      %v3393 = vadd.f32 %v3238, 1.0
      %v3394 = vadd.f32 %v3240, 1.0
      %v3395 = vadd.f32 %v3242, 1.0
      %v3396 = vadd.f32 %v3244, 1.0
      %v3397 = vadd.f32 %v3246, 1.0
      %v3398 = vadd.f32 %v3248, 1.0
      %v3399 = vadd.f32 %v3250, 1.0
      %v3400 = vadd.f32 %v3252, 1.0
      %v3401 = vadd.f32 %v3254, 1.0
      %v3402 = vadd.f32 %v3256, 1.0
      %v3403 = vadd.f32 %v3258, 1.0
      %v3404 = vadd.f32 %v3260, 1.0
      %v3405 = vadd.f32 %v3262, 1.0
      %v3406 = vadd.f32 %v3264, 1.0
      %v3407 = vadd.f32 %v3266, 1.0
      %v3408 = vadd.f32 %v3268, 1.0
      %v3409 = vadd.f32 %v3270, 1.0
      %v3410 = vadd.f32 %v3272, 1.0
      %v3411 = vadd.f32 %v3274, 1.0
      %v3412 = vadd.f32 %v3276, 1.0
      %v3413 = vadd.f32 %v3278, 1.0
      %v3414 = vadd.f32 %v3280, 1.0
      %v3415 = vadd.f32 %v3282, 1.0
      %v3416 = vadd.f32 %v3284, 1.0
      %v3417 = vadd.f32 %v3286, 1.0
      %v3418 = vadd.f32 %v3288, 1.0
      %v3419 = vadd.f32 %v3290, 1.0
      %v3420 = vadd.f32 %v3292, 1.0
      %v3421 = vadd.f32 %v3294, 1.0
      %v3422 = vadd.f32 %v3296, 1.0
      %v3423 = vadd.f32 %v3298, 1.0
      %v3424 = vadd.f32 %v3300, 1.0
      %v3425 = vadd.f32 %v3302, 1.0
      %v3426 = vadd.f32 %v3304, 1.0
      %v3427 = vadd.f32 %v3306, 1.0
      %v3428 = vadd.f32 %v3308, 1.0
      %v3429 = vadd.f32 %v3310, 1.0
      %v3430 = vadd.f32 %v3312, 1.0
      %v3431 = vadd.f32 %v3314, 1.0
      %v3432 = vadd.f32 %v3316, 1.0
      %v3433 = vadd.f32 %v3318, 1.0
      %v3434 = vadd.f32 %v3320, 1.0
      %v3435 = vadd.f32 %v3322, 1.0
      %v3436 = vadd.f32 %v3324, 1.0
      %v3437 = vrcp.pop %v3325
      %v3438 = vrcp.pop %v3326
      %v3439 = vrcp.pop %v3327
      %v3440 = vrcp.pop %v3328
      %v3441 = vrcp.pop %v3329
      %v3442 = vrcp.pop %v3330
      %v3443 = vrcp.pop %v3331
      %v3444 = vrcp.pop %v3332
      %v3445 = vrcp.pop %v3333
      %v3446 = vrcp.pop %v3334
      %v3447 = vrcp.pop %v3335
      %v3448 = vrcp.pop %v3336
      %v3449 = vrcp.pop %v3337
      %v3450 = vrcp.pop %v3338
      %v3451 = vrcp.pop %v3339
      %v3452 = vrcp.pop %v3340
      %v3453 = vrcp.pop %v3341
      %v3454 = vrcp.pop %v3342
      %v3455 = vrcp.pop %v3343
      %v3456 = vrcp.pop %v3344
      %v3457 = vrcp.pop %v3345
      %v3458 = vrcp.pop %v3346
      %v3459 = vrcp.pop %v3347
      %v3460 = vrcp.pop %v3348
      %v3461 = vrcp.pop %v3349
      %v3462 = vrcp.pop %v3350
      %v3463 = vrcp.pop %v3351
      %v3464 = vrcp.pop %v3352
      %v3465 = vrcp.pop %v3353
      %v3466 = vrcp.pop %v3354
      %v3467 = vrcp.pop %v3355
      %v3468 = vrcp.pop %v3356
      %v3469 = vrcp.pop %v3357
      %v3470 = vrcp.pop %v3358
      %v3471 = vrcp.pop %v3359
      %v3472 = vrcp.pop %v3360
      %v3473 = vrcp.pop %v3361
      %v3474 = vrcp.pop %v3362
      %v3475 = vrcp.pop %v3363
      %v3476 = vrcp.pop %v3364
      %v3477 = vrcp.pop %v3365
      %v3478 = vrcp.pop %v3366
      %v3479 = vrcp.pop %v3367
      %v3480 = vrcp.pop %v3368
      %v3481 = vrcp.pop %v3369
      %v3482 = vrcp.pop %v3370
      %v3483 = vrcp.pop %v3371
      %v3484 = vrcp.pop %v3372
      %v3485 = vrcp.pop %v3373
      %v3486 = vrcp.pop %v3374
      %v3487 = vrcp.pop %v3375
      %v3488 = vrcp.pop %v3376
      %v3489 = vrcp.pop %v3377
      %v3490 = vrcp.pop %v3378
      %v3491 = vrcp.pop %v3379
      %v3492 = vrcp.pop %v3380
      %v3493 = vrcp.pop %v3381
      %v3494 = vrcp.pop %v3382
      %v3495 = vrcp.pop %v3383
      %v3496 = vrcp.pop %v3384
      %v3497 = vrcp.pop %v3385
      %v3498 = vrcp.pop %v3386
      %v3499 = vrcp.pop %v3387
      %v3500 = vrcp.pop %v3388
      %v3501 = vrcp.pop %v3389
      %v3502 = vrcp.pop %v3390
      %v3503 = vrcp.pop %v3391
      %v3504 = vrcp.pop %v3392
      %v3505 = vrcp.pop %v3393
      %v3506 = vrcp.pop %v3394
      %v3507 = vrcp.pop %v3395
      %v3508 = vrcp.pop %v3396
      %v3509 = vrcp.pop %v3397
      %v3510 = vrcp.pop %v3398
      %v3511 = vrcp.pop %v3399
      %v3512 = vrcp.pop %v3400
      %v3513 = vrcp.pop %v3401
      %v3514 = vrcp.pop %v3402
      %v3515 = vrcp.pop %v3403
      %v3516 = vrcp.pop %v3404
      %v3517 = vrcp.pop %v3405
      %v3518 = vrcp.pop %v3406
      %v3519 = vrcp.pop %v3407
      %v3520 = vrcp.pop %v3408
      %v3521 = vrcp.pop %v3409
      %v3522 = vrcp.pop %v3410
      %v3523 = vrcp.pop %v3411
      %v3524 = vrcp.pop %v3412
      %v3525 = vrcp.pop %v3413
      %v3526 = vrcp.pop %v3414
      %v3527 = vrcp.pop %v3415
      %v3528 = vrcp.pop %v3416
      %v3529 = vrcp.pop %v3417
      %v3530 = vrcp.pop %v3418
      %v3531 = vrcp.pop %v3419
      %v3532 = vrcp.pop %v3420
      %v3533 = vrcp.pop %v3421
      %v3534 = vrcp.pop %v3422
      %v3535 = vrcp.pop %v3423
      %v3536 = vrcp.pop %v3424
      %v3537 = vrcp.pop %v3425
      %v3538 = vrcp.pop %v3426
      %v3539 = vrcp.pop %v3427
      %v3540 = vrcp.pop %v3428
      %v3541 = vrcp.pop %v3429
      %v3542 = vrcp.pop %v3430
      %v3543 = vrcp.pop %v3431
      %v3544 = vrcp.pop %v3432
      %v3545 = vrcp.pop %v3433
      %v3546 = vrcp.pop %v3434
      %v3547 = vrcp.pop %v3435
      %v3548 = vrcp.pop %v3436
      %3549 = vst [vmem:[%s228] sm:$0xff] %v3437
      %3550 = vst [vmem:[%s228 + $0x8] sm:$0xff] %v3438
      %3551 = vst [vmem:[%s228 + $0x10] sm:$0xff] %v3439
      %3552 = vst [vmem:[%s228 + $0x18] sm:$0xff] %v3440
      %3553 = vst [vmem:[%s228 + $0x20] sm:$0xff] %v3441
      %3554 = vst [vmem:[%s228 + $0x28] sm:$0xff] %v3442
      %3555 = vst [vmem:[%s228 + $0x30] sm:$0xff] %v3443
      %3556 = vst [vmem:[%s228 + $0x38] sm:$0xff] %v3444
      %3557 = vst [vmem:[%s228 + $0x40] sm:$0xff] %v3445
      %3558 = vst [vmem:[%s228 + $0x48] sm:$0xff] %v3446
      %3559 = vst [vmem:[%s228 + $0x50] sm:$0xff] %v3447
      %3560 = vst [vmem:[%s228 + $0x58] sm:$0xff] %v3448
      %3561 = vst [vmem:[%s228 + $0x60] sm:$0xff] %v3449
      %3562 = vst [vmem:[%s228 + $0x68] sm:$0xff] %v3450
      %3563 = vst [vmem:[%s228 + $0x70] sm:$0xff] %v3451
      %3564 = vst [vmem:[%s228 + $0x78] sm:$0xff] %v3452
      %3565 = vst [vmem:[%s228 + $0x80] sm:$0xff] %v3453
      %3566 = vst [vmem:[%s228 + $0x88] sm:$0xff] %v3454
      %3567 = vst [vmem:[%s228 + $0x90] sm:$0xff] %v3455
      %3568 = vst [vmem:[%s228 + $0x98] sm:$0xff] %v3456
      %3569 = vst [vmem:[%s228 + $0xa0] sm:$0xff] %v3457
      %3570 = vst [vmem:[%s228 + $0xa8] sm:$0xff] %v3458
      %3571 = vst [vmem:[%s228 + $0xb0] sm:$0xff] %v3459
      %3572 = vst [vmem:[%s228 + $0xb8] sm:$0xff] %v3460
      %3573 = vst [vmem:[%s228 + $0xc0] sm:$0xff] %v3461
      %3574 = vst [vmem:[%s228 + $0xc8] sm:$0xff] %v3462
      %3575 = vst [vmem:[%s228 + $0xd0] sm:$0xff] %v3463
      %3576 = vst [vmem:[%s228 + $0xd8] sm:$0xff] %v3464
      %3577 = vst [vmem:[%s228 + $0xe0] sm:$0xff] %v3465
      %3578 = vst [vmem:[%s228 + $0xe8] sm:$0xff] %v3466
      %3579 = vst [vmem:[%s228 + $0xf0] sm:$0xff] %v3467
      %3580 = vst [vmem:[%s228 + $0xf8] sm:$0xff] %v3468
      %3581 = vst [vmem:[%s228 + $0x100] sm:$0xff] %v3469
      %3582 = vst [vmem:[%s228 + $0x108] sm:$0xff] %v3470
      %3583 = vst [vmem:[%s228 + $0x110] sm:$0xff] %v3471
      %3584 = vst [vmem:[%s228 + $0x118] sm:$0xff] %v3472
      %3585 = vst [vmem:[%s228 + $0x120] sm:$0xff] %v3473
      %3586 = vst [vmem:[%s228 + $0x128] sm:$0xff] %v3474
      %3587 = vst [vmem:[%s228 + $0x130] sm:$0xff] %v3475
      %3588 = vst [vmem:[%s228 + $0x138] sm:$0xff] %v3476
      %3589 = vst [vmem:[%s228 + $0x140] sm:$0xff] %v3477
      %3590 = vst [vmem:[%s228 + $0x148] sm:$0xff] %v3478
      %3591 = vst [vmem:[%s228 + $0x150] sm:$0xff] %v3479
      %3592 = vst [vmem:[%s228 + $0x158] sm:$0xff] %v3480
      %3593 = vst [vmem:[%s228 + $0x160] sm:$0xff] %v3481
      %3594 = vst [vmem:[%s228 + $0x168] sm:$0xff] %v3482
      %3595 = vst [vmem:[%s228 + $0x170] sm:$0xff] %v3483
      %3596 = vst [vmem:[%s228 + $0x178] sm:$0xff] %v3484
      %3597 = vst [vmem:[%s228 + $0x180] sm:$0xff] %v3485
      %3598 = vst [vmem:[%s228 + $0x188] sm:$0xff] %v3486
      %3599 = vst [vmem:[%s228 + $0x190] sm:$0xff] %v3487
      %3600 = vst [vmem:[%s228 + $0x198] sm:$0xff] %v3488
      %3601 = vst [vmem:[%s228 + $0x1a0] sm:$0xff] %v3489
      %3602 = vst [vmem:[%s228 + $0x1a8] sm:$0xff] %v3490
      %3603 = vst [vmem:[%s228 + $0x1b0] sm:$0xff] %v3491
      %3604 = vst [vmem:[%s228 + $0x1b8] sm:$0xff] %v3492
      %3605 = vst [vmem:[%s228 + $0x1c0] sm:$0xff] %v3493
      %3606 = vst [vmem:[%s228 + $0x1c8] sm:$0xff] %v3494
      %3607 = vst [vmem:[%s228 + $0x1d0] sm:$0xff] %v3495
      %3608 = vst [vmem:[%s228 + $0x1d8] sm:$0xff] %v3496
      %3609 = vst [vmem:[%s228 + $0x1e0] sm:$0xff] %v3497
      %3610 = vst [vmem:[%s228 + $0x1e8] sm:$0xff] %v3498
      %3611 = vst [vmem:[%s228 + $0x1f0] sm:$0xff] %v3499
      %3612 = vst [vmem:[%s228 + $0x1f8] sm:$0xff] %v3500
      %3613 = vst [vmem:[%s228 + $0x200] sm:$0xff] %v3501
      %3614 = vst [vmem:[%s228 + $0x208] sm:$0xff] %v3502
      %3615 = vst [vmem:[%s228 + $0x210] sm:$0xff] %v3503
      %3616 = vst [vmem:[%s228 + $0x218] sm:$0xff] %v3504
      %3617 = vst [vmem:[%s228 + $0x220] sm:$0xff] %v3505
      %3618 = vst [vmem:[%s228 + $0x228] sm:$0xff] %v3506
      %3619 = vst [vmem:[%s228 + $0x230] sm:$0xff] %v3507
      %3620 = vst [vmem:[%s228 + $0x238] sm:$0xff] %v3508
      %3621 = vst [vmem:[%s228 + $0x240] sm:$0xff] %v3509
      %3622 = vst [vmem:[%s228 + $0x248] sm:$0xff] %v3510
      %3623 = vst [vmem:[%s228 + $0x250] sm:$0xff] %v3511
      %3624 = vst [vmem:[%s228 + $0x258] sm:$0xff] %v3512
      %3625 = vst [vmem:[%s228 + $0x260] sm:$0xff] %v3513
      %3626 = vst [vmem:[%s228 + $0x268] sm:$0xff] %v3514
      %3627 = vst [vmem:[%s228 + $0x270] sm:$0xff] %v3515
      %3628 = vst [vmem:[%s228 + $0x278] sm:$0xff] %v3516
      %3629 = vst [vmem:[%s228 + $0x280] sm:$0xff] %v3517
      %3630 = vst [vmem:[%s228 + $0x288] sm:$0xff] %v3518
      %3631 = vst [vmem:[%s228 + $0x290] sm:$0xff] %v3519
      %3632 = vst [vmem:[%s228 + $0x298] sm:$0xff] %v3520
      %3633 = vst [vmem:[%s228 + $0x2a0] sm:$0xff] %v3521
      %3634 = vst [vmem:[%s228 + $0x2a8] sm:$0xff] %v3522
      %3635 = vst [vmem:[%s228 + $0x2b0] sm:$0xff] %v3523
      %3636 = vst [vmem:[%s228 + $0x2b8] sm:$0xff] %v3524
      %3637 = vst [vmem:[%s228 + $0x2c0] sm:$0xff] %v3525
      %3638 = vst [vmem:[%s228 + $0x2c8] sm:$0xff] %v3526
      %3639 = vst [vmem:[%s228 + $0x2d0] sm:$0xff] %v3527
      %3640 = vst [vmem:[%s228 + $0x2d8] sm:$0xff] %v3528
      %3641 = vst [vmem:[%s228 + $0x2e0] sm:$0xff] %v3529
      %3642 = vst [vmem:[%s228 + $0x2e8] sm:$0xff] %v3530
      %3643 = vst [vmem:[%s228 + $0x2f0] sm:$0xff] %v3531
      %3644 = vst [vmem:[%s228 + $0x2f8] sm:$0xff] %v3532
      %3645 = vst [vmem:[%s228 + $0x300] sm:$0xff] %v3533
      %3646 = vst [vmem:[%s228 + $0x308] sm:$0xff] %v3534
      %3647 = vst [vmem:[%s228 + $0x310] sm:$0xff] %v3535
      %3648 = vst [vmem:[%s228 + $0x318] sm:$0xff] %v3536
      %3649 = vst [vmem:[%s228 + $0x320] sm:$0xff] %v3537
      %3650 = vst [vmem:[%s228 + $0x328] sm:$0xff] %v3538
      %3651 = vst [vmem:[%s228 + $0x330] sm:$0xff] %v3539
      %3652 = vst [vmem:[%s228 + $0x338] sm:$0xff] %v3540
      %3653 = vst [vmem:[%s228 + $0x340] sm:$0xff] %v3541
      %3654 = vst [vmem:[%s228 + $0x348] sm:$0xff] %v3542
      %3655 = vst [vmem:[%s228 + $0x350] sm:$0xff] %v3543
      %3656 = vst [vmem:[%s228 + $0x358] sm:$0xff] %v3544
      %3657 = vst [vmem:[%s228 + $0x360] sm:$0xff] %v3545
      %3658 = vst [vmem:[%s228 + $0x368] sm:$0xff] %v3546
      %3659 = vst [vmem:[%s228 + $0x370] sm:$0xff] %v3547
      %3660 = vst [vmem:[%s228 + $0x378] sm:$0xff] %v3548
      %s3661 = smul.u32 16, %s16
      %p3662 = scmp.lt.s32.totalorder %s3661, 31
      %s3663 = scalar_select %p3662, %s3661, 31
      %s3664 = smul.addr %s3663, 7
      %s3665 = smul.addr %s3664, 8
      %s3666 = scalar_lea.vmem %s5, %s3665
      // Predicated region
      $region41: #{decoder_forward.1} parent=39 // pred_check
        %p3667 = pneg %p144
      $region42: #{decoder_forward.1} parent=39 // pred_check_branch
        %3669 = sbr.rel (%p3667) target = $region44
      $region43: #{decoder_forward.1} parent=39 // pred_region
        %s3670 = smul.u32 16, %s16
      $region44: #{decoder_forward.1} parent=39 // pred_fallthru
        _
    $region40: #{decoder_forward.1} parent=5 // pred_fallthru
      _
    %p3671 = scmp.le.s32.totalorder 2, %s11
    // Predicated region
    $region45: #{decoder_forward.1} parent=5 // pred_check
      %p3672 = pneg %p3671
    $region46: #{decoder_forward.1} parent=5 // pred_check_branch
      %3674 = sbr.rel (%p3672) target = $region48
    $region47: #{decoder_forward.1} parent=5 // pred_region
      %s3675 = ssub.s32 %s11, 2
      // Predicated region
      $region49: #{decoder_forward.1} parent=47 // pred_check
        %p3676 = pneg %p150
      $region50: #{decoder_forward.1} parent=47 // pred_check_branch
        %3678 = sbr.rel (%p3676) target = $region52
      $region51: #{decoder_forward.1} parent=47 // pred_region
        %s3679 = smul.u32 16, %s17
        %p3680 = scmp.lt.s32.totalorder %s3679, 31
        %s3681 = scalar_select %p3680, %s3679, 31
        %s3682 = smul.addr %s3681, 7
        %s3683 = smul.addr %s3682, 8
        %s3684 = scalar_lea.vmem %s5, %s3683
      $region52: #{decoder_forward.1} parent=47 // pred_fallthru
        _
    $region48: #{decoder_forward.1} parent=5 // pred_fallthru
      _
  $region6: #{decoder_forward.1} parent=0 // loop_footer
    %s15 = sadd.s32 1, %s11
  $region7: #{decoder_forward.1} parent=0 // loop_footer_branch
    %10 = sbr.rel target = $region3
  $region8: #{decoder_forward.1} parent=0 // loop_exit
    _

</llo_original>
